<compile_context>
chip_gen: v6e
topology: v6e:2x2x1
jax: 0.10.0
libtpu: 0.0.40
codegen_flags: <defaults>
</compile_context>

<pallas_src>
import jax
import jax.numpy as jnp
from jax import lax
from jax.experimental import pallas as pl
from jax.experimental.pallas import tpu as pltpu


_NEG = -3.0e38  # Python float literal (never a captured const); acts as -inf
                # for the max-pool (safe: cv1 ends in SiLU, outputs >= -0.279).


def _silu(x):
    return x * jax.nn.sigmoid(x)


def _rup(n, m):
    return ((n + m - 1) // m) * m


# ----------------------------- Pallas kernel --------------------------------
def sppf_kernel(x_ref, w1_ref, o1_ref, w2a_ref, w2b_ref, w2c_ref, w2d_ref,
                o2_ref, out_ref, pad_ref):
    """Fully fused SPPF for one batch image (NHWC, channel-padded)."""
    _, H, W, c1p = x_ref.shape
    chp = w1_ref.shape[1]
    c2p = out_ref.shape[3]
    HW = H * W

    # ---- cv1: 1x1 conv on the MXU (BN scale pre-folded into w1) + SiLU -----
    xm = x_ref[0].reshape(HW, c1p)                      # bf16
    z1 = jnp.dot(xm, w1_ref[...], preferred_element_type=jnp.float32)
    xh = _silu(z1 + o1_ref[...])                        # (HW, chp) f32

    # ---- validity masks for the shifted pooling taps (computed once, reused
    #      by all three pools; scratch contents outside the valid source range
    #      are never trusted, so no scratch init / -inf border fill is needed).
    w_idx = lax.broadcasted_iota(jnp.int32, (H, W, chp), 1)
    h_idx = lax.broadcasted_iota(jnp.int32, (H, W, chp), 0)
    wm2l, wm1l = w_idx >= 2, w_idx >= 1                  # taps w-2, w-1
    wm1r, wm2r = w_idx < W - 1, w_idx < W - 2            # taps w+1, w+2
    hm2u, hm1u = h_idx >= 2, h_idx >= 1                  # taps h-2, h-1
    hm1d, hm2d = h_idx < H - 1, h_idx < H - 2            # taps h+1, h+2

    def maxpool5(t):
        """MaxPool2d(5, stride=1, pad=2), separable; t/result: (HW, chp) f32.

        Interior is stored once per pass at an aligned offset (row 2, col 8);
        the four shifted window loads are masked with the iota masks above.
        Row-shifted loads are leading-dim offsets (cheap); the column-shifted
        loads are realigned on the XLU, which is otherwise idle here.
        """
        t3 = t.reshape(H, W, chp)
        # --- W direction (center tap reused from registers) ---
        pad_ref[pl.ds(2, H), pl.ds(8, W), :] = t3
        m = jnp.maximum(
            jnp.maximum(
                t3,
                jnp.maximum(
                    jnp.where(wm2l, pad_ref[pl.ds(2, H), pl.ds(6, W), :], _NEG),
                    jnp.where(wm1l, pad_ref[pl.ds(2, H), pl.ds(7, W), :], _NEG))),
            jnp.maximum(
                jnp.where(wm1r, pad_ref[pl.ds(2, H), pl.ds(9, W), :], _NEG),
                jnp.where(wm2r, pad_ref[pl.ds(2, H), pl.ds(10, W), :], _NEG)))
        # --- H direction (leading-dim offsets, aligned) ---
        pad_ref[pl.ds(2, H), pl.ds(8, W), :] = m
        r = jnp.maximum(
            jnp.maximum(
                m,
                jnp.maximum(
                    jnp.where(hm2u, pad_ref[pl.ds(0, H), pl.ds(8, W), :], _NEG),
                    jnp.where(hm1u, pad_ref[pl.ds(1, H), pl.ds(8, W), :], _NEG))),
            jnp.maximum(
                jnp.where(hm1d, pad_ref[pl.ds(3, H), pl.ds(8, W), :], _NEG),
                jnp.where(hm2d, pad_ref[pl.ds(4, H), pl.ds(8, W), :], _NEG)))
        return r.reshape(HW, chp)

    # ---- cv2: channel concat folded into 4 weight blocks; each dot is issued
    #      right after its pooled operand so the MXU overlaps the next pool. --
    acc = jnp.dot(xh.astype(jnp.bfloat16), w2a_ref[...],
                  preferred_element_type=jnp.float32)
    y = maxpool5(xh)
    acc += jnp.dot(y.astype(jnp.bfloat16), w2b_ref[...],
                   preferred_element_type=jnp.float32)
    y = maxpool5(y)
    acc += jnp.dot(y.astype(jnp.bfloat16), w2c_ref[...],
                   preferred_element_type=jnp.float32)
    y = maxpool5(y)
    acc += jnp.dot(y.astype(jnp.bfloat16), w2d_ref[...],
                   preferred_element_type=jnp.float32)

    out = _silu(acc + o2_ref[...])                       # (HW, c2p) f32
    out_ref[0] = out.reshape(H, W, c2p).astype(out_ref.dtype)


# ------------------------------- glue ---------------------------------------
def bn_fold(gamma, beta, mean, var, eps=1e-5):
    scale = gamma / jnp.sqrt(var + eps)
    offset = beta - mean * scale
    return scale.reshape(1, -1), offset.reshape(1, -1)


def sppf_forward(x, p):
    """x: (B, c1, H, W) f32 NCHW -> (B, c2, H, W) f32 NCHW."""
    B, c1, H, W = x.shape
    ch = p["w1"].shape[0]            # c1 // 2
    c2 = p["w2"].shape[0]
    assert W % 8 == 0, "W must be a multiple of 8 (sublane-clean reshapes)"

    c1p = _rup(c1, 128)
    chp = _rup(ch, 128)
    c2p = _rup(c2, 128)

    # NHWC + zero-pad channels to lane multiples; bf16 for the MXU operands.
    x_nhwc = jnp.transpose(x, (0, 2, 3, 1))
    x_nhwc = jnp.pad(x_nhwc, ((0, 0), (0, 0), (0, 0), (0, c1p - c1)))
    x_nhwc = x_nhwc.astype(jnp.bfloat16)

    # cv1 weight (ch, c1, 1, 1) -> (c1p, chp) matrix with BN scale folded in.
    s1, o1 = bn_fold(p["g1"], p["be1"], p["m1"], p["v1"])
    w1 = jnp.transpose(p["w1"].reshape(ch, c1)) * s1          # (c1, ch)
    w1 = jnp.pad(w1, ((0, c1p - c1), (0, chp - ch))).astype(jnp.bfloat16)
    o1 = jnp.pad(o1, ((0, 0), (0, chp - ch)))

    # cv2 weight (c2, 4*ch, 1, 1) -> four (chp, c2p) blocks (concat folded),
    # BN scale folded into the columns.
    s2, o2 = bn_fold(p["g2"], p["be2"], p["m2"], p["v2"])
    w2 = jnp.transpose(p["w2"].reshape(c2, 4 * ch)) * s2      # (4*ch, c2)
    w2_blocks = [
        jnp.pad(w2[i * ch:(i + 1) * ch],
                ((0, chp - ch), (0, c2p - c2))).astype(jnp.bfloat16)
        for i in range(4)
    ]
    o2 = jnp.pad(o2, ((0, 0), (0, c2p - c2)))

    full = lambda shape: pl.BlockSpec(shape, lambda b: (0,) * len(shape))

    # Explicit VMEM budget: double-buffered x/out blocks + weights + pooling
    # scratch + f32 temporaries, with headroom.
    weight_bytes = 2 * (c1p * chp + 4 * chp * c2p) + 4 * (chp + c2p)
    block_bytes = 2 * H * W * (c1p + c2p)
    scratch_bytes = 4 * (H + 4) * (W + 16) * chp
    temp_bytes = 4 * H * W * (8 * chp + 2 * c2p)
    vmem_limit = int(min(100 * 2 ** 20,
                         max(32 * 2 ** 20,
                             2 * (weight_bytes + block_bytes)
                             + scratch_bytes + temp_bytes + (8 << 20))))

    cost = pl.CostEstimate(
        flops=2 * B * H * W * (c1p * chp + 4 * chp * c2p),
        transcendentals=B * H * W * (chp + c2p),
        bytes_accessed=int(x_nhwc.size * 2 + B * H * W * c2p * 2 + weight_bytes),
    )

    out_nhwc = pl.pallas_call(
        sppf_kernel,
        out_shape=jax.ShapeDtypeStruct((B, H, W, c2p), jnp.bfloat16),
        grid=(B,),
        in_specs=[
            pl.BlockSpec((1, H, W, c1p), lambda b: (b, 0, 0, 0)),
            full((c1p, chp)), full((1, chp)),
            full((chp, c2p)), full((chp, c2p)),
            full((chp, c2p)), full((chp, c2p)),
            full((1, c2p)),
        ],
        out_specs=pl.BlockSpec((1, H, W, c2p), lambda b: (b, 0, 0, 0)),
        scratch_shapes=[pltpu.VMEM((H + 4, W + 16, chp), jnp.float32)],
        compiler_params=pltpu.CompilerParams(
            dimension_semantics=("parallel",),
            vmem_limit_bytes=vmem_limit),
        cost_estimate=cost,
    )(x_nhwc, w1, o1, *w2_blocks, o2)

    # TODO(synk): keep NHWC/bf16 downstream when the surrounding model allows;
    # the slice + transpose + f32 cast below is only for NCHW/f32 parity.
    out = out_nhwc[..., :c2].astype(jnp.float32)
    return jnp.transpose(out, (0, 3, 1, 2))


# --------------------------- pure-JAX reference ------------------------------
def _conv1x1(x, w):
    return lax.conv_general_dilated(
        x, w, window_strides=(1, 1), padding="VALID",
        dimension_numbers=("NCHW", "OIHW", "NCHW"))


def _bn(x, gamma, beta, mean, var, eps=1e-5):
    r = lambda v: v.reshape(1, -1, 1, 1)
    return (x - r(mean)) / jnp.sqrt(r(var) + eps) * r(gamma) + r(beta)


def _maxpool_ref(x, k=5):
    pad = k // 2
    return lax.reduce_window(
        x, -jnp.inf, lax.max, (1, 1, k, k), (1, 1, 1, 1),
        ((0, 0), (0, 0), (pad, pad), (pad, pad)))


def reference(x, p):
    xh = _silu(_bn(_conv1x1(x, p["w1"]), p["g1"], p["be1"], p["m1"], p["v1"]))
    y1 = _maxpool_ref(xh)
    y2 = _maxpool_ref(y1)
    y3 = _maxpool_ref(y2)
    cat = jnp.concatenate([xh, y1, y2, y3], axis=1)
    return _silu(_bn(_conv1x1(cat, p["w2"]), p["g2"], p["be2"], p["m2"], p["v2"]))


# --------------------------------- main --------------------------------------
if __name__ == "__main__":
    B, c1, c2, H, W = 2, 4, 8, 16, 16
    ch = c1 // 2
    key = jax.random.PRNGKey(0)
    ks = jax.random.split(key, 12)

    params = {
        # cv1: Conv2d(c1, c1//2, 1, 1, 0, bias=False) + BN + SiLU
        "w1": jax.random.normal(ks[0], (ch, c1, 1, 1), jnp.float32) * 0.1,
        "g1": 0.5 + jax.random.uniform(ks[1], (ch,), jnp.float32),
        "be1": jax.random.normal(ks[2], (ch,), jnp.float32) * 0.1,
        "m1": jax.random.normal(ks[3], (ch,), jnp.float32) * 0.1,
        "v1": 0.5 + jax.random.uniform(ks[4], (ch,), jnp.float32),
        # cv2: Conv2d(4*ch, c2, 1, 1, 0, bias=False) + BN + SiLU
        "w2": jax.random.normal(ks[5], (c2, 4 * ch, 1, 1), jnp.float32) * 0.1,
        "g2": 0.5 + jax.random.uniform(ks[6], (c2,), jnp.float32),
        "be2": jax.random.normal(ks[7], (c2,), jnp.float32) * 0.1,
        "m2": jax.random.normal(ks[8], (c2,), jnp.float32) * 0.1,
        "v2": 0.5 + jax.random.uniform(ks[9], (c2,), jnp.float32),
    }

    x = jax.random.normal(ks[10], (B, c1, H, W), jnp.float32)

    out = jax.block_until_ready(sppf_forward(x, params))
    ref = jax.block_until_ready(reference(x, params))

    assert out.shape == (B, c2, H, W), out.shape
    max_err = float(jnp.max(jnp.abs(out - ref)))
    assert max_err < 2e-2, f"mismatch vs reference: {max_err}"

    print("KERNEL_OK")
</pallas_src>

<mosaic_0001>
module attributes {stable_mosaic.version = 11 : i64} {
  func.func @sppf_kernel(%arg0: i32, %arg1: memref<1x16x16x128xbf16, #tpu.memory_space<vmem>>, %arg2: memref<128x128xbf16, #tpu.memory_space<vmem>>, %arg3: memref<1x128xf32, #tpu.memory_space<vmem>>, %arg4: memref<128x128xbf16, #tpu.memory_space<vmem>>, %arg5: memref<128x128xbf16, #tpu.memory_space<vmem>>, %arg6: memref<128x128xbf16, #tpu.memory_space<vmem>>, %arg7: memref<128x128xbf16, #tpu.memory_space<vmem>>, %arg8: memref<1x128xf32, #tpu.memory_space<vmem>>, %arg9: memref<1x16x16x128xbf16, #tpu.memory_space<vmem>>, %arg10: memref<20x32x128xf32, #tpu.memory_space<vmem>>) attributes {dimension_semantics = [#tpu.dimension_semantics<parallel>], iteration_bounds = array<i64: 2>, scalar_prefetch = 0 : i64, scratch_operands = 1 : i64, tpu.core_type = #tpu.core_type<tc>, window_params = [{transform_indices = @transform_0, window_bounds = array<i64: 1, 16, 16, 128>}, {pipeline_mode = #tpu.pipeline_mode<synchronous>, transform_indices = @transform_1, window_bounds = array<i64: 128, 128>}, {pipeline_mode = #tpu.pipeline_mode<synchronous>, transform_indices = @transform_2, window_bounds = array<i64: 1, 128>}, {pipeline_mode = #tpu.pipeline_mode<synchronous>, transform_indices = @transform_3, window_bounds = array<i64: 128, 128>}, {pipeline_mode = #tpu.pipeline_mode<synchronous>, transform_indices = @transform_4, window_bounds = array<i64: 128, 128>}, {pipeline_mode = #tpu.pipeline_mode<synchronous>, transform_indices = @transform_5, window_bounds = array<i64: 128, 128>}, {pipeline_mode = #tpu.pipeline_mode<synchronous>, transform_indices = @transform_6, window_bounds = array<i64: 128, 128>}, {pipeline_mode = #tpu.pipeline_mode<synchronous>, transform_indices = @transform_7, window_bounds = array<i64: 1, 128>}, {transform_indices = @transform_8, window_bounds = array<i64: 1, 16, 16, 128>}]} {
    %c0 = arith.constant 0 : index
    %c0_0 = arith.constant 0 : index
    %c0_1 = arith.constant 0 : index
    %c0_2 = arith.constant 0 : index
    %0 = vector.load %arg1[%c0, %c0_0, %c0_1, %c0_2] : memref<1x16x16x128xbf16, #tpu.memory_space<vmem>>, vector<1x16x16x128xbf16>
    %1 = vector.shape_cast %0 : vector<1x16x16x128xbf16> to vector<16x16x128xbf16>
    %2 = vector.shape_cast %1 : vector<16x16x128xbf16> to vector<256x128xbf16>
    %c0_3 = arith.constant 0 : index
    %c0_4 = arith.constant 0 : index
    %3 = vector.load %arg2[%c0_3, %c0_4] : memref<128x128xbf16, #tpu.memory_space<vmem>>, vector<128x128xbf16>
    %cst = arith.constant dense<0.000000e+00> : vector<256x128xf32>
    %4 = tpu.matmul %2, %3, %cst {dimension_numbers = #tpu.dot_dimension_numbers<[1], [0], [0], [1], [0, 0, 1, 1], [], []>} : vector<256x128xbf16>, vector<128x128xbf16>, vector<256x128xf32> -> vector<256x128xf32>
    %c0_5 = arith.constant 0 : index
    %c0_6 = arith.constant 0 : index
    %5 = vector.load %arg3[%c0_5, %c0_6] : memref<1x128xf32, #tpu.memory_space<vmem>>, vector<1x128xf32>
    %6 = vector.broadcast %5 : vector<1x128xf32> to vector<256x128xf32>
    %7 = arith.addf %4, %6 : vector<256x128xf32>
    %8 = arith.negf %7 : vector<256x128xf32>
    %9 = math.exp %8 : vector<256x128xf32>
    %cst_7 = arith.constant 1.000000e+00 : f32
    %10 = vector.broadcast %cst_7 : f32 to vector<256x128xf32>
    %11 = arith.addf %10, %9 : vector<256x128xf32>
    %12 = arith.divf %10, %11 : vector<256x128xf32>
    %13 = arith.mulf %7, %12 : vector<256x128xf32>
    %14 = tpu.iota {dimensions = array<i32: 1>} : vector<16x16x128xi32>
    %15 = tpu.iota {dimensions = array<i32: 0>} : vector<16x16x128xi32>
    %c2_i32 = arith.constant 2 : i32
    %16 = vector.broadcast %c2_i32 : i32 to vector<16x16x128xi32>
    %17 = arith.cmpi sge, %14, %16 : vector<16x16x128xi32>
    %c1_i32 = arith.constant 1 : i32
    %18 = vector.broadcast %c1_i32 : i32 to vector<16x16x128xi32>
    %19 = arith.cmpi sge, %14, %18 : vector<16x16x128xi32>
    %c15_i32 = arith.constant 15 : i32
    %20 = vector.broadcast %c15_i32 : i32 to vector<16x16x128xi32>
    %21 = arith.cmpi slt, %14, %20 : vector<16x16x128xi32>
    %c14_i32 = arith.constant 14 : i32
    %22 = vector.broadcast %c14_i32 : i32 to vector<16x16x128xi32>
    %23 = arith.cmpi slt, %14, %22 : vector<16x16x128xi32>
    %c2_i32_8 = arith.constant 2 : i32
    %24 = vector.broadcast %c2_i32_8 : i32 to vector<16x16x128xi32>
    %25 = arith.cmpi sge, %15, %24 : vector<16x16x128xi32>
    %c1_i32_9 = arith.constant 1 : i32
    %26 = vector.broadcast %c1_i32_9 : i32 to vector<16x16x128xi32>
    %27 = arith.cmpi sge, %15, %26 : vector<16x16x128xi32>
    %c15_i32_10 = arith.constant 15 : i32
    %28 = vector.broadcast %c15_i32_10 : i32 to vector<16x16x128xi32>
    %29 = arith.cmpi slt, %15, %28 : vector<16x16x128xi32>
    %c14_i32_11 = arith.constant 14 : i32
    %30 = vector.broadcast %c14_i32_11 : i32 to vector<16x16x128xi32>
    %31 = arith.cmpi slt, %15, %30 : vector<16x16x128xi32>
    %32 = arith.truncf %13 : vector<256x128xf32> to vector<256x128xbf16>
    %c0_12 = arith.constant 0 : index
    %c0_13 = arith.constant 0 : index
    %33 = vector.load %arg4[%c0_12, %c0_13] : memref<128x128xbf16, #tpu.memory_space<vmem>>, vector<128x128xbf16>
    %cst_14 = arith.constant dense<0.000000e+00> : vector<256x128xf32>
    %34 = tpu.matmul %32, %33, %cst_14 {dimension_numbers = #tpu.dot_dimension_numbers<[1], [0], [0], [1], [0, 0, 1, 1], [], []>} : vector<256x128xbf16>, vector<128x128xbf16>, vector<256x128xf32> -> vector<256x128xf32>
    %35 = vector.shape_cast %13 : vector<256x128xf32> to vector<16x16x128xf32>
    %c2 = arith.constant 2 : index
    %c8 = arith.constant 8 : index
    %c0_15 = arith.constant 0 : index
    %36 = vector.load %arg10[%c2, %c8, %c0_15] : memref<20x32x128xf32, #tpu.memory_space<vmem>>, vector<16x16x128xf32>
    tpu.vector_store %arg10[%c2, %c8, %c0_15], %35 {strides = array<i32>} : memref<20x32x128xf32, #tpu.memory_space<vmem>>, vector<16x16x128xf32>,
    %c2_16 = arith.constant 2 : index
    %c6 = arith.constant 6 : index
    %c0_17 = arith.constant 0 : index
    %37 = vector.load %arg10[%c2_16, %c6, %c0_17] : memref<20x32x128xf32, #tpu.memory_space<vmem>>, vector<16x16x128xf32>
    %cst_18 = arith.constant -3.000000e+38 : f32
    %38 = vector.broadcast %cst_18 : f32 to vector<16x16x128xf32>
    %39 = arith.select %17, %37, %38 : vector<16x16x128xi1>, vector<16x16x128xf32>
    %c2_19 = arith.constant 2 : index
    %c7 = arith.constant 7 : index
    %c0_20 = arith.constant 0 : index
    %40 = vector.load %arg10[%c2_19, %c7, %c0_20] : memref<20x32x128xf32, #tpu.memory_space<vmem>>, vector<16x16x128xf32>
    %cst_21 = arith.constant -3.000000e+38 : f32
    %41 = vector.broadcast %cst_21 : f32 to vector<16x16x128xf32>
    %42 = arith.select %19, %40, %41 : vector<16x16x128xi1>, vector<16x16x128xf32>
    %43 = arith.maximumf %39, %42 : vector<16x16x128xf32>
    %44 = arith.maximumf %35, %43 : vector<16x16x128xf32>
    %c2_22 = arith.constant 2 : index
    %c9 = arith.constant 9 : index
    %c0_23 = arith.constant 0 : index
    %45 = vector.load %arg10[%c2_22, %c9, %c0_23] : memref<20x32x128xf32, #tpu.memory_space<vmem>>, vector<16x16x128xf32>
    %cst_24 = arith.constant -3.000000e+38 : f32
    %46 = vector.broadcast %cst_24 : f32 to vector<16x16x128xf32>
    %47 = arith.select %21, %45, %46 : vector<16x16x128xi1>, vector<16x16x128xf32>
    %c2_25 = arith.constant 2 : index
    %c10 = arith.constant 10 : index
    %c0_26 = arith.constant 0 : index
    %48 = vector.load %arg10[%c2_25, %c10, %c0_26] : memref<20x32x128xf32, #tpu.memory_space<vmem>>, vector<16x16x128xf32>
    %cst_27 = arith.constant -3.000000e+38 : f32
    %49 = vector.broadcast %cst_27 : f32 to vector<16x16x128xf32>
    %50 = arith.select %23, %48, %49 : vector<16x16x128xi1>, vector<16x16x128xf32>
    %51 = arith.maximumf %47, %50 : vector<16x16x128xf32>
    %52 = arith.maximumf %44, %51 : vector<16x16x128xf32>
    %c2_28 = arith.constant 2 : index
    %c8_29 = arith.constant 8 : index
    %c0_30 = arith.constant 0 : index
    %53 = vector.load %arg10[%c2_28, %c8_29, %c0_30] : memref<20x32x128xf32, #tpu.memory_space<vmem>>, vector<16x16x128xf32>
    tpu.vector_store %arg10[%c2_28, %c8_29, %c0_30], %52 {strides = array<i32>} : memref<20x32x128xf32, #tpu.memory_space<vmem>>, vector<16x16x128xf32>,
    %c0_31 = arith.constant 0 : index
    %c8_32 = arith.constant 8 : index
    %c0_33 = arith.constant 0 : index
    %54 = vector.load %arg10[%c0_31, %c8_32, %c0_33] : memref<20x32x128xf32, #tpu.memory_space<vmem>>, vector<16x16x128xf32>
    %cst_34 = arith.constant -3.000000e+38 : f32
    %55 = vector.broadcast %cst_34 : f32 to vector<16x16x128xf32>
    %56 = arith.select %25, %54, %55 : vector<16x16x128xi1>, vector<16x16x128xf32>
    %c1 = arith.constant 1 : index
    %c8_35 = arith.constant 8 : index
    %c0_36 = arith.constant 0 : index
    %57 = vector.load %arg10[%c1, %c8_35, %c0_36] : memref<20x32x128xf32, #tpu.memory_space<vmem>>, vector<16x16x128xf32>
    %cst_37 = arith.constant -3.000000e+38 : f32
    %58 = vector.broadcast %cst_37 : f32 to vector<16x16x128xf32>
    %59 = arith.select %27, %57, %58 : vector<16x16x128xi1>, vector<16x16x128xf32>
    %60 = arith.maximumf %56, %59 : vector<16x16x128xf32>
    %61 = arith.maximumf %52, %60 : vector<16x16x128xf32>
    %c3 = arith.constant 3 : index
    %c8_38 = arith.constant 8 : index
    %c0_39 = arith.constant 0 : index
    %62 = vector.load %arg10[%c3, %c8_38, %c0_39] : memref<20x32x128xf32, #tpu.memory_space<vmem>>, vector<16x16x128xf32>
    %cst_40 = arith.constant -3.000000e+38 : f32
    %63 = vector.broadcast %cst_40 : f32 to vector<16x16x128xf32>
    %64 = arith.select %29, %62, %63 : vector<16x16x128xi1>, vector<16x16x128xf32>
    %c4 = arith.constant 4 : index
    %c8_41 = arith.constant 8 : index
    %c0_42 = arith.constant 0 : index
    %65 = vector.load %arg10[%c4, %c8_41, %c0_42] : memref<20x32x128xf32, #tpu.memory_space<vmem>>, vector<16x16x128xf32>
    %cst_43 = arith.constant -3.000000e+38 : f32
    %66 = vector.broadcast %cst_43 : f32 to vector<16x16x128xf32>
    %67 = arith.select %31, %65, %66 : vector<16x16x128xi1>, vector<16x16x128xf32>
    %68 = arith.maximumf %64, %67 : vector<16x16x128xf32>
    %69 = arith.maximumf %61, %68 : vector<16x16x128xf32>
    %70 = vector.shape_cast %69 : vector<16x16x128xf32> to vector<256x128xf32>
    %71 = arith.truncf %70 : vector<256x128xf32> to vector<256x128xbf16>
    %c0_44 = arith.constant 0 : index
    %c0_45 = arith.constant 0 : index
    %72 = vector.load %arg5[%c0_44, %c0_45] : memref<128x128xbf16, #tpu.memory_space<vmem>>, vector<128x128xbf16>
    %cst_46 = arith.constant dense<0.000000e+00> : vector<256x128xf32>
    %73 = tpu.matmul %71, %72, %cst_46 {dimension_numbers = #tpu.dot_dimension_numbers<[1], [0], [0], [1], [0, 0, 1, 1], [], []>} : vector<256x128xbf16>, vector<128x128xbf16>, vector<256x128xf32> -> vector<256x128xf32>
    %74 = arith.addf %34, %73 : vector<256x128xf32>
    %75 = vector.shape_cast %70 : vector<256x128xf32> to vector<16x16x128xf32>
    %c2_47 = arith.constant 2 : index
    %c8_48 = arith.constant 8 : index
    %c0_49 = arith.constant 0 : index
    %76 = vector.load %arg10[%c2_47, %c8_48, %c0_49] : memref<20x32x128xf32, #tpu.memory_space<vmem>>, vector<16x16x128xf32>
    tpu.vector_store %arg10[%c2_47, %c8_48, %c0_49], %75 {strides = array<i32>} : memref<20x32x128xf32, #tpu.memory_space<vmem>>, vector<16x16x128xf32>,
    %c2_50 = arith.constant 2 : index
    %c6_51 = arith.constant 6 : index
    %c0_52 = arith.constant 0 : index
    %77 = vector.load %arg10[%c2_50, %c6_51, %c0_52] : memref<20x32x128xf32, #tpu.memory_space<vmem>>, vector<16x16x128xf32>
    %cst_53 = arith.constant -3.000000e+38 : f32
    %78 = vector.broadcast %cst_53 : f32 to vector<16x16x128xf32>
    %79 = arith.select %17, %77, %78 : vector<16x16x128xi1>, vector<16x16x128xf32>
    %c2_54 = arith.constant 2 : index
    %c7_55 = arith.constant 7 : index
    %c0_56 = arith.constant 0 : index
    %80 = vector.load %arg10[%c2_54, %c7_55, %c0_56] : memref<20x32x128xf32, #tpu.memory_space<vmem>>, vector<16x16x128xf32>
    %cst_57 = arith.constant -3.000000e+38 : f32
    %81 = vector.broadcast %cst_57 : f32 to vector<16x16x128xf32>
    %82 = arith.select %19, %80, %81 : vector<16x16x128xi1>, vector<16x16x128xf32>
    %83 = arith.maximumf %79, %82 : vector<16x16x128xf32>
    %84 = arith.maximumf %75, %83 : vector<16x16x128xf32>
    %c2_58 = arith.constant 2 : index
    %c9_59 = arith.constant 9 : index
    %c0_60 = arith.constant 0 : index
    %85 = vector.load %arg10[%c2_58, %c9_59, %c0_60] : memref<20x32x128xf32, #tpu.memory_space<vmem>>, vector<16x16x128xf32>
    %cst_61 = arith.constant -3.000000e+38 : f32
    %86 = vector.broadcast %cst_61 : f32 to vector<16x16x128xf32>
    %87 = arith.select %21, %85, %86 : vector<16x16x128xi1>, vector<16x16x128xf32>
    %c2_62 = arith.constant 2 : index
    %c10_63 = arith.constant 10 : index
    %c0_64 = arith.constant 0 : index
    %88 = vector.load %arg10[%c2_62, %c10_63, %c0_64] : memref<20x32x128xf32, #tpu.memory_space<vmem>>, vector<16x16x128xf32>
    %cst_65 = arith.constant -3.000000e+38 : f32
    %89 = vector.broadcast %cst_65 : f32 to vector<16x16x128xf32>
    %90 = arith.select %23, %88, %89 : vector<16x16x128xi1>, vector<16x16x128xf32>
    %91 = arith.maximumf %87, %90 : vector<16x16x128xf32>
    %92 = arith.maximumf %84, %91 : vector<16x16x128xf32>
    %c2_66 = arith.constant 2 : index
    %c8_67 = arith.constant 8 : index
    %c0_68 = arith.constant 0 : index
    %93 = vector.load %arg10[%c2_66, %c8_67, %c0_68] : memref<20x32x128xf32, #tpu.memory_space<vmem>>, vector<16x16x128xf32>
    tpu.vector_store %arg10[%c2_66, %c8_67, %c0_68], %92 {strides = array<i32>} : memref<20x32x128xf32, #tpu.memory_space<vmem>>, vector<16x16x128xf32>,
    %c0_69 = arith.constant 0 : index
    %c8_70 = arith.constant 8 : index
    %c0_71 = arith.constant 0 : index
    %94 = vector.load %arg10[%c0_69, %c8_70, %c0_71] : memref<20x32x128xf32, #tpu.memory_space<vmem>>, vector<16x16x128xf32>
    %cst_72 = arith.constant -3.000000e+38 : f32
    %95 = vector.broadcast %cst_72 : f32 to vector<16x16x128xf32>
    %96 = arith.select %25, %94, %95 : vector<16x16x128xi1>, vector<16x16x128xf32>
    %c1_73 = arith.constant 1 : index
    %c8_74 = arith.constant 8 : index
    %c0_75 = arith.constant 0 : index
    %97 = vector.load %arg10[%c1_73, %c8_74, %c0_75] : memref<20x32x128xf32, #tpu.memory_space<vmem>>, vector<16x16x128xf32>
    %cst_76 = arith.constant -3.000000e+38 : f32
    %98 = vector.broadcast %cst_76 : f32 to vector<16x16x128xf32>
    %99 = arith.select %27, %97, %98 : vector<16x16x128xi1>, vector<16x16x128xf32>
    %100 = arith.maximumf %96, %99 : vector<16x16x128xf32>
    %101 = arith.maximumf %92, %100 : vector<16x16x128xf32>
    %c3_77 = arith.constant 3 : index
    %c8_78 = arith.constant 8 : index
    %c0_79 = arith.constant 0 : index
    %102 = vector.load %arg10[%c3_77, %c8_78, %c0_79] : memref<20x32x128xf32, #tpu.memory_space<vmem>>, vector<16x16x128xf32>
    %cst_80 = arith.constant -3.000000e+38 : f32
    %103 = vector.broadcast %cst_80 : f32 to vector<16x16x128xf32>
    %104 = arith.select %29, %102, %103 : vector<16x16x128xi1>, vector<16x16x128xf32>
    %c4_81 = arith.constant 4 : index
    %c8_82 = arith.constant 8 : index
    %c0_83 = arith.constant 0 : index
    %105 = vector.load %arg10[%c4_81, %c8_82, %c0_83] : memref<20x32x128xf32, #tpu.memory_space<vmem>>, vector<16x16x128xf32>
    %cst_84 = arith.constant -3.000000e+38 : f32
    %106 = vector.broadcast %cst_84 : f32 to vector<16x16x128xf32>
    %107 = arith.select %31, %105, %106 : vector<16x16x128xi1>, vector<16x16x128xf32>
    %108 = arith.maximumf %104, %107 : vector<16x16x128xf32>
    %109 = arith.maximumf %101, %108 : vector<16x16x128xf32>
    %110 = vector.shape_cast %109 : vector<16x16x128xf32> to vector<256x128xf32>
    %111 = arith.truncf %110 : vector<256x128xf32> to vector<256x128xbf16>
    %c0_85 = arith.constant 0 : index
    %c0_86 = arith.constant 0 : index
    %112 = vector.load %arg6[%c0_85, %c0_86] : memref<128x128xbf16, #tpu.memory_space<vmem>>, vector<128x128xbf16>
    %cst_87 = arith.constant dense<0.000000e+00> : vector<256x128xf32>
    %113 = tpu.matmul %111, %112, %cst_87 {dimension_numbers = #tpu.dot_dimension_numbers<[1], [0], [0], [1], [0, 0, 1, 1], [], []>} : vector<256x128xbf16>, vector<128x128xbf16>, vector<256x128xf32> -> vector<256x128xf32>
    %114 = arith.addf %74, %113 : vector<256x128xf32>
    %115 = vector.shape_cast %110 : vector<256x128xf32> to vector<16x16x128xf32>
    %c2_88 = arith.constant 2 : index
    %c8_89 = arith.constant 8 : index
    %c0_90 = arith.constant 0 : index
    %116 = vector.load %arg10[%c2_88, %c8_89, %c0_90] : memref<20x32x128xf32, #tpu.memory_space<vmem>>, vector<16x16x128xf32>
    tpu.vector_store %arg10[%c2_88, %c8_89, %c0_90], %115 {strides = array<i32>} : memref<20x32x128xf32, #tpu.memory_space<vmem>>, vector<16x16x128xf32>,
    %c2_91 = arith.constant 2 : index
    %c6_92 = arith.constant 6 : index
    %c0_93 = arith.constant 0 : index
    %117 = vector.load %arg10[%c2_91, %c6_92, %c0_93] : memref<20x32x128xf32, #tpu.memory_space<vmem>>, vector<16x16x128xf32>
    %cst_94 = arith.constant -3.000000e+38 : f32
    %118 = vector.broadcast %cst_94 : f32 to vector<16x16x128xf32>
    %119 = arith.select %17, %117, %118 : vector<16x16x128xi1>, vector<16x16x128xf32>
    %c2_95 = arith.constant 2 : index
    %c7_96 = arith.constant 7 : index
    %c0_97 = arith.constant 0 : index
    %120 = vector.load %arg10[%c2_95, %c7_96, %c0_97] : memref<20x32x128xf32, #tpu.memory_space<vmem>>, vector<16x16x128xf32>
    %cst_98 = arith.constant -3.000000e+38 : f32
    %121 = vector.broadcast %cst_98 : f32 to vector<16x16x128xf32>
    %122 = arith.select %19, %120, %121 : vector<16x16x128xi1>, vector<16x16x128xf32>
    %123 = arith.maximumf %119, %122 : vector<16x16x128xf32>
    %124 = arith.maximumf %115, %123 : vector<16x16x128xf32>
    %c2_99 = arith.constant 2 : index
    %c9_100 = arith.constant 9 : index
    %c0_101 = arith.constant 0 : index
    %125 = vector.load %arg10[%c2_99, %c9_100, %c0_101] : memref<20x32x128xf32, #tpu.memory_space<vmem>>, vector<16x16x128xf32>
    %cst_102 = arith.constant -3.000000e+38 : f32
    %126 = vector.broadcast %cst_102 : f32 to vector<16x16x128xf32>
    %127 = arith.select %21, %125, %126 : vector<16x16x128xi1>, vector<16x16x128xf32>
    %c2_103 = arith.constant 2 : index
    %c10_104 = arith.constant 10 : index
    %c0_105 = arith.constant 0 : index
    %128 = vector.load %arg10[%c2_103, %c10_104, %c0_105] : memref<20x32x128xf32, #tpu.memory_space<vmem>>, vector<16x16x128xf32>
    %cst_106 = arith.constant -3.000000e+38 : f32
    %129 = vector.broadcast %cst_106 : f32 to vector<16x16x128xf32>
    %130 = arith.select %23, %128, %129 : vector<16x16x128xi1>, vector<16x16x128xf32>
    %131 = arith.maximumf %127, %130 : vector<16x16x128xf32>
    %132 = arith.maximumf %124, %131 : vector<16x16x128xf32>
    %c2_107 = arith.constant 2 : index
    %c8_108 = arith.constant 8 : index
    %c0_109 = arith.constant 0 : index
    %133 = vector.load %arg10[%c2_107, %c8_108, %c0_109] : memref<20x32x128xf32, #tpu.memory_space<vmem>>, vector<16x16x128xf32>
    tpu.vector_store %arg10[%c2_107, %c8_108, %c0_109], %132 {strides = array<i32>} : memref<20x32x128xf32, #tpu.memory_space<vmem>>, vector<16x16x128xf32>,
    %c0_110 = arith.constant 0 : index
    %c8_111 = arith.constant 8 : index
    %c0_112 = arith.constant 0 : index
    %134 = vector.load %arg10[%c0_110, %c8_111, %c0_112] : memref<20x32x128xf32, #tpu.memory_space<vmem>>, vector<16x16x128xf32>
    %cst_113 = arith.constant -3.000000e+38 : f32
    %135 = vector.broadcast %cst_113 : f32 to vector<16x16x128xf32>
    %136 = arith.select %25, %134, %135 : vector<16x16x128xi1>, vector<16x16x128xf32>
    %c1_114 = arith.constant 1 : index
    %c8_115 = arith.constant 8 : index
    %c0_116 = arith.constant 0 : index
    %137 = vector.load %arg10[%c1_114, %c8_115, %c0_116] : memref<20x32x128xf32, #tpu.memory_space<vmem>>, vector<16x16x128xf32>
    %cst_117 = arith.constant -3.000000e+38 : f32
    %138 = vector.broadcast %cst_117 : f32 to vector<16x16x128xf32>
    %139 = arith.select %27, %137, %138 : vector<16x16x128xi1>, vector<16x16x128xf32>
    %140 = arith.maximumf %136, %139 : vector<16x16x128xf32>
    %141 = arith.maximumf %132, %140 : vector<16x16x128xf32>
    %c3_118 = arith.constant 3 : index
    %c8_119 = arith.constant 8 : index
    %c0_120 = arith.constant 0 : index
    %142 = vector.load %arg10[%c3_118, %c8_119, %c0_120] : memref<20x32x128xf32, #tpu.memory_space<vmem>>, vector<16x16x128xf32>
    %cst_121 = arith.constant -3.000000e+38 : f32
    %143 = vector.broadcast %cst_121 : f32 to vector<16x16x128xf32>
    %144 = arith.select %29, %142, %143 : vector<16x16x128xi1>, vector<16x16x128xf32>
    %c4_122 = arith.constant 4 : index
    %c8_123 = arith.constant 8 : index
    %c0_124 = arith.constant 0 : index
    %145 = vector.load %arg10[%c4_122, %c8_123, %c0_124] : memref<20x32x128xf32, #tpu.memory_space<vmem>>, vector<16x16x128xf32>
    %cst_125 = arith.constant -3.000000e+38 : f32
    %146 = vector.broadcast %cst_125 : f32 to vector<16x16x128xf32>
    %147 = arith.select %31, %145, %146 : vector<16x16x128xi1>, vector<16x16x128xf32>
    %148 = arith.maximumf %144, %147 : vector<16x16x128xf32>
    %149 = arith.maximumf %141, %148 : vector<16x16x128xf32>
    %150 = vector.shape_cast %149 : vector<16x16x128xf32> to vector<256x128xf32>
    %151 = arith.truncf %150 : vector<256x128xf32> to vector<256x128xbf16>
    %c0_126 = arith.constant 0 : index
    %c0_127 = arith.constant 0 : index
    %152 = vector.load %arg7[%c0_126, %c0_127] : memref<128x128xbf16, #tpu.memory_space<vmem>>, vector<128x128xbf16>
    %cst_128 = arith.constant dense<0.000000e+00> : vector<256x128xf32>
    %153 = tpu.matmul %151, %152, %cst_128 {dimension_numbers = #tpu.dot_dimension_numbers<[1], [0], [0], [1], [0, 0, 1, 1], [], []>} : vector<256x128xbf16>, vector<128x128xbf16>, vector<256x128xf32> -> vector<256x128xf32>
    %154 = arith.addf %114, %153 : vector<256x128xf32>
    %c0_129 = arith.constant 0 : index
    %c0_130 = arith.constant 0 : index
    %155 = vector.load %arg8[%c0_129, %c0_130] : memref<1x128xf32, #tpu.memory_space<vmem>>, vector<1x128xf32>
    %156 = vector.broadcast %155 : vector<1x128xf32> to vector<256x128xf32>
    %157 = arith.addf %154, %156 : vector<256x128xf32>
    %158 = arith.negf %157 : vector<256x128xf32>
    %159 = math.exp %158 : vector<256x128xf32>
    %cst_131 = arith.constant 1.000000e+00 : f32
    %160 = vector.broadcast %cst_131 : f32 to vector<256x128xf32>
    %161 = arith.addf %160, %159 : vector<256x128xf32>
    %162 = arith.divf %160, %161 : vector<256x128xf32>
    %163 = arith.mulf %157, %162 : vector<256x128xf32>
    %164 = vector.shape_cast %163 : vector<256x128xf32> to vector<16x16x128xf32>
    %165 = arith.truncf %164 : vector<16x16x128xf32> to vector<16x16x128xbf16>
    %c0_132 = arith.constant 0 : index
    %c0_133 = arith.constant 0 : index
    %c0_134 = arith.constant 0 : index
    %c0_135 = arith.constant 0 : index
    %166 = vector.load %arg9[%c0_132, %c0_133, %c0_134, %c0_135] : memref<1x16x16x128xbf16, #tpu.memory_space<vmem>>, vector<1x16x16x128xbf16>
    %167 = vector.shape_cast %166 : vector<1x16x16x128xbf16> to vector<16x16x128xbf16>
    %168 = vector.shape_cast %165 : vector<16x16x128xbf16> to vector<1x16x16x128xbf16>
    tpu.vector_store %arg9[%c0_132, %c0_133, %c0_134, %c0_135], %168 {strides = array<i32>} : memref<1x16x16x128xbf16, #tpu.memory_space<vmem>>, vector<1x16x16x128xbf16>,
    return
  }
  func.func @transform_0(%arg0: i32) -> (i32, i32, i32, i32) {
    %c0_i32 = arith.constant 0 : i32
    %c0_i32_0 = arith.constant 0 : i32
    %c0_i32_1 = arith.constant 0 : i32
    %c0_i32_2 = arith.constant 0 : i32
    return %arg0, %c0_i32, %c0_i32_0, %c0_i32_1 : i32, i32, i32, i32
  }
  func.func @transform_1(%arg0: i32) -> (i32, i32) {
    %c0_i32 = arith.constant 0 : i32
    %c0_i32_0 = arith.constant 0 : i32
    %c0_i32_1 = arith.constant 0 : i32
    return %c0_i32, %c0_i32_0 : i32, i32
  }
  func.func @transform_2(%arg0: i32) -> (i32, i32) {
    %c0_i32 = arith.constant 0 : i32
    %c0_i32_0 = arith.constant 0 : i32
    %c0_i32_1 = arith.constant 0 : i32
    return %c0_i32, %c0_i32_0 : i32, i32
  }
  func.func @transform_3(%arg0: i32) -> (i32, i32) {
    %c0_i32 = arith.constant 0 : i32
    %c0_i32_0 = arith.constant 0 : i32
    %c0_i32_1 = arith.constant 0 : i32
    return %c0_i32, %c0_i32_0 : i32, i32
  }
  func.func @transform_4(%arg0: i32) -> (i32, i32) {
    %c0_i32 = arith.constant 0 : i32
    %c0_i32_0 = arith.constant 0 : i32
    %c0_i32_1 = arith.constant 0 : i32
    return %c0_i32, %c0_i32_0 : i32, i32
  }
  func.func @transform_5(%arg0: i32) -> (i32, i32) {
    %c0_i32 = arith.constant 0 : i32
    %c0_i32_0 = arith.constant 0 : i32
    %c0_i32_1 = arith.constant 0 : i32
    return %c0_i32, %c0_i32_0 : i32, i32
  }
  func.func @transform_6(%arg0: i32) -> (i32, i32) {
    %c0_i32 = arith.constant 0 : i32
    %c0_i32_0 = arith.constant 0 : i32
    %c0_i32_1 = arith.constant 0 : i32
    return %c0_i32, %c0_i32_0 : i32, i32
  }
  func.func @transform_7(%arg0: i32) -> (i32, i32) {
    %c0_i32 = arith.constant 0 : i32
    %c0_i32_0 = arith.constant 0 : i32
    %c0_i32_1 = arith.constant 0 : i32
    return %c0_i32, %c0_i32_0 : i32, i32
  }
  func.func @transform_8(%arg0: i32) -> (i32, i32, i32, i32) {
    %c0_i32 = arith.constant 0 : i32
    %c0_i32_0 = arith.constant 0 : i32
    %c0_i32_1 = arith.constant 0 : i32
    %c0_i32_2 = arith.constant 0 : i32
    return %arg0, %c0_i32, %c0_i32_0, %c0_i32_1 : i32, i32, i32, i32
  }
}

</mosaic_0001>

<llo_original>
// kernel: tpu_custom_call.1
$region0: #{tpu_custom_call.1}
  #allocation0 [shape = 'u32[]', space=smem, size = 0x4, offset = 0x4, fixed_abs, tag = 'smem constant byte address 0x4 - core index']
  #allocation1 [shape = 'u32[144,128]{1,0:T(1,128)}', space=vmem, size = 0x12000, scoped, tag = 'internal scratch']
  #allocation2 [shape = 'f32[20,32,128]{2,1,0:T(8,128)}', space=vmem, size = 0x50000, scoped, tag = 'scratch operand']
  %s0 = inlined_call_operand.hbm [shape: bf16[2,16,16,128], index: 0, kind: input, shape index: {}]
  %s1 = inlined_call_operand.hbm [shape: bf16[128,128], index: 1, kind: input, shape index: {}]
  %s2 = inlined_call_operand.vmem [shape: f32[1,128], index: 2, kind: input, shape index: {}]
  %s3 = inlined_call_operand.hbm [shape: bf16[128,128], index: 3, kind: input, shape index: {}]
  %s4 = inlined_call_operand.hbm [shape: bf16[128,128], index: 4, kind: input, shape index: {}]
  %s5 = inlined_call_operand.hbm [shape: bf16[128,128], index: 5, kind: input, shape index: {}]
  %s6 = inlined_call_operand.hbm [shape: bf16[128,128], index: 6, kind: input, shape index: {}]
  %s7 = inlined_call_operand.vmem [shape: f32[1,128], index: 7, kind: input, shape index: {}]
  %s8 = inlined_call_operand.hbm [shape: bf16[2,16,16,128], index: 8, kind: output, shape index: {}]
  %s9 = sld [smem:[#allocation0]]
  $region89: #{tpu_custom_call.1} parent=0
    _
  %s11 = ssub.s32 1, %s9
  %s12 = scalar_select 0, %s11, %s9
  $region1: #{tpu_custom_call.1} parent=0
    #allocation3 [shape = 'u8[131072]{0}', space=vmem, size = 0x20000, scoped, tag = 'input window, operand 0']
    #allocation4 [shape = 's32[2]{0}', space=sflag, size = 0x8, scoped, tag = 'scoped memory for tpu_custom_call.1']
    #allocation5 [shape = 's32[2]{0}', space=sflag, size = 0x8, scoped, tag = 'scoped memory for tpu_custom_call.1']
    #allocation6 [shape = 'u8[32768]{0}', space=vmem, size = 0x8000, scoped, tag = 'input window, operand 1, single buffered']
    #allocation7 [shape = 's32[1]{0}', space=sflag, size = 0x4, scoped, tag = 'scoped memory for tpu_custom_call.1']
    #allocation8 [shape = 'u8[32768]{0}', space=vmem, size = 0x8000, scoped, tag = 'input window, operand 3, single buffered']
    #allocation9 [shape = 'u8[32768]{0}', space=vmem, size = 0x8000, scoped, tag = 'input window, operand 4, single buffered']
    #allocation10 [shape = 's32[1]{0}', space=sflag, size = 0x4, scoped, tag = 'scoped memory for tpu_custom_call.1']
    #allocation11 [shape = 'u8[32768]{0}', space=vmem, size = 0x8000, scoped, tag = 'input window, operand 5, single buffered']
    #allocation12 [shape = 'u8[32768]{0}', space=vmem, size = 0x8000, scoped, tag = 'input window, operand 6, single buffered']
    #allocation13 [shape = 's32[1]{0}', space=sflag, size = 0x4, scoped, tag = 'scoped memory for tpu_custom_call.1']
    #allocation14 [shape = 'u8[131072]{0}', space=vmem, size = 0x20000, scoped, tag = 'output window, operand 0']
    %13 = vsyncpa [#allocation4], 0
    %s14 = scalar_lea.sflag [#allocation4], 1
    %15 = vsyncpa %s14, 0
    %16 = vsyncpa [#allocation7], 0
    %17 = vsyncpa [#allocation10], 0
    %18 = vsyncpa [#allocation13], 0
    %19 = vsyncpa [#allocation5], 0
    %s20 = scalar_lea.sflag [#allocation5], 1
    %21 = vsyncpa %s20, 0
    loop: start=0, step=1, limit=4
    $region2: #{tpu_custom_call.1} parent=1 // loop_pre_header
      _
    $region3: #{tpu_custom_call.1} parent=1 // loop_header
      %s23 = sphi 0, %s27
      %p24 = scmp.ge.s32.totalorder %s23, 4
      %s33 = sphi 0, %s35
      %s36 = sphi 0, %s33
      %s37 = sphi 0, %s36
      %s53 = sphi 0, %s37
      %s57 = sphi 0, %s57
      %s59 = sphi 0, %s57
      %s60 = sphi 0, %s59
      %s74 = sphi 0, %s60
      %s78 = sphi 0, %s78
      %s80 = sphi 0, %s78
      %s81 = sphi 0, %s80
      %s95 = sphi 0, %s81
      %s99 = sphi 0, %s99
      %s101 = sphi 0, %s99
      %s102 = sphi 0, %s101
      %s116 = sphi 0, %s102
      %s120 = sphi 0, %s120
      %s122 = sphi 0, %s120
      %s123 = sphi 0, %s122
      %s137 = sphi 0, %s123
      %s141 = sphi 0, %s141
      %s143 = sphi 0, %s141
      %s144 = sphi 0, %s143
      %s158 = sphi 0, %s144
      %s162 = sphi 0, %s162
      %s164 = sphi 0, %s162
      %s165 = sphi 0, %s164
      %s179 = sphi 0, %s165
      %s183 = sphi 0, %s183
      %s185 = sphi 0, %s183
      %s186 = sphi 0, %s185
      %s200 = sphi 0, %s186
      %s206 = sphi 0, %s208
      %s209 = sphi 0, %s206
      %s210 = sphi 0, %s209
      %s226 = sphi 0, %s210
    $region4: #{tpu_custom_call.1} parent=1 // loop_header_branch
      %26 = sbr.rel (%p24) target = $region8
    $region5: #{tpu_custom_call.1} parent=1 // loop_body
      %s28 = ssub.s32 %s23, 1
      %s29 = ssub.s32 %s23, 2
      %s30 = sadd.s32 %s23, 1
      %s31 = ssub.s32 %s23, %s30
      %p32 = scmp.eq.s32.totalorder %s31, 0
      %s34 = sadd.s32 %s33, 1
      %s35 = scalar_select %p32, %s33, %s34
      %p38 = pneg %p32
      %p39 = scmp.eq.s32.totalorder %s23, 1
      %p40 = por %p38, %p39
      %p41 = scmp.ne.s32.totalorder %s33, %s36
      %p42 = scmp.eq.s32.totalorder %s23, 0
      %p43 = por %p41, %p42
      %p44 = scmp.ne.s32.totalorder %s33, %s36
      %p45 = scmp.eq.s32.totalorder %s28, 1
      %p46 = por %p44, %p45
      %p47 = scmp.ne.s32.totalorder %s36, %s37
      %p48 = scmp.eq.s32.totalorder %s28, 0
      %p49 = por %p47, %p48
      %p50 = scmp.ne.s32.totalorder %s36, %s37
      %p51 = scmp.eq.s32.totalorder %s29, 1
      %p52 = por %p50, %p51
      %p54 = scmp.ne.s32.totalorder %s37, %s53
      %p55 = scmp.eq.s32.totalorder %s29, 0
      %p56 = por %p54, %p55
      %s58 = sadd.s32 %s57, 1
      %p61 = scmp.eq.s32.totalorder %s23, 1
      %p62 = scmp.ne.s32.totalorder %s57, %s59
      %p63 = scmp.eq.s32.totalorder %s23, 0
      %p64 = por %p62, %p63
      %p65 = scmp.ne.s32.totalorder %s57, %s59
      %p66 = scmp.eq.s32.totalorder %s28, 1
      %p67 = por %p65, %p66
      %p68 = scmp.ne.s32.totalorder %s59, %s60
      %p69 = scmp.eq.s32.totalorder %s28, 0
      %p70 = por %p68, %p69
      %p71 = scmp.ne.s32.totalorder %s59, %s60
      %p72 = scmp.eq.s32.totalorder %s29, 1
      %p73 = por %p71, %p72
      %p75 = scmp.ne.s32.totalorder %s60, %s74
      %p76 = scmp.eq.s32.totalorder %s29, 0
      %p77 = por %p75, %p76
      %s79 = sadd.s32 %s78, 1
      %p82 = scmp.eq.s32.totalorder %s23, 1
      %p83 = scmp.ne.s32.totalorder %s78, %s80
      %p84 = scmp.eq.s32.totalorder %s23, 0
      %p85 = por %p83, %p84
      %p86 = scmp.ne.s32.totalorder %s78, %s80
      %p87 = scmp.eq.s32.totalorder %s28, 1
      %p88 = por %p86, %p87
      %p89 = scmp.ne.s32.totalorder %s80, %s81
      %p90 = scmp.eq.s32.totalorder %s28, 0
      %p91 = por %p89, %p90
      %p92 = scmp.ne.s32.totalorder %s80, %s81
      %p93 = scmp.eq.s32.totalorder %s29, 1
      %p94 = por %p92, %p93
      %p96 = scmp.ne.s32.totalorder %s81, %s95
      %p97 = scmp.eq.s32.totalorder %s29, 0
      %p98 = por %p96, %p97
      %s100 = sadd.s32 %s99, 1
      %p103 = scmp.eq.s32.totalorder %s23, 1
      %p104 = scmp.ne.s32.totalorder %s99, %s101
      %p105 = scmp.eq.s32.totalorder %s23, 0
      %p106 = por %p104, %p105
      %p107 = scmp.ne.s32.totalorder %s99, %s101
      %p108 = scmp.eq.s32.totalorder %s28, 1
      %p109 = por %p107, %p108
      %p110 = scmp.ne.s32.totalorder %s101, %s102
      %p111 = scmp.eq.s32.totalorder %s28, 0
      %p112 = por %p110, %p111
      %p113 = scmp.ne.s32.totalorder %s101, %s102
      %p114 = scmp.eq.s32.totalorder %s29, 1
      %p115 = por %p113, %p114
      %p117 = scmp.ne.s32.totalorder %s102, %s116
      %p118 = scmp.eq.s32.totalorder %s29, 0
      %p119 = por %p117, %p118
      %s121 = sadd.s32 %s120, 1
      %p124 = scmp.eq.s32.totalorder %s23, 1
      %p125 = scmp.ne.s32.totalorder %s120, %s122
      %p126 = scmp.eq.s32.totalorder %s23, 0
      %p127 = por %p125, %p126
      %p128 = scmp.ne.s32.totalorder %s120, %s122
      %p129 = scmp.eq.s32.totalorder %s28, 1
      %p130 = por %p128, %p129
      %p131 = scmp.ne.s32.totalorder %s122, %s123
      %p132 = scmp.eq.s32.totalorder %s28, 0
      %p133 = por %p131, %p132
      %p134 = scmp.ne.s32.totalorder %s122, %s123
      %p135 = scmp.eq.s32.totalorder %s29, 1
      %p136 = por %p134, %p135
      %p138 = scmp.ne.s32.totalorder %s123, %s137
      %p139 = scmp.eq.s32.totalorder %s29, 0
      %p140 = por %p138, %p139
      %s142 = sadd.s32 %s141, 1
      %p145 = scmp.eq.s32.totalorder %s23, 1
      %p146 = scmp.ne.s32.totalorder %s141, %s143
      %p147 = scmp.eq.s32.totalorder %s23, 0
      %p148 = por %p146, %p147
      %p149 = scmp.ne.s32.totalorder %s141, %s143
      %p150 = scmp.eq.s32.totalorder %s28, 1
      %p151 = por %p149, %p150
      %p152 = scmp.ne.s32.totalorder %s143, %s144
      %p153 = scmp.eq.s32.totalorder %s28, 0
      %p154 = por %p152, %p153
      %p155 = scmp.ne.s32.totalorder %s143, %s144
      %p156 = scmp.eq.s32.totalorder %s29, 1
      %p157 = por %p155, %p156
      %p159 = scmp.ne.s32.totalorder %s144, %s158
      %p160 = scmp.eq.s32.totalorder %s29, 0
      %p161 = por %p159, %p160
      %s163 = sadd.s32 %s162, 1
      %p166 = scmp.eq.s32.totalorder %s23, 1
      %p167 = scmp.ne.s32.totalorder %s162, %s164
      %p168 = scmp.eq.s32.totalorder %s23, 0
      %p169 = por %p167, %p168
      %p170 = scmp.ne.s32.totalorder %s162, %s164
      %p171 = scmp.eq.s32.totalorder %s28, 1
      %p172 = por %p170, %p171
      %p173 = scmp.ne.s32.totalorder %s164, %s165
      %p174 = scmp.eq.s32.totalorder %s28, 0
      %p175 = por %p173, %p174
      %p176 = scmp.ne.s32.totalorder %s164, %s165
      %p177 = scmp.eq.s32.totalorder %s29, 1
      %p178 = por %p176, %p177
      %p180 = scmp.ne.s32.totalorder %s165, %s179
      %p181 = scmp.eq.s32.totalorder %s29, 0
      %p182 = por %p180, %p181
      %s184 = sadd.s32 %s183, 1
      %p187 = scmp.eq.s32.totalorder %s23, 1
      %p188 = scmp.ne.s32.totalorder %s183, %s185
      %p189 = scmp.eq.s32.totalorder %s23, 0
      %p190 = por %p188, %p189
      %p191 = scmp.ne.s32.totalorder %s183, %s185
      %p192 = scmp.eq.s32.totalorder %s28, 1
      %p193 = por %p191, %p192
      %p194 = scmp.ne.s32.totalorder %s185, %s186
      %p195 = scmp.eq.s32.totalorder %s28, 0
      %p196 = por %p194, %p195
      %p197 = scmp.ne.s32.totalorder %s185, %s186
      %p198 = scmp.eq.s32.totalorder %s29, 1
      %p199 = por %p197, %p198
      %p201 = scmp.ne.s32.totalorder %s186, %s200
      %p202 = scmp.eq.s32.totalorder %s29, 0
      %p203 = por %p201, %p202
      %s204 = ssub.s32 %s23, %s30
      %p205 = scmp.eq.s32.totalorder %s204, 0
      %s207 = sadd.s32 %s206, 1
      %s208 = scalar_select %p205, %s206, %s207
      %p211 = pneg %p205
      %p212 = scmp.eq.s32.totalorder %s23, 1
      %p213 = por %p211, %p212
      %p214 = scmp.ne.s32.totalorder %s206, %s209
      %p215 = scmp.eq.s32.totalorder %s23, 0
      %p216 = por %p214, %p215
      %p217 = scmp.ne.s32.totalorder %s206, %s209
      %p218 = scmp.eq.s32.totalorder %s28, 1
      %p219 = por %p217, %p218
      %p220 = scmp.ne.s32.totalorder %s209, %s210
      %p221 = scmp.eq.s32.totalorder %s28, 0
      %p222 = por %p220, %p221
      %p223 = scmp.ne.s32.totalorder %s209, %s210
      %p224 = scmp.eq.s32.totalorder %s29, 1
      %p225 = por %p223, %p224
      %p227 = scmp.ne.s32.totalorder %s210, %s226
      %p228 = scmp.eq.s32.totalorder %s29, 0
      %p229 = por %p227, %p228
      %p230 = scmp.le.s32.totalorder 1, %s23
      %p231 = scmp.lt.s32.totalorder %s23, 3
      %p232 = pnand %p230, %p231
      %p233 = pneg %p232
      // Predicated region
      $region9: #{tpu_custom_call.1} parent=5 // pred_check
        _
      $region10: #{tpu_custom_call.1} parent=5 // pred_check_branch
        %235 = sbr.rel (%p232) target = $region12
      $region11: #{tpu_custom_call.1} parent=5 // pred_region
        %s236 = ssub.s32 %s23, 1
        // Predicated region
        $region13: #{tpu_custom_call.1} parent=11 // pred_check
          %p237 = pneg %p70
        $region14: #{tpu_custom_call.1} parent=11 // pred_check_branch
          %239 = sbr.rel (%p237) target = $region16
        $region15: #{tpu_custom_call.1} parent=11 // pred_region
          %s241 = ssub.s32 1024, 1024
          %242 = vsyncadd [#allocation7], %s241
          %s243 = sshll.u32 [#allocation6], 4
          %s244 = int_to_ptr.vmem [resolvable:$true] %s243
          %249 = dma.hbm_to_vmem [thread:$0]  %s1, 1024, %s244, [#allocation7], 64, 64, 4
        $region16: #{tpu_custom_call.1} parent=11 // pred_fallthru
          _
        // Predicated region
        $region17: #{tpu_custom_call.1} parent=11 // pred_check
          %p250 = pneg %p91
        $region18: #{tpu_custom_call.1} parent=11 // pred_check_branch
          %252 = sbr.rel (%p250) target = $region20
        $region19: #{tpu_custom_call.1} parent=11 // pred_region
          _
        $region20: #{tpu_custom_call.1} parent=11 // pred_fallthru
          _
        // Predicated region
        $region21: #{tpu_custom_call.1} parent=11 // pred_check
          %p253 = pneg %p112
        $region22: #{tpu_custom_call.1} parent=11 // pred_check_branch
          %255 = sbr.rel (%p253) target = $region24
        $region23: #{tpu_custom_call.1} parent=11 // pred_region
          %s257 = ssub.s32 1024, 1024
          %258 = vsyncadd [#allocation7], %s257
          %s259 = sshll.u32 [#allocation8], 4
          %s260 = int_to_ptr.vmem [resolvable:$true] %s259
          %265 = dma.hbm_to_vmem [thread:$0]  %s3, 1024, %s260, [#allocation7], 64, 64, 4
        $region24: #{tpu_custom_call.1} parent=11 // pred_fallthru
          _
        // Predicated region
        $region25: #{tpu_custom_call.1} parent=11 // pred_check
          %p266 = pneg %p133
        $region26: #{tpu_custom_call.1} parent=11 // pred_check_branch
          %268 = sbr.rel (%p266) target = $region28
        $region27: #{tpu_custom_call.1} parent=11 // pred_region
          %s270 = ssub.s32 1024, 1024
          %271 = vsyncadd [#allocation10], %s270
          %s272 = sshll.u32 [#allocation9], 4
          %s273 = int_to_ptr.vmem [resolvable:$true] %s272
          %278 = dma.hbm_to_vmem [thread:$0]  %s4, 1024, %s273, [#allocation10], 64, 64, 4
        $region28: #{tpu_custom_call.1} parent=11 // pred_fallthru
          _
        // Predicated region
        $region29: #{tpu_custom_call.1} parent=11 // pred_check
          %p279 = pneg %p154
        $region30: #{tpu_custom_call.1} parent=11 // pred_check_branch
          %281 = sbr.rel (%p279) target = $region32
        $region31: #{tpu_custom_call.1} parent=11 // pred_region
          %s283 = ssub.s32 1024, 1024
          %284 = vsyncadd [#allocation10], %s283
          %s285 = sshll.u32 [#allocation11], 4
          %s286 = int_to_ptr.vmem [resolvable:$true] %s285
          %291 = dma.hbm_to_vmem [thread:$0]  %s5, 1024, %s286, [#allocation10], 64, 64, 4
        $region32: #{tpu_custom_call.1} parent=11 // pred_fallthru
          _
        // Predicated region
        $region33: #{tpu_custom_call.1} parent=11 // pred_check
          %p292 = pneg %p175
        $region34: #{tpu_custom_call.1} parent=11 // pred_check_branch
          %294 = sbr.rel (%p292) target = $region36
        $region35: #{tpu_custom_call.1} parent=11 // pred_region
          %s296 = ssub.s32 1024, 1024
          %297 = vsyncadd [#allocation13], %s296
          %s298 = sshll.u32 [#allocation12], 4
          %s299 = int_to_ptr.vmem [resolvable:$true] %s298
          %304 = dma.hbm_to_vmem [thread:$0]  %s6, 1024, %s299, [#allocation13], 64, 64, 4
        $region36: #{tpu_custom_call.1} parent=11 // pred_fallthru
          _
        // Predicated region
        $region37: #{tpu_custom_call.1} parent=11 // pred_check
          %p305 = pneg %p196
        $region38: #{tpu_custom_call.1} parent=11 // pred_check_branch
          %307 = sbr.rel (%p305) target = $region40
        $region39: #{tpu_custom_call.1} parent=11 // pred_region
          _
        $region40: #{tpu_custom_call.1} parent=11 // pred_fallthru
          _
      $region12: #{tpu_custom_call.1} parent=5 // pred_fallthru
        _
      %p308 = scmp.lt.s32.totalorder %s23, 2
      // Predicated region
      $region41: #{tpu_custom_call.1} parent=5 // pred_check
        %p309 = pneg %p308
      $region42: #{tpu_custom_call.1} parent=5 // pred_check_branch
        %311 = sbr.rel (%p309) target = $region44
      $region43: #{tpu_custom_call.1} parent=5 // pred_region
        // Predicated region
        $region45: #{tpu_custom_call.1} parent=43 // pred_check
          %p312 = pneg %p43
        $region46: #{tpu_custom_call.1} parent=43 // pred_check_branch
          %314 = sbr.rel (%p312) target = $region48
        $region47: #{tpu_custom_call.1} parent=43 // pred_region
          %s315 = sand.u32 %s33, 1
          %s316 = scalar_lea.sflag [#allocation4], %s315
          %s317 = sand.u32 %s33, 1
          %s318 = smul.addr %s317, 128
          %s319 = scalar_lea.vmem [#allocation3], %s318
          %s321 = ssub.s32 2048, 2048
          %322 = vsyncadd %s316, %s321
          %s323 = smul.addr %s23, 32
          %s324 = smul.addr %s323, 64
          %s325 = scalar_lea.hbm %s0, %s324
          %s326 = sshll.u32 %s319, 4
          %s327 = int_to_ptr.vmem [resolvable:$true] %s326
          %332 = dma.hbm_to_vmem [thread:$0]  %s325, 2048, %s327, %s316, 64, 64, 4
        $region48: #{tpu_custom_call.1} parent=43 // pred_fallthru
          _
      $region44: #{tpu_custom_call.1} parent=5 // pred_fallthru
        _
      %p333 = scmp.le.s32.totalorder 1, %s23
      %p334 = scmp.lt.s32.totalorder %s23, 3
      %p335 = pnand %p333, %p334
      %p336 = pneg %p335
      // Predicated region
      $region49: #{tpu_custom_call.1} parent=5 // pred_check
        _
      $region50: #{tpu_custom_call.1} parent=5 // pred_check_branch
        %338 = sbr.rel (%p335) target = $region52
      $region51: #{tpu_custom_call.1} parent=5 // pred_region
        %s339 = ssub.s32 %s23, 1
        %s340 = sand.u32 %s36, 1
        %s341 = scalar_lea.sflag [#allocation4], %s340
        %s342 = sand.u32 %s36, 1
        %s343 = smul.addr %s342, 128
        %s344 = scalar_lea.vmem [#allocation3], %s343
        // Predicated region
        $region53: #{tpu_custom_call.1} parent=51 // pred_check
          %p345 = pneg %p49
        $region54: #{tpu_custom_call.1} parent=51 // pred_check_branch
          %347 = sbr.rel (%p345) target = $region56
        $region55: #{tpu_custom_call.1} parent=51 // pred_region
          %348 = dma.done %s341, 2048
        $region56: #{tpu_custom_call.1} parent=51 // pred_fallthru
          _
        // Predicated region
        $region57: #{tpu_custom_call.1} parent=51 // pred_check
          %p349 = pneg %p70
        $region58: #{tpu_custom_call.1} parent=51 // pred_check_branch
          %351 = sbr.rel (%p349) target = $region60
        $region59: #{tpu_custom_call.1} parent=51 // pred_region
          %352 = dma.done [#allocation7], 1024
        $region60: #{tpu_custom_call.1} parent=51 // pred_fallthru
          _
        // Predicated region
        $region61: #{tpu_custom_call.1} parent=51 // pred_check
          %p353 = pneg %p112
        $region62: #{tpu_custom_call.1} parent=51 // pred_check_branch
          %355 = sbr.rel (%p353) target = $region64
        $region63: #{tpu_custom_call.1} parent=51 // pred_region
          %356 = dma.done [#allocation7], 1024
        $region64: #{tpu_custom_call.1} parent=51 // pred_fallthru
          _
        // Predicated region
        $region65: #{tpu_custom_call.1} parent=51 // pred_check
          %p357 = pneg %p133
        $region66: #{tpu_custom_call.1} parent=51 // pred_check_branch
          %359 = sbr.rel (%p357) target = $region68
        $region67: #{tpu_custom_call.1} parent=51 // pred_region
          %360 = dma.done [#allocation10], 1024
        $region68: #{tpu_custom_call.1} parent=51 // pred_fallthru
          _
        // Predicated region
        $region69: #{tpu_custom_call.1} parent=51 // pred_check
          %p361 = pneg %p154
        $region70: #{tpu_custom_call.1} parent=51 // pred_check_branch
          %363 = sbr.rel (%p361) target = $region72
        $region71: #{tpu_custom_call.1} parent=51 // pred_region
          %364 = dma.done [#allocation10], 1024
        $region72: #{tpu_custom_call.1} parent=51 // pred_fallthru
          _
        // Predicated region
        $region73: #{tpu_custom_call.1} parent=51 // pred_check
          %p365 = pneg %p175
        $region74: #{tpu_custom_call.1} parent=51 // pred_check_branch
          %367 = sbr.rel (%p365) target = $region76
        $region75: #{tpu_custom_call.1} parent=51 // pred_region
          %368 = dma.done [#allocation13], 1024
        $region76: #{tpu_custom_call.1} parent=51 // pred_fallthru
          _
        %s369 = sand.u32 %s36, 1
        %s370 = scalar_lea.sflag [#allocation4], %s369
        %s371 = sand.u32 %s36, 1
        %s372 = smul.addr %s371, 128
        %s373 = scalar_lea.vmem [#allocation3], %s372
        %p374 = pneg %p49
        %p375 = pneg %p46
        %p376 = pneg %p70
        %p377 = pneg %p67
        %p378 = pneg %p91
        %p379 = pneg %p88
        %p380 = pneg %p112
        %p381 = pneg %p109
        %p382 = pneg %p133
        %p383 = pneg %p130
        %p384 = pneg %p154
        %p385 = pneg %p151
        %p386 = pneg %p175
        %p387 = pneg %p172
        %p388 = pneg %p196
        %p389 = pneg %p193
        %p390 = pneg %p222
        %p391 = pneg %p219
        %s392 = sand.u32 %s209, 1
        %s393 = scalar_lea.sflag [#allocation5], %s392
        %s394 = sand.u32 %s209, 1
        %s395 = smul.addr %s394, 128
        %s396 = scalar_lea.vmem [#allocation14], %s395
        %v398 = vld [vmem:[%s344] sm:$0xf]
        %v399 = vld [vmem:[%s344 + $0x4] sm:$0xf]
        %v400 = vld [vmem:[%s344 + $0x8] sm:$0xf]
        %v401 = vld [vmem:[%s344 + $0xc] sm:$0xf]
        %v402 = vld [vmem:[%s344 + $0x10] sm:$0xf]
        %v403 = vld [vmem:[%s344 + $0x14] sm:$0xf]
        %v404 = vld [vmem:[%s344 + $0x18] sm:$0xf]
        %v405 = vld [vmem:[%s344 + $0x1c] sm:$0xf]
        %v406 = vld [vmem:[%s344 + $0x20] sm:$0xf]
        %v407 = vld [vmem:[%s344 + $0x24] sm:$0xf]
        %v408 = vld [vmem:[%s344 + $0x28] sm:$0xf]
        %v409 = vld [vmem:[%s344 + $0x2c] sm:$0xf]
        %v410 = vld [vmem:[%s344 + $0x30] sm:$0xf]
        %v411 = vld [vmem:[%s344 + $0x34] sm:$0xf]
        %v412 = vld [vmem:[%s344 + $0x38] sm:$0xf]
        %v413 = vld [vmem:[%s344 + $0x3c] sm:$0xf]
        %v414 = vld [vmem:[%s344 + $0x40] sm:$0xf]
        %v415 = vld [vmem:[%s344 + $0x44] sm:$0xf]
        %v416 = vld [vmem:[%s344 + $0x48] sm:$0xf]
        %v417 = vld [vmem:[%s344 + $0x4c] sm:$0xf]
        %v418 = vld [vmem:[%s344 + $0x50] sm:$0xf]
        %v419 = vld [vmem:[%s344 + $0x54] sm:$0xf]
        %v420 = vld [vmem:[%s344 + $0x58] sm:$0xf]
        %v421 = vld [vmem:[%s344 + $0x5c] sm:$0xf]
        %v422 = vld [vmem:[%s344 + $0x60] sm:$0xf]
        %v423 = vld [vmem:[%s344 + $0x64] sm:$0xf]
        %v424 = vld [vmem:[%s344 + $0x68] sm:$0xf]
        %v425 = vld [vmem:[%s344 + $0x6c] sm:$0xf]
        %v426 = vld [vmem:[%s344 + $0x70] sm:$0xf]
        %v427 = vld [vmem:[%s344 + $0x74] sm:$0xf]
        %v428 = vld [vmem:[%s344 + $0x78] sm:$0xf]
        %v429 = vld [vmem:[%s344 + $0x7c] sm:$0xf]
        %v430 = vld [vmem:[#allocation6] sm:$0xf]
        %v431 = vld [vmem:[#allocation6 + $0x4] sm:$0xf]
        %v432 = vld [vmem:[#allocation6 + $0x8] sm:$0xf]
        %v433 = vld [vmem:[#allocation6 + $0xc] sm:$0xf]
        %v434 = vld [vmem:[#allocation6 + $0x10] sm:$0xf]
        %v435 = vld [vmem:[#allocation6 + $0x14] sm:$0xf]
        %v436 = vld [vmem:[#allocation6 + $0x18] sm:$0xf]
        %v437 = vld [vmem:[#allocation6 + $0x1c] sm:$0xf]
        %v438 = vld [vmem:[#allocation6 + $0x20] sm:$0xf]
        %v439 = vld [vmem:[#allocation6 + $0x24] sm:$0xf]
        %v440 = vld [vmem:[#allocation6 + $0x28] sm:$0xf]
        %v441 = vld [vmem:[#allocation6 + $0x2c] sm:$0xf]
        %v442 = vld [vmem:[#allocation6 + $0x30] sm:$0xf]
        %v443 = vld [vmem:[#allocation6 + $0x34] sm:$0xf]
        %v444 = vld [vmem:[#allocation6 + $0x38] sm:$0xf]
        %v445 = vld [vmem:[#allocation6 + $0x3c] sm:$0xf]
        %v446 = vld [vmem:[%s2] sm:$0x1]
        %v448 = vlaneseq
        %v449 = vshrl.u32 %v448, 7
        %v450 = vsub.s32 0, %v449
        %v451 = vrot.slane %v446, %v450
        %v485 = vunpack.c.l.b16 %v398
        %v486 = vunpack.c.l.b16 %v399
        %v487 = vunpack.c.l.b16 %v400
        %v488 = vunpack.c.l.b16 %v401
        %v489 = vunpack.c.l.b16 %v402
        %v490 = vunpack.c.l.b16 %v403
        %v491 = vunpack.c.l.b16 %v404
        %v492 = vunpack.c.l.b16 %v405
        %v493 = vunpack.c.l.b16 %v406
        %v494 = vunpack.c.l.b16 %v407
        %v495 = vunpack.c.l.b16 %v408
        %v496 = vunpack.c.l.b16 %v409
        %v497 = vunpack.c.l.b16 %v410
        %v498 = vunpack.c.l.b16 %v411
        %v499 = vunpack.c.l.b16 %v412
        %v500 = vunpack.c.l.b16 %v413
        %v501 = vunpack.c.l.b16 %v414
        %v502 = vunpack.c.l.b16 %v415
        %v503 = vunpack.c.l.b16 %v416
        %v504 = vunpack.c.l.b16 %v417
        %v505 = vunpack.c.l.b16 %v418
        %v506 = vunpack.c.l.b16 %v419
        %v507 = vunpack.c.l.b16 %v420
        %v508 = vunpack.c.l.b16 %v421
        %v509 = vunpack.c.l.b16 %v422
        %v510 = vunpack.c.l.b16 %v423
        %v511 = vunpack.c.l.b16 %v424
        %v512 = vunpack.c.l.b16 %v425
        %v513 = vunpack.c.l.b16 %v426
        %v514 = vunpack.c.l.b16 %v427
        %v515 = vunpack.c.l.b16 %v428
        %v516 = vunpack.c.l.b16 %v429
        %v517 = vpack.c.b16 %v486, %v485
        %v518 = vpack.c.b16 %v488, %v487
        %v519 = vpack.c.b16 %v490, %v489
        %v520 = vpack.c.b16 %v492, %v491
        %v521 = vpack.c.b16 %v494, %v493
        %v522 = vpack.c.b16 %v496, %v495
        %v523 = vpack.c.b16 %v498, %v497
        %v524 = vpack.c.b16 %v500, %v499
        %v525 = vpack.c.b16 %v502, %v501
        %v526 = vpack.c.b16 %v504, %v503
        %v527 = vpack.c.b16 %v506, %v505
        %v528 = vpack.c.b16 %v508, %v507
        %v529 = vpack.c.b16 %v510, %v509
        %v530 = vpack.c.b16 %v512, %v511
        %v531 = vpack.c.b16 %v514, %v513
        %v532 = vpack.c.b16 %v516, %v515
        %v565 = vunpack.c.l.b16 %v430
        %v566 = vunpack.c.l.b16 %v431
        %v567 = vunpack.c.l.b16 %v432
        %v568 = vunpack.c.l.b16 %v433
        %v569 = vunpack.c.l.b16 %v434
        %v570 = vunpack.c.l.b16 %v435
        %v571 = vunpack.c.l.b16 %v436
        %v572 = vunpack.c.l.b16 %v437
        %v573 = vunpack.c.l.b16 %v438
        %v574 = vunpack.c.l.b16 %v439
        %v575 = vunpack.c.l.b16 %v440
        %v576 = vunpack.c.l.b16 %v441
        %v577 = vunpack.c.l.b16 %v442
        %v578 = vunpack.c.l.b16 %v443
        %v579 = vunpack.c.l.b16 %v444
        %v580 = vunpack.c.l.b16 %v445
        %v581 = vpack.c.b16 %v566, %v565
        %v582 = vpack.c.b16 %v568, %v567
        %v583 = vpack.c.b16 %v570, %v569
        %v584 = vpack.c.b16 %v572, %v571
        %v585 = vpack.c.b16 %v574, %v573
        %v586 = vpack.c.b16 %v576, %v575
        %v587 = vpack.c.b16 %v578, %v577
        %v588 = vpack.c.b16 %v580, %v579
        %597 = vmatprep.subr.bf16.mxu0 0
        %598 = vmatpush1.bf16.msra.mxu0 %v588
        %599 = vmatprep.subr.bf16.mxu0 0
        %600 = vmatpush1.bf16.msra.mxu0 %v587
        %601 = vmatprep.subr.bf16.mxu0 0
        %602 = vmatpush1.bf16.msra.mxu0 %v586
        %603 = vmatprep.subr.bf16.mxu0 0
        %604 = vmatpush1.bf16.msra.mxu0 %v585
        %605 = vmatprep.subr.bf16.mxu0 0
        %606 = vmatpush1.bf16.msra.mxu0 %v584
        %607 = vmatprep.subr.bf16.mxu0 0
        %608 = vmatpush1.bf16.msra.mxu0 %v583
        %609 = vmatprep.subr.bf16.mxu0 0
        %610 = vmatpush1.bf16.msra.mxu0 %v582
        %611 = vmatprep.subr.bf16.mxu0 0
        %612 = vmatpush1.bf16.msra.mxu0 %v581
        %613 = vmatprep.subr.bf16.mxu0 0
        %614 = vmatpush2.bf16.msra.mxu0 0
        %615 = vmatprep.subr.bf16.mxu0 0
        %616 = vmatpush2.bf16.msra.mxu0 0
        %617 = vmatprep.subr.bf16.mxu0 0
        %618 = vmatpush2.bf16.msra.mxu0 0
        %619 = vmatprep.subr.bf16.mxu0 0
        %620 = vmatpush2.bf16.msra.mxu0 0
        %621 = vmatprep.subr.bf16.mxu0 0
        %622 = vmatpush2.bf16.msra.mxu0 0
        %623 = vmatprep.subr.bf16.mxu0 0
        %624 = vmatpush2.bf16.msra.mxu0 0
        %625 = vmatprep.subr.bf16.mxu0 0
        %626 = vmatpush2.bf16.msra.mxu0 0
        %627 = vmatprep.subr.bf16.mxu0 0
        %628 = vmatpush2.bf16.msra.mxu0 0
        %629 = vmatprep.mubr.bf16.mxu0 0
        %630 = vmatmul.mubr.bf16.gmra.mxu0 %v517
        %v631 = vpop.f32.mrf.mxu0
        %v632 = vadd.f32 %v451, %v631
        %v633 = vpop.f32.mrf.mxu0
        %v634 = vpop.f32.mrf.mxu0
        %v635 = vadd.f32 %v451, %v634
        %v636 = vpop.f32.mrf.mxu0
        %637 = vmatprep.mubr.bf16.mxu0 0
        %638 = vmatmul.mubr.bf16.gmra.mxu0 %v518
        %v639 = vpop.f32.mrf.mxu0
        %v640 = vadd.f32 %v451, %v639
        %v641 = vpop.f32.mrf.mxu0
        %v642 = vpop.f32.mrf.mxu0
        %v643 = vadd.f32 %v451, %v642
        %v644 = vpop.f32.mrf.mxu0
        %645 = vmatprep.mubr.bf16.mxu0 0
        %646 = vmatmul.mubr.bf16.gmra.mxu0 %v519
        %v647 = vpop.f32.mrf.mxu0
        %v648 = vadd.f32 %v451, %v647
        %v649 = vpop.f32.mrf.mxu0
        %v650 = vpop.f32.mrf.mxu0
        %v651 = vadd.f32 %v451, %v650
        %v652 = vpop.f32.mrf.mxu0
        %653 = vmatprep.mubr.bf16.mxu0 0
        %654 = vmatmul.mubr.bf16.gmra.mxu0 %v520
        %v655 = vpop.f32.mrf.mxu0
        %v656 = vadd.f32 %v451, %v655
        %v657 = vpop.f32.mrf.mxu0
        %v658 = vpop.f32.mrf.mxu0
        %v659 = vadd.f32 %v451, %v658
        %v660 = vpop.f32.mrf.mxu0
        %661 = vmatprep.mubr.bf16.mxu0 0
        %662 = vmatmul.mubr.bf16.gmra.mxu0 %v521
        %v663 = vpop.f32.mrf.mxu0
        %v664 = vadd.f32 %v451, %v663
        %v665 = vpop.f32.mrf.mxu0
        %v666 = vpop.f32.mrf.mxu0
        %v667 = vadd.f32 %v451, %v666
        %v668 = vpop.f32.mrf.mxu0
        %669 = vmatprep.mubr.bf16.mxu0 0
        %670 = vmatmul.mubr.bf16.gmra.mxu0 %v522
        %v671 = vpop.f32.mrf.mxu0
        %v672 = vadd.f32 %v451, %v671
        %v673 = vpop.f32.mrf.mxu0
        %v674 = vpop.f32.mrf.mxu0
        %v675 = vadd.f32 %v451, %v674
        %v676 = vpop.f32.mrf.mxu0
        %677 = vmatprep.mubr.bf16.mxu0 0
        %678 = vmatmul.mubr.bf16.gmra.mxu0 %v523
        %v679 = vpop.f32.mrf.mxu0
        %v680 = vadd.f32 %v451, %v679
        %v681 = vpop.f32.mrf.mxu0
        %v682 = vpop.f32.mrf.mxu0
        %v683 = vadd.f32 %v451, %v682
        %v684 = vpop.f32.mrf.mxu0
        %685 = vmatprep.mubr.bf16.mxu0 0
        %686 = vmatmul.mubr.bf16.gmra.mxu0 %v524
        %v687 = vpop.f32.mrf.mxu0
        %v688 = vadd.f32 %v451, %v687
        %v689 = vpop.f32.mrf.mxu0
        %v690 = vpop.f32.mrf.mxu0
        %v691 = vadd.f32 %v451, %v690
        %v692 = vpop.f32.mrf.mxu0
        %693 = vmatprep.mubr.bf16.mxu0 0
        %694 = vmatmul.mubr.bf16.gmra.mxu0 %v525
        %v695 = vpop.f32.mrf.mxu0
        %v696 = vadd.f32 %v451, %v695
        %v697 = vpop.f32.mrf.mxu0
        %v698 = vpop.f32.mrf.mxu0
        %v699 = vadd.f32 %v451, %v698
        %v700 = vpop.f32.mrf.mxu0
        %701 = vmatprep.mubr.bf16.mxu0 0
        %702 = vmatmul.mubr.bf16.gmra.mxu0 %v526
        %v703 = vpop.f32.mrf.mxu0
        %v704 = vadd.f32 %v451, %v703
        %v705 = vpop.f32.mrf.mxu0
        %v706 = vpop.f32.mrf.mxu0
        %v707 = vadd.f32 %v451, %v706
        %v708 = vpop.f32.mrf.mxu0
        %709 = vmatprep.mubr.bf16.mxu0 0
        %710 = vmatmul.mubr.bf16.gmra.mxu0 %v527
        %v711 = vpop.f32.mrf.mxu0
        %v712 = vadd.f32 %v451, %v711
        %v713 = vpop.f32.mrf.mxu0
        %v714 = vpop.f32.mrf.mxu0
        %v715 = vadd.f32 %v451, %v714
        %v716 = vpop.f32.mrf.mxu0
        %717 = vmatprep.mubr.bf16.mxu0 0
        %718 = vmatmul.mubr.bf16.gmra.mxu0 %v528
        %v719 = vpop.f32.mrf.mxu0
        %v720 = vadd.f32 %v451, %v719
        %v721 = vpop.f32.mrf.mxu0
        %v722 = vpop.f32.mrf.mxu0
        %v723 = vadd.f32 %v451, %v722
        %v724 = vpop.f32.mrf.mxu0
        %725 = vmatprep.mubr.bf16.mxu0 0
        %726 = vmatmul.mubr.bf16.gmra.mxu0 %v529
        %v727 = vpop.f32.mrf.mxu0
        %v728 = vadd.f32 %v451, %v727
        %v729 = vpop.f32.mrf.mxu0
        %v730 = vpop.f32.mrf.mxu0
        %v731 = vadd.f32 %v451, %v730
        %v732 = vpop.f32.mrf.mxu0
        %733 = vmatprep.mubr.bf16.mxu0 0
        %734 = vmatmul.mubr.bf16.gmra.mxu0 %v530
        %v735 = vpop.f32.mrf.mxu0
        %v736 = vadd.f32 %v451, %v735
        %v737 = vpop.f32.mrf.mxu0
        %v738 = vpop.f32.mrf.mxu0
        %v739 = vadd.f32 %v451, %v738
        %v740 = vpop.f32.mrf.mxu0
        %741 = vmatprep.mubr.bf16.mxu0 0
        %742 = vmatmul.mubr.bf16.gmra.mxu0 %v531
        %v743 = vpop.f32.mrf.mxu0
        %v744 = vadd.f32 %v451, %v743
        %v745 = vpop.f32.mrf.mxu0
        %v746 = vpop.f32.mrf.mxu0
        %v747 = vadd.f32 %v451, %v746
        %v748 = vpop.f32.mrf.mxu0
        %749 = vmatprep.mubr.bf16.mxu0 0
        %750 = vmatmul.mubr.bf16.gmra.mxu0 %v532
        %v751 = vpop.f32.mrf.mxu0
        %v752 = vadd.f32 %v451, %v751
        %v753 = vpop.f32.mrf.mxu0
        %v754 = vpop.f32.mrf.mxu0
        %v755 = vadd.f32 %v451, %v754
        %v756 = vpop.f32.mrf.mxu0
        %757 = vdwg.mxu0
        %v758 = vxor.u32 %v632, 2147483648
        %v759 = vxor.u32 %v635, 2147483648
        %v760 = vxor.u32 %v640, 2147483648
        %v761 = vxor.u32 %v643, 2147483648
        %v762 = vxor.u32 %v648, 2147483648
        %v763 = vxor.u32 %v651, 2147483648
        %v764 = vxor.u32 %v656, 2147483648
        %v765 = vxor.u32 %v659, 2147483648
        %v766 = vxor.u32 %v664, 2147483648
        %v767 = vxor.u32 %v667, 2147483648
        %v768 = vxor.u32 %v672, 2147483648
        %v769 = vxor.u32 %v675, 2147483648
        %v770 = vxor.u32 %v680, 2147483648
        %v771 = vxor.u32 %v683, 2147483648
        %v772 = vxor.u32 %v688, 2147483648
        %v773 = vxor.u32 %v691, 2147483648
        %v774 = vxor.u32 %v696, 2147483648
        %v775 = vxor.u32 %v699, 2147483648
        %v776 = vxor.u32 %v704, 2147483648
        %v777 = vxor.u32 %v707, 2147483648
        %v778 = vxor.u32 %v712, 2147483648
        %v779 = vxor.u32 %v715, 2147483648
        %v780 = vxor.u32 %v720, 2147483648
        %v781 = vxor.u32 %v723, 2147483648
        %v782 = vxor.u32 %v728, 2147483648
        %v783 = vxor.u32 %v731, 2147483648
        %v784 = vxor.u32 %v736, 2147483648
        %v785 = vxor.u32 %v739, 2147483648
        %v786 = vxor.u32 %v744, 2147483648
        %v787 = vxor.u32 %v747, 2147483648
        %v788 = vxor.u32 %v752, 2147483648
        %v789 = vxor.u32 %v755, 2147483648
        %v790 = vmul.f32 %v758, 1.442695
        %v791 = vpow.pop %v790
        %v792 = vmul.f32 %v759, 1.442695
        %v793 = vpow.pop %v792
        %v794 = vmul.f32 %v760, 1.442695
        %v795 = vpow.pop %v794
        %v796 = vmul.f32 %v761, 1.442695
        %v797 = vpow.pop %v796
        %v798 = vmul.f32 %v762, 1.442695
        %v799 = vpow.pop %v798
        %v800 = vmul.f32 %v763, 1.442695
        %v801 = vpow.pop %v800
        %v802 = vmul.f32 %v764, 1.442695
        %v803 = vpow.pop %v802
        %v804 = vmul.f32 %v765, 1.442695
        %v805 = vpow.pop %v804
        %v806 = vmul.f32 %v766, 1.442695
        %v807 = vpow.pop %v806
        %v808 = vmul.f32 %v767, 1.442695
        %v809 = vpow.pop %v808
        %v810 = vmul.f32 %v768, 1.442695
        %v811 = vpow.pop %v810
        %v812 = vmul.f32 %v769, 1.442695
        %v813 = vpow.pop %v812
        %v814 = vmul.f32 %v770, 1.442695
        %v815 = vpow.pop %v814
        %v816 = vmul.f32 %v771, 1.442695
        %v817 = vpow.pop %v816
        %v818 = vmul.f32 %v772, 1.442695
        %v819 = vpow.pop %v818
        %v820 = vmul.f32 %v773, 1.442695
        %v821 = vpow.pop %v820
        %v822 = vmul.f32 %v774, 1.442695
        %v823 = vpow.pop %v822
        %v824 = vmul.f32 %v775, 1.442695
        %v825 = vpow.pop %v824
        %v826 = vmul.f32 %v776, 1.442695
        %v827 = vpow.pop %v826
        %v828 = vmul.f32 %v777, 1.442695
        %v829 = vpow.pop %v828
        %v830 = vmul.f32 %v778, 1.442695
        %v831 = vpow.pop %v830
        %v832 = vmul.f32 %v779, 1.442695
        %v833 = vpow.pop %v832
        %v834 = vmul.f32 %v780, 1.442695
        %v835 = vpow.pop %v834
        %v836 = vmul.f32 %v781, 1.442695
        %v837 = vpow.pop %v836
        %v838 = vmul.f32 %v782, 1.442695
        %v839 = vpow.pop %v838
        %v840 = vmul.f32 %v783, 1.442695
        %v841 = vpow.pop %v840
        %v842 = vmul.f32 %v784, 1.442695
        %v843 = vpow.pop %v842
        %v844 = vmul.f32 %v785, 1.442695
        %v845 = vpow.pop %v844
        %v846 = vmul.f32 %v786, 1.442695
        %v847 = vpow.pop %v846
        %v848 = vmul.f32 %v787, 1.442695
        %v849 = vpow.pop %v848
        %v850 = vmul.f32 %v788, 1.442695
        %v851 = vpow.pop %v850
        %v852 = vmul.f32 %v789, 1.442695
        %v853 = vpow.pop %v852
        %v854 = vadd.f32 %v791, 1.0
        %v855 = vadd.f32 %v793, 1.0
        %v856 = vadd.f32 %v795, 1.0
        %v857 = vadd.f32 %v797, 1.0
        %v858 = vadd.f32 %v799, 1.0
        %v859 = vadd.f32 %v801, 1.0
        %v860 = vadd.f32 %v803, 1.0
        %v861 = vadd.f32 %v805, 1.0
        %v862 = vadd.f32 %v807, 1.0
        %v863 = vadd.f32 %v809, 1.0
        %v864 = vadd.f32 %v811, 1.0
        %v865 = vadd.f32 %v813, 1.0
        %v866 = vadd.f32 %v815, 1.0
        %v867 = vadd.f32 %v817, 1.0
        %v868 = vadd.f32 %v819, 1.0
        %v869 = vadd.f32 %v821, 1.0
        %v870 = vadd.f32 %v823, 1.0
        %v871 = vadd.f32 %v825, 1.0
        %v872 = vadd.f32 %v827, 1.0
        %v873 = vadd.f32 %v829, 1.0
        %v874 = vadd.f32 %v831, 1.0
        %v875 = vadd.f32 %v833, 1.0
        %v876 = vadd.f32 %v835, 1.0
        %v877 = vadd.f32 %v837, 1.0
        %v878 = vadd.f32 %v839, 1.0
        %v879 = vadd.f32 %v841, 1.0
        %v880 = vadd.f32 %v843, 1.0
        %v881 = vadd.f32 %v845, 1.0
        %v882 = vadd.f32 %v847, 1.0
        %v883 = vadd.f32 %v849, 1.0
        %v884 = vadd.f32 %v851, 1.0
        %v885 = vadd.f32 %v853, 1.0
        %v886 = vrcp.pop %v854
        %v887 = vmul.f32 1.0, %v886
        %v888 = vrcp.pop %v855
        %v889 = vmul.f32 1.0, %v888
        %v890 = vrcp.pop %v856
        %v891 = vmul.f32 1.0, %v890
        %v892 = vrcp.pop %v857
        %v893 = vmul.f32 1.0, %v892
        %v894 = vrcp.pop %v858
        %v895 = vmul.f32 1.0, %v894
        %v896 = vrcp.pop %v859
        %v897 = vmul.f32 1.0, %v896
        %v898 = vrcp.pop %v860
        %v899 = vmul.f32 1.0, %v898
        %v900 = vrcp.pop %v861
        %v901 = vmul.f32 1.0, %v900
        %v902 = vrcp.pop %v862
        %v903 = vmul.f32 1.0, %v902
        %v904 = vrcp.pop %v863
        %v905 = vmul.f32 1.0, %v904
        %v906 = vrcp.pop %v864
        %v907 = vmul.f32 1.0, %v906
        %v908 = vrcp.pop %v865
        %v909 = vmul.f32 1.0, %v908
        %v910 = vrcp.pop %v866
        %v911 = vmul.f32 1.0, %v910
        %v912 = vrcp.pop %v867
        %v913 = vmul.f32 1.0, %v912
        %v914 = vrcp.pop %v868
        %v915 = vmul.f32 1.0, %v914
        %v916 = vrcp.pop %v869
        %v917 = vmul.f32 1.0, %v916
        %v918 = vrcp.pop %v870
        %v919 = vmul.f32 1.0, %v918
        %v920 = vrcp.pop %v871
        %v921 = vmul.f32 1.0, %v920
        %v922 = vrcp.pop %v872
        %v923 = vmul.f32 1.0, %v922
        %v924 = vrcp.pop %v873
        %v925 = vmul.f32 1.0, %v924
        %v926 = vrcp.pop %v874
        %v927 = vmul.f32 1.0, %v926
        %v928 = vrcp.pop %v875
        %v929 = vmul.f32 1.0, %v928
        %v930 = vrcp.pop %v876
        %v931 = vmul.f32 1.0, %v930
        %v932 = vrcp.pop %v877
        %v933 = vmul.f32 1.0, %v932
        %v934 = vrcp.pop %v878
        %v935 = vmul.f32 1.0, %v934
        %v936 = vrcp.pop %v879
        %v937 = vmul.f32 1.0, %v936
        %v938 = vrcp.pop %v880
        %v939 = vmul.f32 1.0, %v938
        %v940 = vrcp.pop %v881
        %v941 = vmul.f32 1.0, %v940
        %v942 = vrcp.pop %v882
        %v943 = vmul.f32 1.0, %v942
        %v944 = vrcp.pop %v883
        %v945 = vmul.f32 1.0, %v944
        %v946 = vrcp.pop %v884
        %v947 = vmul.f32 1.0, %v946
        %v948 = vrcp.pop %v885
        %v949 = vmul.f32 1.0, %v948
        %v950 = vmul.f32 %v632, %v887
        %v951 = vmul.f32 %v635, %v889
        %v952 = vmul.f32 %v640, %v891
        %v953 = vmul.f32 %v643, %v893
        %v954 = vmul.f32 %v648, %v895
        %v955 = vmul.f32 %v651, %v897
        %v956 = vmul.f32 %v656, %v899
        %v957 = vmul.f32 %v659, %v901
        %v958 = vmul.f32 %v664, %v903
        %v959 = vmul.f32 %v667, %v905
        %v960 = vmul.f32 %v672, %v907
        %v961 = vmul.f32 %v675, %v909
        %v962 = vmul.f32 %v680, %v911
        %v963 = vmul.f32 %v683, %v913
        %v964 = vmul.f32 %v688, %v915
        %v965 = vmul.f32 %v691, %v917
        %v966 = vmul.f32 %v696, %v919
        %v967 = vmul.f32 %v699, %v921
        %v968 = vmul.f32 %v704, %v923
        %v969 = vmul.f32 %v707, %v925
        %v970 = vmul.f32 %v712, %v927
        %v971 = vmul.f32 %v715, %v929
        %v972 = vmul.f32 %v720, %v931
        %v973 = vmul.f32 %v723, %v933
        %v974 = vmul.f32 %v728, %v935
        %v975 = vmul.f32 %v731, %v937
        %v976 = vmul.f32 %v736, %v939
        %v977 = vmul.f32 %v739, %v941
        %v978 = vmul.f32 %v744, %v943
        %v979 = vmul.f32 %v747, %v945
        %v980 = vmul.f32 %v752, %v947
        %v981 = vmul.f32 %v755, %v949
        %v982 = vlaneseq
        %v983 = vshrl.u32 %v982, 7
        %v984 = vadd.s32 %v983, 8
        %vm985 = vcmp.ge.s32.totalorder %v983, 2
        %vm986 = vcmp.ge.s32.totalorder %v984, 2
        %vm987 = vcmp.ge.s32.totalorder %v983, 1
        %vm988 = vcmp.ge.s32.totalorder %v984, 1
        %vm989 = vcmp.lt.s32.totalorder %v983, 15
        %vm990 = vcmp.lt.s32.totalorder %v984, 15
        %vm991 = vcmp.lt.s32.totalorder %v983, 14
        %vm992 = vcmp.lt.s32.totalorder %v984, 14
        %v993 = vpack.c.bf16 %v951, %v950
        %v994 = vpack.c.bf16 %v953, %v952
        %v995 = vpack.c.bf16 %v955, %v954
        %v996 = vpack.c.bf16 %v957, %v956
        %v997 = vpack.c.bf16 %v959, %v958
        %v998 = vpack.c.bf16 %v961, %v960
        %v999 = vpack.c.bf16 %v963, %v962
        %v1000 = vpack.c.bf16 %v965, %v964
        %v1001 = vpack.c.bf16 %v967, %v966
        %v1002 = vpack.c.bf16 %v969, %v968
        %v1003 = vpack.c.bf16 %v971, %v970
        %v1004 = vpack.c.bf16 %v973, %v972
        %v1005 = vpack.c.bf16 %v975, %v974
        %v1006 = vpack.c.bf16 %v977, %v976
        %v1007 = vpack.c.bf16 %v979, %v978
        %v1008 = vpack.c.bf16 %v981, %v980
        %v1009 = vld [vmem:[#allocation8] sm:$0xf]
        %v1010 = vld [vmem:[#allocation8 + $0x4] sm:$0xf]
        %v1011 = vld [vmem:[#allocation8 + $0x8] sm:$0xf]
        %v1012 = vld [vmem:[#allocation8 + $0xc] sm:$0xf]
        %v1013 = vld [vmem:[#allocation8 + $0x10] sm:$0xf]
        %v1014 = vld [vmem:[#allocation8 + $0x14] sm:$0xf]
        %v1015 = vld [vmem:[#allocation8 + $0x18] sm:$0xf]
        %v1016 = vld [vmem:[#allocation8 + $0x1c] sm:$0xf]
        %v1017 = vld [vmem:[#allocation8 + $0x20] sm:$0xf]
        %v1018 = vld [vmem:[#allocation8 + $0x24] sm:$0xf]
        %v1019 = vld [vmem:[#allocation8 + $0x28] sm:$0xf]
        %v1020 = vld [vmem:[#allocation8 + $0x2c] sm:$0xf]
        %v1021 = vld [vmem:[#allocation8 + $0x30] sm:$0xf]
        %v1022 = vld [vmem:[#allocation8 + $0x34] sm:$0xf]
        %v1023 = vld [vmem:[#allocation8 + $0x38] sm:$0xf]
        %v1024 = vld [vmem:[#allocation8 + $0x3c] sm:$0xf]
        %s1025 = scalar_lea.vmem [#allocation2], 64
        %1026 = vst [vmem:[%s1025 + $0x8] sm:$0xff] %v950
        %1027 = vst [vmem:[%s1025 + $0x10] sm:$0xff] %v951
        %1028 = vst [vmem:[%s1025 + $0x28] sm:$0xff] %v952
        %1029 = vst [vmem:[%s1025 + $0x30] sm:$0xff] %v953
        %1030 = vst [vmem:[%s1025 + $0x48] sm:$0xff] %v954
        %1031 = vst [vmem:[%s1025 + $0x50] sm:$0xff] %v955
        %1032 = vst [vmem:[%s1025 + $0x68] sm:$0xff] %v956
        %1033 = vst [vmem:[%s1025 + $0x70] sm:$0xff] %v957
        %1034 = vst [vmem:[%s1025 + $0x88] sm:$0xff] %v958
        %1035 = vst [vmem:[%s1025 + $0x90] sm:$0xff] %v959
        %1036 = vst [vmem:[%s1025 + $0xa8] sm:$0xff] %v960
        %1037 = vst [vmem:[%s1025 + $0xb0] sm:$0xff] %v961
        %1038 = vst [vmem:[%s1025 + $0xc8] sm:$0xff] %v962
        %1039 = vst [vmem:[%s1025 + $0xd0] sm:$0xff] %v963
        %1040 = vst [vmem:[%s1025 + $0xe8] sm:$0xff] %v964
        %1041 = vst [vmem:[%s1025 + $0xf0] sm:$0xff] %v965
        %1042 = vst [vmem:[%s1025 + $0x108] sm:$0xff] %v966
        %1043 = vst [vmem:[%s1025 + $0x110] sm:$0xff] %v967
        %1044 = vst [vmem:[%s1025 + $0x128] sm:$0xff] %v968
        %1045 = vst [vmem:[%s1025 + $0x130] sm:$0xff] %v969
        %1046 = vst [vmem:[%s1025 + $0x148] sm:$0xff] %v970
        %1047 = vst [vmem:[%s1025 + $0x150] sm:$0xff] %v971
        %1048 = vst [vmem:[%s1025 + $0x168] sm:$0xff] %v972
        %1049 = vst [vmem:[%s1025 + $0x170] sm:$0xff] %v973
        %1050 = vst [vmem:[%s1025 + $0x188] sm:$0xff] %v974
        %1051 = vst [vmem:[%s1025 + $0x190] sm:$0xff] %v975
        %1052 = vst [vmem:[%s1025 + $0x1a8] sm:$0xff] %v976
        %1053 = vst [vmem:[%s1025 + $0x1b0] sm:$0xff] %v977
        %1054 = vst [vmem:[%s1025 + $0x1c8] sm:$0xff] %v978
        %1055 = vst [vmem:[%s1025 + $0x1d0] sm:$0xff] %v979
        %1056 = vst [vmem:[%s1025 + $0x1e8] sm:$0xff] %v980
        %1057 = vst [vmem:[%s1025 + $0x1f0] sm:$0xff] %v981
        %v1058 = vld [vmem:[%s1025 + $0x6] sm:$0xff]
        %v1059 = vld [vmem:[%s1025 + $0xe] sm:$0xff]
        %v1060 = vld [vmem:[%s1025 + $0x26] sm:$0xff]
        %v1061 = vld [vmem:[%s1025 + $0x2e] sm:$0xff]
        %v1062 = vld [vmem:[%s1025 + $0x46] sm:$0xff]
        %v1063 = vld [vmem:[%s1025 + $0x4e] sm:$0xff]
        %v1064 = vld [vmem:[%s1025 + $0x66] sm:$0xff]
        %v1065 = vld [vmem:[%s1025 + $0x6e] sm:$0xff]
        %v1066 = vld [vmem:[%s1025 + $0x86] sm:$0xff]
        %v1067 = vld [vmem:[%s1025 + $0x8e] sm:$0xff]
        %v1068 = vld [vmem:[%s1025 + $0xa6] sm:$0xff]
        %v1069 = vld [vmem:[%s1025 + $0xae] sm:$0xff]
        %v1070 = vld [vmem:[%s1025 + $0xc6] sm:$0xff]
        %v1071 = vld [vmem:[%s1025 + $0xce] sm:$0xff]
        %v1072 = vld [vmem:[%s1025 + $0xe6] sm:$0xff]
        %v1073 = vld [vmem:[%s1025 + $0xee] sm:$0xff]
        %v1074 = vld [vmem:[%s1025 + $0x106] sm:$0xff]
        %v1075 = vld [vmem:[%s1025 + $0x10e] sm:$0xff]
        %v1076 = vld [vmem:[%s1025 + $0x126] sm:$0xff]
        %v1077 = vld [vmem:[%s1025 + $0x12e] sm:$0xff]
        %v1078 = vld [vmem:[%s1025 + $0x146] sm:$0xff]
        %v1079 = vld [vmem:[%s1025 + $0x14e] sm:$0xff]
        %v1080 = vld [vmem:[%s1025 + $0x166] sm:$0xff]
        %v1081 = vld [vmem:[%s1025 + $0x16e] sm:$0xff]
        %v1082 = vld [vmem:[%s1025 + $0x186] sm:$0xff]
        %v1083 = vld [vmem:[%s1025 + $0x18e] sm:$0xff]
        %v1084 = vld [vmem:[%s1025 + $0x1a6] sm:$0xff]
        %v1085 = vld [vmem:[%s1025 + $0x1ae] sm:$0xff]
        %v1086 = vld [vmem:[%s1025 + $0x1c6] sm:$0xff]
        %v1087 = vld [vmem:[%s1025 + $0x1ce] sm:$0xff]
        %v1088 = vld [vmem:[%s1025 + $0x1e6] sm:$0xff]
        %v1089 = vld [vmem:[%s1025 + $0x1ee] sm:$0xff]
        %v1090 = vsel %vm985, %v1058, -3e+38
        %v1091 = vsel %vm986, %v1059, -3e+38
        %v1092 = vsel %vm985, %v1060, -3e+38
        %v1093 = vsel %vm986, %v1061, -3e+38
        %v1094 = vsel %vm985, %v1062, -3e+38
        %v1095 = vsel %vm986, %v1063, -3e+38
        %v1096 = vsel %vm985, %v1064, -3e+38
        %v1097 = vsel %vm986, %v1065, -3e+38
        %v1098 = vsel %vm985, %v1066, -3e+38
        %v1099 = vsel %vm986, %v1067, -3e+38
        %v1100 = vsel %vm985, %v1068, -3e+38
        %v1101 = vsel %vm986, %v1069, -3e+38
        %v1102 = vsel %vm985, %v1070, -3e+38
        %v1103 = vsel %vm986, %v1071, -3e+38
        %v1104 = vsel %vm985, %v1072, -3e+38
        %v1105 = vsel %vm986, %v1073, -3e+38
        %v1106 = vsel %vm985, %v1074, -3e+38
        %v1107 = vsel %vm986, %v1075, -3e+38
        %v1108 = vsel %vm985, %v1076, -3e+38
        %v1109 = vsel %vm986, %v1077, -3e+38
        %v1110 = vsel %vm985, %v1078, -3e+38
        %v1111 = vsel %vm986, %v1079, -3e+38
        %v1112 = vsel %vm985, %v1080, -3e+38
        %v1113 = vsel %vm986, %v1081, -3e+38
        %v1114 = vsel %vm985, %v1082, -3e+38
        %v1115 = vsel %vm986, %v1083, -3e+38
        %v1116 = vsel %vm985, %v1084, -3e+38
        %v1117 = vsel %vm986, %v1085, -3e+38
        %v1118 = vsel %vm985, %v1086, -3e+38
        %v1119 = vsel %vm986, %v1087, -3e+38
        %v1120 = vsel %vm985, %v1088, -3e+38
        %v1121 = vsel %vm986, %v1089, -3e+38
        %v1122 = vld [vmem:[%s1025 + $0x7] sm:$0xff]
        %v1123 = vld [vmem:[%s1025 + $0xf] sm:$0xff]
        %v1124 = vld [vmem:[%s1025 + $0x27] sm:$0xff]
        %v1125 = vld [vmem:[%s1025 + $0x2f] sm:$0xff]
        %v1126 = vld [vmem:[%s1025 + $0x47] sm:$0xff]
        %v1127 = vld [vmem:[%s1025 + $0x4f] sm:$0xff]
        %v1128 = vld [vmem:[%s1025 + $0x67] sm:$0xff]
        %v1129 = vld [vmem:[%s1025 + $0x6f] sm:$0xff]
        %v1130 = vld [vmem:[%s1025 + $0x87] sm:$0xff]
        %v1131 = vld [vmem:[%s1025 + $0x8f] sm:$0xff]
        %v1132 = vld [vmem:[%s1025 + $0xa7] sm:$0xff]
        %v1133 = vld [vmem:[%s1025 + $0xaf] sm:$0xff]
        %v1134 = vld [vmem:[%s1025 + $0xc7] sm:$0xff]
        %v1135 = vld [vmem:[%s1025 + $0xcf] sm:$0xff]
        %v1136 = vld [vmem:[%s1025 + $0xe7] sm:$0xff]
        %v1137 = vld [vmem:[%s1025 + $0xef] sm:$0xff]
        %v1138 = vld [vmem:[%s1025 + $0x107] sm:$0xff]
        %v1139 = vld [vmem:[%s1025 + $0x10f] sm:$0xff]
        %v1140 = vld [vmem:[%s1025 + $0x127] sm:$0xff]
        %v1141 = vld [vmem:[%s1025 + $0x12f] sm:$0xff]
        %v1142 = vld [vmem:[%s1025 + $0x147] sm:$0xff]
        %v1143 = vld [vmem:[%s1025 + $0x14f] sm:$0xff]
        %v1144 = vld [vmem:[%s1025 + $0x167] sm:$0xff]
        %v1145 = vld [vmem:[%s1025 + $0x16f] sm:$0xff]
        %v1146 = vld [vmem:[%s1025 + $0x187] sm:$0xff]
        %v1147 = vld [vmem:[%s1025 + $0x18f] sm:$0xff]
        %v1148 = vld [vmem:[%s1025 + $0x1a7] sm:$0xff]
        %v1149 = vld [vmem:[%s1025 + $0x1af] sm:$0xff]
        %v1150 = vld [vmem:[%s1025 + $0x1c7] sm:$0xff]
        %v1151 = vld [vmem:[%s1025 + $0x1cf] sm:$0xff]
        %v1152 = vld [vmem:[%s1025 + $0x1e7] sm:$0xff]
        %v1153 = vld [vmem:[%s1025 + $0x1ef] sm:$0xff]
        %v1154 = vsel %vm987, %v1122, -3e+38
        %v1155 = vsel %vm988, %v1123, -3e+38
        %v1156 = vsel %vm987, %v1124, -3e+38
        %v1157 = vsel %vm988, %v1125, -3e+38
        %v1158 = vsel %vm987, %v1126, -3e+38
        %v1159 = vsel %vm988, %v1127, -3e+38
        %v1160 = vsel %vm987, %v1128, -3e+38
        %v1161 = vsel %vm988, %v1129, -3e+38
        %v1162 = vsel %vm987, %v1130, -3e+38
        %v1163 = vsel %vm988, %v1131, -3e+38
        %v1164 = vsel %vm987, %v1132, -3e+38
        %v1165 = vsel %vm988, %v1133, -3e+38
        %v1166 = vsel %vm987, %v1134, -3e+38
        %v1167 = vsel %vm988, %v1135, -3e+38
        %v1168 = vsel %vm987, %v1136, -3e+38
        %v1169 = vsel %vm988, %v1137, -3e+38
        %v1170 = vsel %vm987, %v1138, -3e+38
        %v1171 = vsel %vm988, %v1139, -3e+38
        %v1172 = vsel %vm987, %v1140, -3e+38
        %v1173 = vsel %vm988, %v1141, -3e+38
        %v1174 = vsel %vm987, %v1142, -3e+38
        %v1175 = vsel %vm988, %v1143, -3e+38
        %v1176 = vsel %vm987, %v1144, -3e+38
        %v1177 = vsel %vm988, %v1145, -3e+38
        %v1178 = vsel %vm987, %v1146, -3e+38
        %v1179 = vsel %vm988, %v1147, -3e+38
        %v1180 = vsel %vm987, %v1148, -3e+38
        %v1181 = vsel %vm988, %v1149, -3e+38
        %v1182 = vsel %vm987, %v1150, -3e+38
        %v1183 = vsel %vm988, %v1151, -3e+38
        %v1184 = vsel %vm987, %v1152, -3e+38
        %v1185 = vsel %vm988, %v1153, -3e+38
        %v1186 = vmax.f32 %v1090, %v1154
        %v1187 = vmax.f32 %v1091, %v1155
        %v1188 = vmax.f32 %v1092, %v1156
        %v1189 = vmax.f32 %v1093, %v1157
        %v1190 = vmax.f32 %v1094, %v1158
        %v1191 = vmax.f32 %v1095, %v1159
        %v1192 = vmax.f32 %v1096, %v1160
        %v1193 = vmax.f32 %v1097, %v1161
        %v1194 = vmax.f32 %v1098, %v1162
        %v1195 = vmax.f32 %v1099, %v1163
        %v1196 = vmax.f32 %v1100, %v1164
        %v1197 = vmax.f32 %v1101, %v1165
        %v1198 = vmax.f32 %v1102, %v1166
        %v1199 = vmax.f32 %v1103, %v1167
        %v1200 = vmax.f32 %v1104, %v1168
        %v1201 = vmax.f32 %v1105, %v1169
        %v1202 = vmax.f32 %v1106, %v1170
        %v1203 = vmax.f32 %v1107, %v1171
        %v1204 = vmax.f32 %v1108, %v1172
        %v1205 = vmax.f32 %v1109, %v1173
        %v1206 = vmax.f32 %v1110, %v1174
        %v1207 = vmax.f32 %v1111, %v1175
        %v1208 = vmax.f32 %v1112, %v1176
        %v1209 = vmax.f32 %v1113, %v1177
        %v1210 = vmax.f32 %v1114, %v1178
        %v1211 = vmax.f32 %v1115, %v1179
        %v1212 = vmax.f32 %v1116, %v1180
        %v1213 = vmax.f32 %v1117, %v1181
        %v1214 = vmax.f32 %v1118, %v1182
        %v1215 = vmax.f32 %v1119, %v1183
        %v1216 = vmax.f32 %v1120, %v1184
        %v1217 = vmax.f32 %v1121, %v1185
        %v1218 = vmax.f32 %v950, %v1186
        %v1219 = vmax.f32 %v951, %v1187
        %v1220 = vmax.f32 %v952, %v1188
        %v1221 = vmax.f32 %v953, %v1189
        %v1222 = vmax.f32 %v954, %v1190
        %v1223 = vmax.f32 %v955, %v1191
        %v1224 = vmax.f32 %v956, %v1192
        %v1225 = vmax.f32 %v957, %v1193
        %v1226 = vmax.f32 %v958, %v1194
        %v1227 = vmax.f32 %v959, %v1195
        %v1228 = vmax.f32 %v960, %v1196
        %v1229 = vmax.f32 %v961, %v1197
        %v1230 = vmax.f32 %v962, %v1198
        %v1231 = vmax.f32 %v963, %v1199
        %v1232 = vmax.f32 %v964, %v1200
        %v1233 = vmax.f32 %v965, %v1201
        %v1234 = vmax.f32 %v966, %v1202
        %v1235 = vmax.f32 %v967, %v1203
        %v1236 = vmax.f32 %v968, %v1204
        %v1237 = vmax.f32 %v969, %v1205
        %v1238 = vmax.f32 %v970, %v1206
        %v1239 = vmax.f32 %v971, %v1207
        %v1240 = vmax.f32 %v972, %v1208
        %v1241 = vmax.f32 %v973, %v1209
        %v1242 = vmax.f32 %v974, %v1210
        %v1243 = vmax.f32 %v975, %v1211
        %v1244 = vmax.f32 %v976, %v1212
        %v1245 = vmax.f32 %v977, %v1213
        %v1246 = vmax.f32 %v978, %v1214
        %v1247 = vmax.f32 %v979, %v1215
        %v1248 = vmax.f32 %v980, %v1216
        %v1249 = vmax.f32 %v981, %v1217
        %v1250 = vld [vmem:[%s1025 + $0x9] sm:$0xff]
        %v1251 = vld [vmem:[%s1025 + $0x11] sm:$0xff]
        %v1252 = vld [vmem:[%s1025 + $0x29] sm:$0xff]
        %v1253 = vld [vmem:[%s1025 + $0x31] sm:$0xff]
        %v1254 = vld [vmem:[%s1025 + $0x49] sm:$0xff]
        %v1255 = vld [vmem:[%s1025 + $0x51] sm:$0xff]
        %v1256 = vld [vmem:[%s1025 + $0x69] sm:$0xff]
        %v1257 = vld [vmem:[%s1025 + $0x71] sm:$0xff]
        %v1258 = vld [vmem:[%s1025 + $0x89] sm:$0xff]
        %v1259 = vld [vmem:[%s1025 + $0x91] sm:$0xff]
        %v1260 = vld [vmem:[%s1025 + $0xa9] sm:$0xff]
        %v1261 = vld [vmem:[%s1025 + $0xb1] sm:$0xff]
        %v1262 = vld [vmem:[%s1025 + $0xc9] sm:$0xff]
        %v1263 = vld [vmem:[%s1025 + $0xd1] sm:$0xff]
        %v1264 = vld [vmem:[%s1025 + $0xe9] sm:$0xff]
        %v1265 = vld [vmem:[%s1025 + $0xf1] sm:$0xff]
        %v1266 = vld [vmem:[%s1025 + $0x109] sm:$0xff]
        %v1267 = vld [vmem:[%s1025 + $0x111] sm:$0xff]
        %v1268 = vld [vmem:[%s1025 + $0x129] sm:$0xff]
        %v1269 = vld [vmem:[%s1025 + $0x131] sm:$0xff]
        %v1270 = vld [vmem:[%s1025 + $0x149] sm:$0xff]
        %v1271 = vld [vmem:[%s1025 + $0x151] sm:$0xff]
        %v1272 = vld [vmem:[%s1025 + $0x169] sm:$0xff]
        %v1273 = vld [vmem:[%s1025 + $0x171] sm:$0xff]
        %v1274 = vld [vmem:[%s1025 + $0x189] sm:$0xff]
        %v1275 = vld [vmem:[%s1025 + $0x191] sm:$0xff]
        %v1276 = vld [vmem:[%s1025 + $0x1a9] sm:$0xff]
        %v1277 = vld [vmem:[%s1025 + $0x1b1] sm:$0xff]
        %v1278 = vld [vmem:[%s1025 + $0x1c9] sm:$0xff]
        %v1279 = vld [vmem:[%s1025 + $0x1d1] sm:$0xff]
        %v1280 = vld [vmem:[%s1025 + $0x1e9] sm:$0xff]
        %v1281 = vld [vmem:[%s1025 + $0x1f1] sm:$0xff]
        %v1282 = vsel %vm989, %v1250, -3e+38
        %v1283 = vsel %vm990, %v1251, -3e+38
        %v1284 = vsel %vm989, %v1252, -3e+38
        %v1285 = vsel %vm990, %v1253, -3e+38
        %v1286 = vsel %vm989, %v1254, -3e+38
        %v1287 = vsel %vm990, %v1255, -3e+38
        %v1288 = vsel %vm989, %v1256, -3e+38
        %v1289 = vsel %vm990, %v1257, -3e+38
        %v1290 = vsel %vm989, %v1258, -3e+38
        %v1291 = vsel %vm990, %v1259, -3e+38
        %v1292 = vsel %vm989, %v1260, -3e+38
        %v1293 = vsel %vm990, %v1261, -3e+38
        %v1294 = vsel %vm989, %v1262, -3e+38
        %v1295 = vsel %vm990, %v1263, -3e+38
        %v1296 = vsel %vm989, %v1264, -3e+38
        %v1297 = vsel %vm990, %v1265, -3e+38
        %v1298 = vsel %vm989, %v1266, -3e+38
        %v1299 = vsel %vm990, %v1267, -3e+38
        %v1300 = vsel %vm989, %v1268, -3e+38
        %v1301 = vsel %vm990, %v1269, -3e+38
        %v1302 = vsel %vm989, %v1270, -3e+38
        %v1303 = vsel %vm990, %v1271, -3e+38
        %v1304 = vsel %vm989, %v1272, -3e+38
        %v1305 = vsel %vm990, %v1273, -3e+38
        %v1306 = vsel %vm989, %v1274, -3e+38
        %v1307 = vsel %vm990, %v1275, -3e+38
        %v1308 = vsel %vm989, %v1276, -3e+38
        %v1309 = vsel %vm990, %v1277, -3e+38
        %v1310 = vsel %vm989, %v1278, -3e+38
        %v1311 = vsel %vm990, %v1279, -3e+38
        %v1312 = vsel %vm989, %v1280, -3e+38
        %v1313 = vsel %vm990, %v1281, -3e+38
        %v1314 = vld [vmem:[%s1025 + $0xa] sm:$0xff]
        %v1315 = vld [vmem:[%s1025 + $0x12] sm:$0xff]
        %v1316 = vld [vmem:[%s1025 + $0x2a] sm:$0xff]
        %v1317 = vld [vmem:[%s1025 + $0x32] sm:$0xff]
        %v1318 = vld [vmem:[%s1025 + $0x4a] sm:$0xff]
        %v1319 = vld [vmem:[%s1025 + $0x52] sm:$0xff]
        %v1320 = vld [vmem:[%s1025 + $0x6a] sm:$0xff]
        %v1321 = vld [vmem:[%s1025 + $0x72] sm:$0xff]
        %v1322 = vld [vmem:[%s1025 + $0x8a] sm:$0xff]
        %v1323 = vld [vmem:[%s1025 + $0x92] sm:$0xff]
        %v1324 = vld [vmem:[%s1025 + $0xaa] sm:$0xff]
        %v1325 = vld [vmem:[%s1025 + $0xb2] sm:$0xff]
        %v1326 = vld [vmem:[%s1025 + $0xca] sm:$0xff]
        %v1327 = vld [vmem:[%s1025 + $0xd2] sm:$0xff]
        %v1328 = vld [vmem:[%s1025 + $0xea] sm:$0xff]
        %v1329 = vld [vmem:[%s1025 + $0xf2] sm:$0xff]
        %v1330 = vld [vmem:[%s1025 + $0x10a] sm:$0xff]
        %v1331 = vld [vmem:[%s1025 + $0x112] sm:$0xff]
        %v1332 = vld [vmem:[%s1025 + $0x12a] sm:$0xff]
        %v1333 = vld [vmem:[%s1025 + $0x132] sm:$0xff]
        %v1334 = vld [vmem:[%s1025 + $0x14a] sm:$0xff]
        %v1335 = vld [vmem:[%s1025 + $0x152] sm:$0xff]
        %v1336 = vld [vmem:[%s1025 + $0x16a] sm:$0xff]
        %v1337 = vld [vmem:[%s1025 + $0x172] sm:$0xff]
        %v1338 = vld [vmem:[%s1025 + $0x18a] sm:$0xff]
        %v1339 = vld [vmem:[%s1025 + $0x192] sm:$0xff]
        %v1340 = vld [vmem:[%s1025 + $0x1aa] sm:$0xff]
        %v1341 = vld [vmem:[%s1025 + $0x1b2] sm:$0xff]
        %v1342 = vld [vmem:[%s1025 + $0x1ca] sm:$0xff]
        %v1343 = vld [vmem:[%s1025 + $0x1d2] sm:$0xff]
        %v1344 = vld [vmem:[%s1025 + $0x1ea] sm:$0xff]
        %v1345 = vld [vmem:[%s1025 + $0x1f2] sm:$0xff]
        %v1346 = vsel %vm991, %v1314, -3e+38
        %v1347 = vsel %vm992, %v1315, -3e+38
        %v1348 = vsel %vm991, %v1316, -3e+38
        %v1349 = vsel %vm992, %v1317, -3e+38
        %v1350 = vsel %vm991, %v1318, -3e+38
        %v1351 = vsel %vm992, %v1319, -3e+38
        %v1352 = vsel %vm991, %v1320, -3e+38
        %v1353 = vsel %vm992, %v1321, -3e+38
        %v1354 = vsel %vm991, %v1322, -3e+38
        %v1355 = vsel %vm992, %v1323, -3e+38
        %v1356 = vsel %vm991, %v1324, -3e+38
        %v1357 = vsel %vm992, %v1325, -3e+38
        %v1358 = vsel %vm991, %v1326, -3e+38
        %v1359 = vsel %vm992, %v1327, -3e+38
        %v1360 = vsel %vm991, %v1328, -3e+38
        %v1361 = vsel %vm992, %v1329, -3e+38
        %v1362 = vsel %vm991, %v1330, -3e+38
        %v1363 = vsel %vm992, %v1331, -3e+38
        %v1364 = vsel %vm991, %v1332, -3e+38
        %v1365 = vsel %vm992, %v1333, -3e+38
        %v1366 = vsel %vm991, %v1334, -3e+38
        %v1367 = vsel %vm992, %v1335, -3e+38
        %v1368 = vsel %vm991, %v1336, -3e+38
        %v1369 = vsel %vm992, %v1337, -3e+38
        %v1370 = vsel %vm991, %v1338, -3e+38
        %v1371 = vsel %vm992, %v1339, -3e+38
        %v1372 = vsel %vm991, %v1340, -3e+38
        %v1373 = vsel %vm992, %v1341, -3e+38
        %v1374 = vsel %vm991, %v1342, -3e+38
        %v1375 = vsel %vm992, %v1343, -3e+38
        %v1376 = vsel %vm991, %v1344, -3e+38
        %v1377 = vsel %vm992, %v1345, -3e+38
        %v1378 = vmax.f32 %v1282, %v1346
        %v1379 = vmax.f32 %v1283, %v1347
        %v1380 = vmax.f32 %v1284, %v1348
        %v1381 = vmax.f32 %v1285, %v1349
        %v1382 = vmax.f32 %v1286, %v1350
        %v1383 = vmax.f32 %v1287, %v1351
        %v1384 = vmax.f32 %v1288, %v1352
        %v1385 = vmax.f32 %v1289, %v1353
        %v1386 = vmax.f32 %v1290, %v1354
        %v1387 = vmax.f32 %v1291, %v1355
        %v1388 = vmax.f32 %v1292, %v1356
        %v1389 = vmax.f32 %v1293, %v1357
        %v1390 = vmax.f32 %v1294, %v1358
        %v1391 = vmax.f32 %v1295, %v1359
        %v1392 = vmax.f32 %v1296, %v1360
        %v1393 = vmax.f32 %v1297, %v1361
        %v1394 = vmax.f32 %v1298, %v1362
        %v1395 = vmax.f32 %v1299, %v1363
        %v1396 = vmax.f32 %v1300, %v1364
        %v1397 = vmax.f32 %v1301, %v1365
        %v1398 = vmax.f32 %v1302, %v1366
        %v1399 = vmax.f32 %v1303, %v1367
        %v1400 = vmax.f32 %v1304, %v1368
        %v1401 = vmax.f32 %v1305, %v1369
        %v1402 = vmax.f32 %v1306, %v1370
        %v1403 = vmax.f32 %v1307, %v1371
        %v1404 = vmax.f32 %v1308, %v1372
        %v1405 = vmax.f32 %v1309, %v1373
        %v1406 = vmax.f32 %v1310, %v1374
        %v1407 = vmax.f32 %v1311, %v1375
        %v1408 = vmax.f32 %v1312, %v1376
        %v1409 = vmax.f32 %v1313, %v1377
        %v1410 = vmax.f32 %v1218, %v1378
        %v1411 = vmax.f32 %v1219, %v1379
        %v1412 = vmax.f32 %v1220, %v1380
        %v1413 = vmax.f32 %v1221, %v1381
        %v1414 = vmax.f32 %v1222, %v1382
        %v1415 = vmax.f32 %v1223, %v1383
        %v1416 = vmax.f32 %v1224, %v1384
        %v1417 = vmax.f32 %v1225, %v1385
        %v1418 = vmax.f32 %v1226, %v1386
        %v1419 = vmax.f32 %v1227, %v1387
        %v1420 = vmax.f32 %v1228, %v1388
        %v1421 = vmax.f32 %v1229, %v1389
        %v1422 = vmax.f32 %v1230, %v1390
        %v1423 = vmax.f32 %v1231, %v1391
        %v1424 = vmax.f32 %v1232, %v1392
        %v1425 = vmax.f32 %v1233, %v1393
        %v1426 = vmax.f32 %v1234, %v1394
        %v1427 = vmax.f32 %v1235, %v1395
        %v1428 = vmax.f32 %v1236, %v1396
        %v1429 = vmax.f32 %v1237, %v1397
        %v1430 = vmax.f32 %v1238, %v1398
        %v1431 = vmax.f32 %v1239, %v1399
        %v1432 = vmax.f32 %v1240, %v1400
        %v1433 = vmax.f32 %v1241, %v1401
        %v1434 = vmax.f32 %v1242, %v1402
        %v1435 = vmax.f32 %v1243, %v1403
        %v1436 = vmax.f32 %v1244, %v1404
        %v1437 = vmax.f32 %v1245, %v1405
        %v1438 = vmax.f32 %v1246, %v1406
        %v1439 = vmax.f32 %v1247, %v1407
        %v1440 = vmax.f32 %v1248, %v1408
        %v1441 = vmax.f32 %v1249, %v1409
        %1442 = vst [vmem:[%s1025 + $0x8] sm:$0xff] %v1410
        %1443 = vst [vmem:[%s1025 + $0x10] sm:$0xff] %v1411
        %1444 = vst [vmem:[%s1025 + $0x28] sm:$0xff] %v1412
        %1445 = vst [vmem:[%s1025 + $0x30] sm:$0xff] %v1413
        %1446 = vst [vmem:[%s1025 + $0x48] sm:$0xff] %v1414
        %1447 = vst [vmem:[%s1025 + $0x50] sm:$0xff] %v1415
        %1448 = vst [vmem:[%s1025 + $0x68] sm:$0xff] %v1416
        %1449 = vst [vmem:[%s1025 + $0x70] sm:$0xff] %v1417
        %1450 = vst [vmem:[%s1025 + $0x88] sm:$0xff] %v1418
        %1451 = vst [vmem:[%s1025 + $0x90] sm:$0xff] %v1419
        %1452 = vst [vmem:[%s1025 + $0xa8] sm:$0xff] %v1420
        %1453 = vst [vmem:[%s1025 + $0xb0] sm:$0xff] %v1421
        %1454 = vst [vmem:[%s1025 + $0xc8] sm:$0xff] %v1422
        %1455 = vst [vmem:[%s1025 + $0xd0] sm:$0xff] %v1423
        %1456 = vst [vmem:[%s1025 + $0xe8] sm:$0xff] %v1424
        %1457 = vst [vmem:[%s1025 + $0xf0] sm:$0xff] %v1425
        %1458 = vst [vmem:[%s1025 + $0x108] sm:$0xff] %v1426
        %1459 = vst [vmem:[%s1025 + $0x110] sm:$0xff] %v1427
        %1460 = vst [vmem:[%s1025 + $0x128] sm:$0xff] %v1428
        %1461 = vst [vmem:[%s1025 + $0x130] sm:$0xff] %v1429
        %1462 = vst [vmem:[%s1025 + $0x148] sm:$0xff] %v1430
        %1463 = vst [vmem:[%s1025 + $0x150] sm:$0xff] %v1431
        %1464 = vst [vmem:[%s1025 + $0x168] sm:$0xff] %v1432
        %1465 = vst [vmem:[%s1025 + $0x170] sm:$0xff] %v1433
        %1466 = vst [vmem:[%s1025 + $0x188] sm:$0xff] %v1434
        %1467 = vst [vmem:[%s1025 + $0x190] sm:$0xff] %v1435
        %1468 = vst [vmem:[%s1025 + $0x1a8] sm:$0xff] %v1436
        %1469 = vst [vmem:[%s1025 + $0x1b0] sm:$0xff] %v1437
        %1470 = vst [vmem:[%s1025 + $0x1c8] sm:$0xff] %v1438
        %1471 = vst [vmem:[%s1025 + $0x1d0] sm:$0xff] %v1439
        %1472 = vst [vmem:[%s1025 + $0x1e8] sm:$0xff] %v1440
        %1473 = vst [vmem:[%s1025 + $0x1f0] sm:$0xff] %v1441
        %v1474 = vld [vmem:[#allocation2 + $0x8] sm:$0xff]
        %v1475 = vld [vmem:[#allocation2 + $0x10] sm:$0xff]
        %v1476 = vld [vmem:[#allocation2 + $0x28] sm:$0xff]
        %v1477 = vld [vmem:[#allocation2 + $0x30] sm:$0xff]
        %v1478 = vld [vmem:[#allocation2 + $0x48] sm:$0xff]
        %v1479 = vld [vmem:[#allocation2 + $0x50] sm:$0xff]
        %v1480 = vld [vmem:[#allocation2 + $0x68] sm:$0xff]
        %v1481 = vld [vmem:[#allocation2 + $0x70] sm:$0xff]
        %v1482 = vld [vmem:[#allocation2 + $0x88] sm:$0xff]
        %v1483 = vld [vmem:[#allocation2 + $0x90] sm:$0xff]
        %v1484 = vld [vmem:[#allocation2 + $0xa8] sm:$0xff]
        %v1485 = vld [vmem:[#allocation2 + $0xb0] sm:$0xff]
        %v1486 = vld [vmem:[#allocation2 + $0xc8] sm:$0xff]
        %v1487 = vld [vmem:[#allocation2 + $0xd0] sm:$0xff]
        %v1488 = vld [vmem:[#allocation2 + $0xe8] sm:$0xff]
        %v1489 = vld [vmem:[#allocation2 + $0xf0] sm:$0xff]
        %v1490 = vld [vmem:[#allocation2 + $0x108] sm:$0xff]
        %v1491 = vld [vmem:[#allocation2 + $0x110] sm:$0xff]
        %v1492 = vld [vmem:[#allocation2 + $0x128] sm:$0xff]
        %v1493 = vld [vmem:[#allocation2 + $0x130] sm:$0xff]
        %v1494 = vld [vmem:[#allocation2 + $0x148] sm:$0xff]
        %v1495 = vld [vmem:[#allocation2 + $0x150] sm:$0xff]
        %v1496 = vld [vmem:[#allocation2 + $0x168] sm:$0xff]
        %v1497 = vld [vmem:[#allocation2 + $0x170] sm:$0xff]
        %v1498 = vld [vmem:[#allocation2 + $0x188] sm:$0xff]
        %v1499 = vld [vmem:[#allocation2 + $0x190] sm:$0xff]
        %v1500 = vld [vmem:[#allocation2 + $0x1a8] sm:$0xff]
        %v1501 = vld [vmem:[#allocation2 + $0x1b0] sm:$0xff]
        %v1502 = vld [vmem:[#allocation2 + $0x1c8] sm:$0xff]
        %v1503 = vld [vmem:[#allocation2 + $0x1d0] sm:$0xff]
        %v1504 = vld [vmem:[#allocation2 + $0x1e8] sm:$0xff]
        %v1505 = vld [vmem:[#allocation2 + $0x1f0] sm:$0xff]
        %v1506 = vsel 0, %v1474, -3e+38
        %v1507 = vsel 0, %v1475, -3e+38
        %v1508 = vsel 0, %v1476, -3e+38
        %v1509 = vsel 0, %v1477, -3e+38
        %v1510 = vsel 1, %v1478, -3e+38
        %v1511 = vsel 1, %v1479, -3e+38
        %v1512 = vsel 1, %v1480, -3e+38
        %v1513 = vsel 1, %v1481, -3e+38
        %v1514 = vsel 1, %v1482, -3e+38
        %v1515 = vsel 1, %v1483, -3e+38
        %v1516 = vsel 1, %v1484, -3e+38
        %v1517 = vsel 1, %v1485, -3e+38
        %v1518 = vsel 1, %v1486, -3e+38
        %v1519 = vsel 1, %v1487, -3e+38
        %v1520 = vsel 1, %v1488, -3e+38
        %v1521 = vsel 1, %v1489, -3e+38
        %v1522 = vsel 1, %v1490, -3e+38
        %v1523 = vsel 1, %v1491, -3e+38
        %v1524 = vsel 1, %v1492, -3e+38
        %v1525 = vsel 1, %v1493, -3e+38
        %v1526 = vsel 1, %v1494, -3e+38
        %v1527 = vsel 1, %v1495, -3e+38
        %v1528 = vsel 1, %v1496, -3e+38
        %v1529 = vsel 1, %v1497, -3e+38
        %v1530 = vsel 1, %v1498, -3e+38
        %v1531 = vsel 1, %v1499, -3e+38
        %v1532 = vsel 1, %v1500, -3e+38
        %v1533 = vsel 1, %v1501, -3e+38
        %v1534 = vsel 1, %v1502, -3e+38
        %v1535 = vsel 1, %v1503, -3e+38
        %v1536 = vsel 1, %v1504, -3e+38
        %v1537 = vsel 1, %v1505, -3e+38
        %s1538 = scalar_lea.vmem [#allocation2], 32
        %v1539 = vld [vmem:[%s1538 + $0x8] sm:$0xff]
        %v1540 = vld [vmem:[%s1538 + $0x10] sm:$0xff]
        %v1541 = vld [vmem:[%s1538 + $0x28] sm:$0xff]
        %v1542 = vld [vmem:[%s1538 + $0x30] sm:$0xff]
        %v1543 = vld [vmem:[%s1538 + $0x48] sm:$0xff]
        %v1544 = vld [vmem:[%s1538 + $0x50] sm:$0xff]
        %v1545 = vld [vmem:[%s1538 + $0x68] sm:$0xff]
        %v1546 = vld [vmem:[%s1538 + $0x70] sm:$0xff]
        %v1547 = vld [vmem:[%s1538 + $0x88] sm:$0xff]
        %v1548 = vld [vmem:[%s1538 + $0x90] sm:$0xff]
        %v1549 = vld [vmem:[%s1538 + $0xa8] sm:$0xff]
        %v1550 = vld [vmem:[%s1538 + $0xb0] sm:$0xff]
        %v1551 = vld [vmem:[%s1538 + $0xc8] sm:$0xff]
        %v1552 = vld [vmem:[%s1538 + $0xd0] sm:$0xff]
        %v1553 = vld [vmem:[%s1538 + $0xe8] sm:$0xff]
        %v1554 = vld [vmem:[%s1538 + $0xf0] sm:$0xff]
        %v1555 = vld [vmem:[%s1538 + $0x108] sm:$0xff]
        %v1556 = vld [vmem:[%s1538 + $0x110] sm:$0xff]
        %v1557 = vld [vmem:[%s1538 + $0x128] sm:$0xff]
        %v1558 = vld [vmem:[%s1538 + $0x130] sm:$0xff]
        %v1559 = vld [vmem:[%s1538 + $0x148] sm:$0xff]
        %v1560 = vld [vmem:[%s1538 + $0x150] sm:$0xff]
        %v1561 = vld [vmem:[%s1538 + $0x168] sm:$0xff]
        %v1562 = vld [vmem:[%s1538 + $0x170] sm:$0xff]
        %v1563 = vld [vmem:[%s1538 + $0x188] sm:$0xff]
        %v1564 = vld [vmem:[%s1538 + $0x190] sm:$0xff]
        %v1565 = vld [vmem:[%s1538 + $0x1a8] sm:$0xff]
        %v1566 = vld [vmem:[%s1538 + $0x1b0] sm:$0xff]
        %v1567 = vld [vmem:[%s1538 + $0x1c8] sm:$0xff]
        %v1568 = vld [vmem:[%s1538 + $0x1d0] sm:$0xff]
        %v1569 = vld [vmem:[%s1538 + $0x1e8] sm:$0xff]
        %v1570 = vld [vmem:[%s1538 + $0x1f0] sm:$0xff]
        %v1571 = vsel 0, %v1539, -3e+38
        %v1572 = vsel 0, %v1540, -3e+38
        %v1573 = vsel 1, %v1541, -3e+38
        %v1574 = vsel 1, %v1542, -3e+38
        %v1575 = vsel 1, %v1543, -3e+38
        %v1576 = vsel 1, %v1544, -3e+38
        %v1577 = vsel 1, %v1545, -3e+38
        %v1578 = vsel 1, %v1546, -3e+38
        %v1579 = vsel 1, %v1547, -3e+38
        %v1580 = vsel 1, %v1548, -3e+38
        %v1581 = vsel 1, %v1549, -3e+38
        %v1582 = vsel 1, %v1550, -3e+38
        %v1583 = vsel 1, %v1551, -3e+38
        %v1584 = vsel 1, %v1552, -3e+38
        %v1585 = vsel 1, %v1553, -3e+38
        %v1586 = vsel 1, %v1554, -3e+38
        %v1587 = vsel 1, %v1555, -3e+38
        %v1588 = vsel 1, %v1556, -3e+38
        %v1589 = vsel 1, %v1557, -3e+38
        %v1590 = vsel 1, %v1558, -3e+38
        %v1591 = vsel 1, %v1559, -3e+38
        %v1592 = vsel 1, %v1560, -3e+38
        %v1593 = vsel 1, %v1561, -3e+38
        %v1594 = vsel 1, %v1562, -3e+38
        %v1595 = vsel 1, %v1563, -3e+38
        %v1596 = vsel 1, %v1564, -3e+38
        %v1597 = vsel 1, %v1565, -3e+38
        %v1598 = vsel 1, %v1566, -3e+38
        %v1599 = vsel 1, %v1567, -3e+38
        %v1600 = vsel 1, %v1568, -3e+38
        %v1601 = vsel 1, %v1569, -3e+38
        %v1602 = vsel 1, %v1570, -3e+38
        %v1603 = vmax.f32 %v1506, %v1571
        %v1604 = vmax.f32 %v1507, %v1572
        %v1605 = vmax.f32 %v1508, %v1573
        %v1606 = vmax.f32 %v1509, %v1574
        %v1607 = vmax.f32 %v1510, %v1575
        %v1608 = vmax.f32 %v1511, %v1576
        %v1609 = vmax.f32 %v1512, %v1577
        %v1610 = vmax.f32 %v1513, %v1578
        %v1611 = vmax.f32 %v1514, %v1579
        %v1612 = vmax.f32 %v1515, %v1580
        %v1613 = vmax.f32 %v1516, %v1581
        %v1614 = vmax.f32 %v1517, %v1582
        %v1615 = vmax.f32 %v1518, %v1583
        %v1616 = vmax.f32 %v1519, %v1584
        %v1617 = vmax.f32 %v1520, %v1585
        %v1618 = vmax.f32 %v1521, %v1586
        %v1619 = vmax.f32 %v1522, %v1587
        %v1620 = vmax.f32 %v1523, %v1588
        %v1621 = vmax.f32 %v1524, %v1589
        %v1622 = vmax.f32 %v1525, %v1590
        %v1623 = vmax.f32 %v1526, %v1591
        %v1624 = vmax.f32 %v1527, %v1592
        %v1625 = vmax.f32 %v1528, %v1593
        %v1626 = vmax.f32 %v1529, %v1594
        %v1627 = vmax.f32 %v1530, %v1595
        %v1628 = vmax.f32 %v1531, %v1596
        %v1629 = vmax.f32 %v1532, %v1597
        %v1630 = vmax.f32 %v1533, %v1598
        %v1631 = vmax.f32 %v1534, %v1599
        %v1632 = vmax.f32 %v1535, %v1600
        %v1633 = vmax.f32 %v1536, %v1601
        %v1634 = vmax.f32 %v1537, %v1602
        %v1635 = vmax.f32 %v1410, %v1603
        %v1636 = vmax.f32 %v1411, %v1604
        %v1637 = vmax.f32 %v1412, %v1605
        %v1638 = vmax.f32 %v1413, %v1606
        %v1639 = vmax.f32 %v1414, %v1607
        %v1640 = vmax.f32 %v1415, %v1608
        %v1641 = vmax.f32 %v1416, %v1609
        %v1642 = vmax.f32 %v1417, %v1610
        %v1643 = vmax.f32 %v1418, %v1611
        %v1644 = vmax.f32 %v1419, %v1612
        %v1645 = vmax.f32 %v1420, %v1613
        %v1646 = vmax.f32 %v1421, %v1614
        %v1647 = vmax.f32 %v1422, %v1615
        %v1648 = vmax.f32 %v1423, %v1616
        %v1649 = vmax.f32 %v1424, %v1617
        %v1650 = vmax.f32 %v1425, %v1618
        %v1651 = vmax.f32 %v1426, %v1619
        %v1652 = vmax.f32 %v1427, %v1620
        %v1653 = vmax.f32 %v1428, %v1621
        %v1654 = vmax.f32 %v1429, %v1622
        %v1655 = vmax.f32 %v1430, %v1623
        %v1656 = vmax.f32 %v1431, %v1624
        %v1657 = vmax.f32 %v1432, %v1625
        %v1658 = vmax.f32 %v1433, %v1626
        %v1659 = vmax.f32 %v1434, %v1627
        %v1660 = vmax.f32 %v1435, %v1628
        %v1661 = vmax.f32 %v1436, %v1629
        %v1662 = vmax.f32 %v1437, %v1630
        %v1663 = vmax.f32 %v1438, %v1631
        %v1664 = vmax.f32 %v1439, %v1632
        %v1665 = vmax.f32 %v1440, %v1633
        %v1666 = vmax.f32 %v1441, %v1634
        %s1667 = scalar_lea.vmem [#allocation2], 96
        %v1668 = vld [vmem:[%s1667 + $0x8] sm:$0xff]
        %v1669 = vld [vmem:[%s1667 + $0x10] sm:$0xff]
        %v1670 = vld [vmem:[%s1667 + $0x28] sm:$0xff]
        %v1671 = vld [vmem:[%s1667 + $0x30] sm:$0xff]
        %v1672 = vld [vmem:[%s1667 + $0x48] sm:$0xff]
        %v1673 = vld [vmem:[%s1667 + $0x50] sm:$0xff]
        %v1674 = vld [vmem:[%s1667 + $0x68] sm:$0xff]
        %v1675 = vld [vmem:[%s1667 + $0x70] sm:$0xff]
        %v1676 = vld [vmem:[%s1667 + $0x88] sm:$0xff]
        %v1677 = vld [vmem:[%s1667 + $0x90] sm:$0xff]
        %v1678 = vld [vmem:[%s1667 + $0xa8] sm:$0xff]
        %v1679 = vld [vmem:[%s1667 + $0xb0] sm:$0xff]
        %v1680 = vld [vmem:[%s1667 + $0xc8] sm:$0xff]
        %v1681 = vld [vmem:[%s1667 + $0xd0] sm:$0xff]
        %v1682 = vld [vmem:[%s1667 + $0xe8] sm:$0xff]
        %v1683 = vld [vmem:[%s1667 + $0xf0] sm:$0xff]
        %v1684 = vld [vmem:[%s1667 + $0x108] sm:$0xff]
        %v1685 = vld [vmem:[%s1667 + $0x110] sm:$0xff]
        %v1686 = vld [vmem:[%s1667 + $0x128] sm:$0xff]
        %v1687 = vld [vmem:[%s1667 + $0x130] sm:$0xff]
        %v1688 = vld [vmem:[%s1667 + $0x148] sm:$0xff]
        %v1689 = vld [vmem:[%s1667 + $0x150] sm:$0xff]
        %v1690 = vld [vmem:[%s1667 + $0x168] sm:$0xff]
        %v1691 = vld [vmem:[%s1667 + $0x170] sm:$0xff]
        %v1692 = vld [vmem:[%s1667 + $0x188] sm:$0xff]
        %v1693 = vld [vmem:[%s1667 + $0x190] sm:$0xff]
        %v1694 = vld [vmem:[%s1667 + $0x1a8] sm:$0xff]
        %v1695 = vld [vmem:[%s1667 + $0x1b0] sm:$0xff]
        %v1696 = vld [vmem:[%s1667 + $0x1c8] sm:$0xff]
        %v1697 = vld [vmem:[%s1667 + $0x1d0] sm:$0xff]
        %v1698 = vld [vmem:[%s1667 + $0x1e8] sm:$0xff]
        %v1699 = vld [vmem:[%s1667 + $0x1f0] sm:$0xff]
        %v1700 = vsel 1, %v1668, -3e+38
        %v1701 = vsel 1, %v1669, -3e+38
        %v1702 = vsel 1, %v1670, -3e+38
        %v1703 = vsel 1, %v1671, -3e+38
        %v1704 = vsel 1, %v1672, -3e+38
        %v1705 = vsel 1, %v1673, -3e+38
        %v1706 = vsel 1, %v1674, -3e+38
        %v1707 = vsel 1, %v1675, -3e+38
        %v1708 = vsel 1, %v1676, -3e+38
        %v1709 = vsel 1, %v1677, -3e+38
        %v1710 = vsel 1, %v1678, -3e+38
        %v1711 = vsel 1, %v1679, -3e+38
        %v1712 = vsel 1, %v1680, -3e+38
        %v1713 = vsel 1, %v1681, -3e+38
        %v1714 = vsel 1, %v1682, -3e+38
        %v1715 = vsel 1, %v1683, -3e+38
        %v1716 = vsel 1, %v1684, -3e+38
        %v1717 = vsel 1, %v1685, -3e+38
        %v1718 = vsel 1, %v1686, -3e+38
        %v1719 = vsel 1, %v1687, -3e+38
        %v1720 = vsel 1, %v1688, -3e+38
        %v1721 = vsel 1, %v1689, -3e+38
        %v1722 = vsel 1, %v1690, -3e+38
        %v1723 = vsel 1, %v1691, -3e+38
        %v1724 = vsel 1, %v1692, -3e+38
        %v1725 = vsel 1, %v1693, -3e+38
        %v1726 = vsel 1, %v1694, -3e+38
        %v1727 = vsel 1, %v1695, -3e+38
        %v1728 = vsel 1, %v1696, -3e+38
        %v1729 = vsel 1, %v1697, -3e+38
        %v1730 = vsel 0, %v1698, -3e+38
        %v1731 = vsel 0, %v1699, -3e+38
        %s1732 = scalar_lea.vmem [#allocation2], 128
        %v1733 = vld [vmem:[%s1732 + $0x8] sm:$0xff]
        %v1734 = vld [vmem:[%s1732 + $0x10] sm:$0xff]
        %v1735 = vld [vmem:[%s1732 + $0x28] sm:$0xff]
        %v1736 = vld [vmem:[%s1732 + $0x30] sm:$0xff]
        %v1737 = vld [vmem:[%s1732 + $0x48] sm:$0xff]
        %v1738 = vld [vmem:[%s1732 + $0x50] sm:$0xff]
        %v1739 = vld [vmem:[%s1732 + $0x68] sm:$0xff]
        %v1740 = vld [vmem:[%s1732 + $0x70] sm:$0xff]
        %v1741 = vld [vmem:[%s1732 + $0x88] sm:$0xff]
        %v1742 = vld [vmem:[%s1732 + $0x90] sm:$0xff]
        %v1743 = vld [vmem:[%s1732 + $0xa8] sm:$0xff]
        %v1744 = vld [vmem:[%s1732 + $0xb0] sm:$0xff]
        %v1745 = vld [vmem:[%s1732 + $0xc8] sm:$0xff]
        %v1746 = vld [vmem:[%s1732 + $0xd0] sm:$0xff]
        %v1747 = vld [vmem:[%s1732 + $0xe8] sm:$0xff]
        %v1748 = vld [vmem:[%s1732 + $0xf0] sm:$0xff]
        %v1749 = vld [vmem:[%s1732 + $0x108] sm:$0xff]
        %v1750 = vld [vmem:[%s1732 + $0x110] sm:$0xff]
        %v1751 = vld [vmem:[%s1732 + $0x128] sm:$0xff]
        %v1752 = vld [vmem:[%s1732 + $0x130] sm:$0xff]
        %v1753 = vld [vmem:[%s1732 + $0x148] sm:$0xff]
        %v1754 = vld [vmem:[%s1732 + $0x150] sm:$0xff]
        %v1755 = vld [vmem:[%s1732 + $0x168] sm:$0xff]
        %v1756 = vld [vmem:[%s1732 + $0x170] sm:$0xff]
        %v1757 = vld [vmem:[%s1732 + $0x188] sm:$0xff]
        %v1758 = vld [vmem:[%s1732 + $0x190] sm:$0xff]
        %v1759 = vld [vmem:[%s1732 + $0x1a8] sm:$0xff]
        %v1760 = vld [vmem:[%s1732 + $0x1b0] sm:$0xff]
        %v1761 = vld [vmem:[%s1732 + $0x1c8] sm:$0xff]
        %v1762 = vld [vmem:[%s1732 + $0x1d0] sm:$0xff]
        %v1763 = vld [vmem:[%s1732 + $0x1e8] sm:$0xff]
        %v1764 = vld [vmem:[%s1732 + $0x1f0] sm:$0xff]
        %v1765 = vsel 1, %v1733, -3e+38
        %v1766 = vsel 1, %v1734, -3e+38
        %v1767 = vsel 1, %v1735, -3e+38
        %v1768 = vsel 1, %v1736, -3e+38
        %v1769 = vsel 1, %v1737, -3e+38
        %v1770 = vsel 1, %v1738, -3e+38
        %v1771 = vsel 1, %v1739, -3e+38
        %v1772 = vsel 1, %v1740, -3e+38
        %v1773 = vsel 1, %v1741, -3e+38
        %v1774 = vsel 1, %v1742, -3e+38
        %v1775 = vsel 1, %v1743, -3e+38
        %v1776 = vsel 1, %v1744, -3e+38
        %v1777 = vsel 1, %v1745, -3e+38
        %v1778 = vsel 1, %v1746, -3e+38
        %v1779 = vsel 1, %v1747, -3e+38
        %v1780 = vsel 1, %v1748, -3e+38
        %v1781 = vsel 1, %v1749, -3e+38
        %v1782 = vsel 1, %v1750, -3e+38
        %v1783 = vsel 1, %v1751, -3e+38
        %v1784 = vsel 1, %v1752, -3e+38
        %v1785 = vsel 1, %v1753, -3e+38
        %v1786 = vsel 1, %v1754, -3e+38
        %v1787 = vsel 1, %v1755, -3e+38
        %v1788 = vsel 1, %v1756, -3e+38
        %v1789 = vsel 1, %v1757, -3e+38
        %v1790 = vsel 1, %v1758, -3e+38
        %v1791 = vsel 1, %v1759, -3e+38
        %v1792 = vsel 1, %v1760, -3e+38
        %v1793 = vsel 0, %v1761, -3e+38
        %v1794 = vsel 0, %v1762, -3e+38
        %v1795 = vsel 0, %v1763, -3e+38
        %v1796 = vsel 0, %v1764, -3e+38
        %v1797 = vmax.f32 %v1700, %v1765
        %v1798 = vmax.f32 %v1701, %v1766
        %v1799 = vmax.f32 %v1702, %v1767
        %v1800 = vmax.f32 %v1703, %v1768
        %v1801 = vmax.f32 %v1704, %v1769
        %v1802 = vmax.f32 %v1705, %v1770
        %v1803 = vmax.f32 %v1706, %v1771
        %v1804 = vmax.f32 %v1707, %v1772
        %v1805 = vmax.f32 %v1708, %v1773
        %v1806 = vmax.f32 %v1709, %v1774
        %v1807 = vmax.f32 %v1710, %v1775
        %v1808 = vmax.f32 %v1711, %v1776
        %v1809 = vmax.f32 %v1712, %v1777
        %v1810 = vmax.f32 %v1713, %v1778
        %v1811 = vmax.f32 %v1714, %v1779
        %v1812 = vmax.f32 %v1715, %v1780
        %v1813 = vmax.f32 %v1716, %v1781
        %v1814 = vmax.f32 %v1717, %v1782
        %v1815 = vmax.f32 %v1718, %v1783
        %v1816 = vmax.f32 %v1719, %v1784
        %v1817 = vmax.f32 %v1720, %v1785
        %v1818 = vmax.f32 %v1721, %v1786
        %v1819 = vmax.f32 %v1722, %v1787
        %v1820 = vmax.f32 %v1723, %v1788
        %v1821 = vmax.f32 %v1724, %v1789
        %v1822 = vmax.f32 %v1725, %v1790
        %v1823 = vmax.f32 %v1726, %v1791
        %v1824 = vmax.f32 %v1727, %v1792
        %v1825 = vmax.f32 %v1728, %v1793
        %v1826 = vmax.f32 %v1729, %v1794
        %v1827 = vmax.f32 %v1730, %v1795
        %v1828 = vmax.f32 %v1731, %v1796
        %v1829 = vmax.f32 %v1635, %v1797
        %v1830 = vmax.f32 %v1636, %v1798
        %v1831 = vmax.f32 %v1637, %v1799
        %v1832 = vmax.f32 %v1638, %v1800
        %v1833 = vmax.f32 %v1639, %v1801
        %v1834 = vmax.f32 %v1640, %v1802
        %v1835 = vmax.f32 %v1641, %v1803
        %v1836 = vmax.f32 %v1642, %v1804
        %v1837 = vmax.f32 %v1643, %v1805
        %v1838 = vmax.f32 %v1644, %v1806
        %v1839 = vmax.f32 %v1645, %v1807
        %v1840 = vmax.f32 %v1646, %v1808
        %v1841 = vmax.f32 %v1647, %v1809
        %v1842 = vmax.f32 %v1648, %v1810
        %v1843 = vmax.f32 %v1649, %v1811
        %v1844 = vmax.f32 %v1650, %v1812
        %v1845 = vmax.f32 %v1651, %v1813
        %v1846 = vmax.f32 %v1652, %v1814
        %v1847 = vmax.f32 %v1653, %v1815
        %v1848 = vmax.f32 %v1654, %v1816
        %v1849 = vmax.f32 %v1655, %v1817
        %v1850 = vmax.f32 %v1656, %v1818
        %v1851 = vmax.f32 %v1657, %v1819
        %v1852 = vmax.f32 %v1658, %v1820
        %v1853 = vmax.f32 %v1659, %v1821
        %v1854 = vmax.f32 %v1660, %v1822
        %v1855 = vmax.f32 %v1661, %v1823
        %v1856 = vmax.f32 %v1662, %v1824
        %v1857 = vmax.f32 %v1663, %v1825
        %v1858 = vmax.f32 %v1664, %v1826
        %v1859 = vmax.f32 %v1665, %v1827
        %v1860 = vmax.f32 %v1666, %v1828
        %v1861 = vpack.c.bf16 %v1830, %v1829
        %v1862 = vpack.c.bf16 %v1832, %v1831
        %v1863 = vpack.c.bf16 %v1834, %v1833
        %v1864 = vpack.c.bf16 %v1836, %v1835
        %v1865 = vpack.c.bf16 %v1838, %v1837
        %v1866 = vpack.c.bf16 %v1840, %v1839
        %v1867 = vpack.c.bf16 %v1842, %v1841
        %v1868 = vpack.c.bf16 %v1844, %v1843
        %v1869 = vpack.c.bf16 %v1846, %v1845
        %v1870 = vpack.c.bf16 %v1848, %v1847
        %v1871 = vpack.c.bf16 %v1850, %v1849
        %v1872 = vpack.c.bf16 %v1852, %v1851
        %v1873 = vpack.c.bf16 %v1854, %v1853
        %v1874 = vpack.c.bf16 %v1856, %v1855
        %v1875 = vpack.c.bf16 %v1858, %v1857
        %v1876 = vpack.c.bf16 %v1860, %v1859
        %v1877 = vld [vmem:[#allocation9] sm:$0xf]
        %v1878 = vld [vmem:[#allocation9 + $0x4] sm:$0xf]
        %v1879 = vld [vmem:[#allocation9 + $0x8] sm:$0xf]
        %v1880 = vld [vmem:[#allocation9 + $0xc] sm:$0xf]
        %v1881 = vld [vmem:[#allocation9 + $0x10] sm:$0xf]
        %v1882 = vld [vmem:[#allocation9 + $0x14] sm:$0xf]
        %v1883 = vld [vmem:[#allocation9 + $0x18] sm:$0xf]
        %v1884 = vld [vmem:[#allocation9 + $0x1c] sm:$0xf]
        %v1885 = vld [vmem:[#allocation9 + $0x20] sm:$0xf]
        %v1886 = vld [vmem:[#allocation9 + $0x24] sm:$0xf]
        %v1887 = vld [vmem:[#allocation9 + $0x28] sm:$0xf]
        %v1888 = vld [vmem:[#allocation9 + $0x2c] sm:$0xf]
        %v1889 = vld [vmem:[#allocation9 + $0x30] sm:$0xf]
        %v1890 = vld [vmem:[#allocation9 + $0x34] sm:$0xf]
        %v1891 = vld [vmem:[#allocation9 + $0x38] sm:$0xf]
        %v1892 = vld [vmem:[#allocation9 + $0x3c] sm:$0xf]
        %v1909 = vunpack.c.l.b16 %v1877
        %v1910 = vunpack.c.l.b16 %v1878
        %v1911 = vunpack.c.l.b16 %v1879
        %v1912 = vunpack.c.l.b16 %v1880
        %v1913 = vunpack.c.l.b16 %v1881
        %v1914 = vunpack.c.l.b16 %v1882
        %v1915 = vunpack.c.l.b16 %v1883
        %v1916 = vunpack.c.l.b16 %v1884
        %v1917 = vunpack.c.l.b16 %v1885
        %v1918 = vunpack.c.l.b16 %v1886
        %v1919 = vunpack.c.l.b16 %v1887
        %v1920 = vunpack.c.l.b16 %v1888
        %v1921 = vunpack.c.l.b16 %v1889
        %v1922 = vunpack.c.l.b16 %v1890
        %v1923 = vunpack.c.l.b16 %v1891
        %v1924 = vunpack.c.l.b16 %v1892
        %v1925 = vpack.c.b16 %v1910, %v1909
        %v1926 = vpack.c.b16 %v1912, %v1911
        %v1927 = vpack.c.b16 %v1914, %v1913
        %v1928 = vpack.c.b16 %v1916, %v1915
        %v1929 = vpack.c.b16 %v1918, %v1917
        %v1930 = vpack.c.b16 %v1920, %v1919
        %v1931 = vpack.c.b16 %v1922, %v1921
        %v1932 = vpack.c.b16 %v1924, %v1923
        %1941 = vmatprep.subr.bf16.mxu0 0
        %1942 = vmatpush1.bf16.msra.mxu0 %v1932
        %1943 = vmatprep.subr.bf16.mxu0 0
        %1944 = vmatpush1.bf16.msra.mxu0 %v1931
        %1945 = vmatprep.subr.bf16.mxu0 0
        %1946 = vmatpush1.bf16.msra.mxu0 %v1930
        %1947 = vmatprep.subr.bf16.mxu0 0
        %1948 = vmatpush1.bf16.msra.mxu0 %v1929
        %1949 = vmatprep.subr.bf16.mxu0 0
        %1950 = vmatpush1.bf16.msra.mxu0 %v1928
        %1951 = vmatprep.subr.bf16.mxu0 0
        %1952 = vmatpush1.bf16.msra.mxu0 %v1927
        %1953 = vmatprep.subr.bf16.mxu0 0
        %1954 = vmatpush1.bf16.msra.mxu0 %v1926
        %1955 = vmatprep.subr.bf16.mxu0 0
        %1956 = vmatpush1.bf16.msra.mxu0 %v1925
        %1957 = vmatprep.subr.bf16.mxu0 0
        %1958 = vmatpush2.bf16.msra.mxu0 0
        %1959 = vmatprep.subr.bf16.mxu0 0
        %1960 = vmatpush2.bf16.msra.mxu0 0
        %1961 = vmatprep.subr.bf16.mxu0 0
        %1962 = vmatpush2.bf16.msra.mxu0 0
        %1963 = vmatprep.subr.bf16.mxu0 0
        %1964 = vmatpush2.bf16.msra.mxu0 0
        %1965 = vmatprep.subr.bf16.mxu0 0
        %1966 = vmatpush2.bf16.msra.mxu0 0
        %1967 = vmatprep.subr.bf16.mxu0 0
        %1968 = vmatpush2.bf16.msra.mxu0 0
        %1969 = vmatprep.subr.bf16.mxu0 0
        %1970 = vmatpush2.bf16.msra.mxu0 0
        %1971 = vmatprep.subr.bf16.mxu0 0
        %1972 = vmatpush2.bf16.msra.mxu0 0
        %1973 = vmatprep.mubr.bf16.mxu0 0
        %1974 = vmatmul.mubr.bf16.gmra.mxu0 %v1861
        %v1975 = vpop.f32.mrf.mxu0
        %v1976 = vadd.f32 0.0, %v1975
        %v1977 = vpop.f32.mrf.mxu0
        %v1978 = vpop.f32.mrf.mxu0
        %v1979 = vadd.f32 0.0, %v1978
        %v1980 = vpop.f32.mrf.mxu0
        %1981 = vmatprep.mubr.bf16.mxu0 0
        %1982 = vmatmul.mubr.bf16.gmra.mxu0 %v1862
        %v1983 = vpop.f32.mrf.mxu0
        %v1984 = vadd.f32 0.0, %v1983
        %v1985 = vpop.f32.mrf.mxu0
        %v1986 = vpop.f32.mrf.mxu0
        %v1987 = vadd.f32 0.0, %v1986
        %v1988 = vpop.f32.mrf.mxu0
        %1989 = vmatprep.mubr.bf16.mxu0 0
        %1990 = vmatmul.mubr.bf16.gmra.mxu0 %v1863
        %v1991 = vpop.f32.mrf.mxu0
        %v1992 = vadd.f32 0.0, %v1991
        %v1993 = vpop.f32.mrf.mxu0
        %v1994 = vpop.f32.mrf.mxu0
        %v1995 = vadd.f32 0.0, %v1994
        %v1996 = vpop.f32.mrf.mxu0
        %1997 = vmatprep.mubr.bf16.mxu0 0
        %1998 = vmatmul.mubr.bf16.gmra.mxu0 %v1864
        %v1999 = vpop.f32.mrf.mxu0
        %v2000 = vadd.f32 0.0, %v1999
        %v2001 = vpop.f32.mrf.mxu0
        %v2002 = vpop.f32.mrf.mxu0
        %v2003 = vadd.f32 0.0, %v2002
        %v2004 = vpop.f32.mrf.mxu0
        %2005 = vmatprep.mubr.bf16.mxu0 0
        %2006 = vmatmul.mubr.bf16.gmra.mxu0 %v1865
        %v2007 = vpop.f32.mrf.mxu0
        %v2008 = vadd.f32 0.0, %v2007
        %v2009 = vpop.f32.mrf.mxu0
        %v2010 = vpop.f32.mrf.mxu0
        %v2011 = vadd.f32 0.0, %v2010
        %v2012 = vpop.f32.mrf.mxu0
        %2013 = vmatprep.mubr.bf16.mxu0 0
        %2014 = vmatmul.mubr.bf16.gmra.mxu0 %v1866
        %v2015 = vpop.f32.mrf.mxu0
        %v2016 = vadd.f32 0.0, %v2015
        %v2017 = vpop.f32.mrf.mxu0
        %v2018 = vpop.f32.mrf.mxu0
        %v2019 = vadd.f32 0.0, %v2018
        %v2020 = vpop.f32.mrf.mxu0
        %2021 = vmatprep.mubr.bf16.mxu0 0
        %2022 = vmatmul.mubr.bf16.gmra.mxu0 %v1867
        %v2023 = vpop.f32.mrf.mxu0
        %v2024 = vadd.f32 0.0, %v2023
        %v2025 = vpop.f32.mrf.mxu0
        %v2026 = vpop.f32.mrf.mxu0
        %v2027 = vadd.f32 0.0, %v2026
        %v2028 = vpop.f32.mrf.mxu0
        %2029 = vmatprep.mubr.bf16.mxu0 0
        %2030 = vmatmul.mubr.bf16.gmra.mxu0 %v1868
        %v2031 = vpop.f32.mrf.mxu0
        %v2032 = vadd.f32 0.0, %v2031
        %v2033 = vpop.f32.mrf.mxu0
        %v2034 = vpop.f32.mrf.mxu0
        %v2035 = vadd.f32 0.0, %v2034
        %v2036 = vpop.f32.mrf.mxu0
        %2037 = vmatprep.mubr.bf16.mxu0 0
        %2038 = vmatmul.mubr.bf16.gmra.mxu0 %v1869
        %v2039 = vpop.f32.mrf.mxu0
        %v2040 = vadd.f32 0.0, %v2039
        %v2041 = vpop.f32.mrf.mxu0
        %v2042 = vpop.f32.mrf.mxu0
        %v2043 = vadd.f32 0.0, %v2042
        %v2044 = vpop.f32.mrf.mxu0
        %2045 = vmatprep.mubr.bf16.mxu0 0
        %2046 = vmatmul.mubr.bf16.gmra.mxu0 %v1870
        %v2047 = vpop.f32.mrf.mxu0
        %v2048 = vadd.f32 0.0, %v2047
        %v2049 = vpop.f32.mrf.mxu0
        %v2050 = vpop.f32.mrf.mxu0
        %v2051 = vadd.f32 0.0, %v2050
        %v2052 = vpop.f32.mrf.mxu0
        %2053 = vmatprep.mubr.bf16.mxu0 0
        %2054 = vmatmul.mubr.bf16.gmra.mxu0 %v1871
        %v2055 = vpop.f32.mrf.mxu0
        %v2056 = vadd.f32 0.0, %v2055
        %v2057 = vpop.f32.mrf.mxu0
        %v2058 = vpop.f32.mrf.mxu0
        %v2059 = vadd.f32 0.0, %v2058
        %v2060 = vpop.f32.mrf.mxu0
        %2061 = vmatprep.mubr.bf16.mxu0 0
        %2062 = vmatmul.mubr.bf16.gmra.mxu0 %v1872
        %v2063 = vpop.f32.mrf.mxu0
        %v2064 = vadd.f32 0.0, %v2063
        %v2065 = vpop.f32.mrf.mxu0
        %v2066 = vpop.f32.mrf.mxu0
        %v2067 = vadd.f32 0.0, %v2066
        %v2068 = vpop.f32.mrf.mxu0
        %2069 = vmatprep.mubr.bf16.mxu0 0
        %2070 = vmatmul.mubr.bf16.gmra.mxu0 %v1873
        %v2071 = vpop.f32.mrf.mxu0
        %v2072 = vadd.f32 0.0, %v2071
        %v2073 = vpop.f32.mrf.mxu0
        %v2074 = vpop.f32.mrf.mxu0
        %v2075 = vadd.f32 0.0, %v2074
        %v2076 = vpop.f32.mrf.mxu0
        %2077 = vmatprep.mubr.bf16.mxu0 0
        %2078 = vmatmul.mubr.bf16.gmra.mxu0 %v1874
        %v2079 = vpop.f32.mrf.mxu0
        %v2080 = vadd.f32 0.0, %v2079
        %v2081 = vpop.f32.mrf.mxu0
        %v2082 = vpop.f32.mrf.mxu0
        %v2083 = vadd.f32 0.0, %v2082
        %v2084 = vpop.f32.mrf.mxu0
        %2085 = vmatprep.mubr.bf16.mxu0 0
        %2086 = vmatmul.mubr.bf16.gmra.mxu0 %v1875
        %v2087 = vpop.f32.mrf.mxu0
        %v2088 = vadd.f32 0.0, %v2087
        %v2089 = vpop.f32.mrf.mxu0
        %v2090 = vpop.f32.mrf.mxu0
        %v2091 = vadd.f32 0.0, %v2090
        %v2092 = vpop.f32.mrf.mxu0
        %2093 = vmatprep.mubr.bf16.mxu0 0
        %2094 = vmatmul.mubr.bf16.gmra.mxu0 %v1876
        %v2095 = vpop.f32.mrf.mxu0
        %v2096 = vadd.f32 0.0, %v2095
        %v2097 = vpop.f32.mrf.mxu0
        %v2098 = vpop.f32.mrf.mxu0
        %v2099 = vadd.f32 0.0, %v2098
        %v2100 = vpop.f32.mrf.mxu0
        %2101 = vdwg.mxu0
        %v2118 = vunpack.c.l.b16 %v1009
        %v2119 = vunpack.c.l.b16 %v1010
        %v2120 = vunpack.c.l.b16 %v1011
        %v2121 = vunpack.c.l.b16 %v1012
        %v2122 = vunpack.c.l.b16 %v1013
        %v2123 = vunpack.c.l.b16 %v1014
        %v2124 = vunpack.c.l.b16 %v1015
        %v2125 = vunpack.c.l.b16 %v1016
        %v2126 = vunpack.c.l.b16 %v1017
        %v2127 = vunpack.c.l.b16 %v1018
        %v2128 = vunpack.c.l.b16 %v1019
        %v2129 = vunpack.c.l.b16 %v1020
        %v2130 = vunpack.c.l.b16 %v1021
        %v2131 = vunpack.c.l.b16 %v1022
        %v2132 = vunpack.c.l.b16 %v1023
        %v2133 = vunpack.c.l.b16 %v1024
        %v2134 = vpack.c.b16 %v2119, %v2118
        %v2135 = vpack.c.b16 %v2121, %v2120
        %v2136 = vpack.c.b16 %v2123, %v2122
        %v2137 = vpack.c.b16 %v2125, %v2124
        %v2138 = vpack.c.b16 %v2127, %v2126
        %v2139 = vpack.c.b16 %v2129, %v2128
        %v2140 = vpack.c.b16 %v2131, %v2130
        %v2141 = vpack.c.b16 %v2133, %v2132
        %2150 = vmatprep.subr.bf16.mxu0 0
        %2151 = vmatpush1.bf16.msra.mxu0 %v2141
        %2152 = vmatprep.subr.bf16.mxu0 0
        %2153 = vmatpush1.bf16.msra.mxu0 %v2140
        %2154 = vmatprep.subr.bf16.mxu0 0
        %2155 = vmatpush1.bf16.msra.mxu0 %v2139
        %2156 = vmatprep.subr.bf16.mxu0 0
        %2157 = vmatpush1.bf16.msra.mxu0 %v2138
        %2158 = vmatprep.subr.bf16.mxu0 0
        %2159 = vmatpush1.bf16.msra.mxu0 %v2137
        %2160 = vmatprep.subr.bf16.mxu0 0
        %2161 = vmatpush1.bf16.msra.mxu0 %v2136
        %2162 = vmatprep.subr.bf16.mxu0 0
        %2163 = vmatpush1.bf16.msra.mxu0 %v2135
        %2164 = vmatprep.subr.bf16.mxu0 0
        %2165 = vmatpush1.bf16.msra.mxu0 %v2134
        %2166 = vmatprep.subr.bf16.mxu0 0
        %2167 = vmatpush2.bf16.msra.mxu0 0
        %2168 = vmatprep.subr.bf16.mxu0 0
        %2169 = vmatpush2.bf16.msra.mxu0 0
        %2170 = vmatprep.subr.bf16.mxu0 0
        %2171 = vmatpush2.bf16.msra.mxu0 0
        %2172 = vmatprep.subr.bf16.mxu0 0
        %2173 = vmatpush2.bf16.msra.mxu0 0
        %2174 = vmatprep.subr.bf16.mxu0 0
        %2175 = vmatpush2.bf16.msra.mxu0 0
        %2176 = vmatprep.subr.bf16.mxu0 0
        %2177 = vmatpush2.bf16.msra.mxu0 0
        %2178 = vmatprep.subr.bf16.mxu0 0
        %2179 = vmatpush2.bf16.msra.mxu0 0
        %2180 = vmatprep.subr.bf16.mxu0 0
        %2181 = vmatpush2.bf16.msra.mxu0 0
        %2182 = vmatprep.mubr.bf16.mxu0 0
        %2183 = vmatmul.mubr.bf16.gmra.mxu0 %v993
        %v2184 = vpop.f32.mrf.mxu0
        %v2185 = vadd.f32 %v1976, %v2184
        %v2186 = vpop.f32.mrf.mxu0
        %v2187 = vpop.f32.mrf.mxu0
        %v2188 = vadd.f32 %v1979, %v2187
        %v2189 = vpop.f32.mrf.mxu0
        %2190 = vmatprep.mubr.bf16.mxu0 0
        %2191 = vmatmul.mubr.bf16.gmra.mxu0 %v994
        %v2192 = vpop.f32.mrf.mxu0
        %v2193 = vadd.f32 %v1984, %v2192
        %v2194 = vpop.f32.mrf.mxu0
        %v2195 = vpop.f32.mrf.mxu0
        %v2196 = vadd.f32 %v1987, %v2195
        %v2197 = vpop.f32.mrf.mxu0
        %2198 = vmatprep.mubr.bf16.mxu0 0
        %2199 = vmatmul.mubr.bf16.gmra.mxu0 %v995
        %v2200 = vpop.f32.mrf.mxu0
        %v2201 = vadd.f32 %v1992, %v2200
        %v2202 = vpop.f32.mrf.mxu0
        %v2203 = vpop.f32.mrf.mxu0
        %v2204 = vadd.f32 %v1995, %v2203
        %v2205 = vpop.f32.mrf.mxu0
        %2206 = vmatprep.mubr.bf16.mxu0 0
        %2207 = vmatmul.mubr.bf16.gmra.mxu0 %v996
        %v2208 = vpop.f32.mrf.mxu0
        %v2209 = vadd.f32 %v2000, %v2208
        %v2210 = vpop.f32.mrf.mxu0
        %v2211 = vpop.f32.mrf.mxu0
        %v2212 = vadd.f32 %v2003, %v2211
        %v2213 = vpop.f32.mrf.mxu0
        %2214 = vmatprep.mubr.bf16.mxu0 0
        %2215 = vmatmul.mubr.bf16.gmra.mxu0 %v997
        %v2216 = vpop.f32.mrf.mxu0
        %v2217 = vadd.f32 %v2008, %v2216
        %v2218 = vpop.f32.mrf.mxu0
        %v2219 = vpop.f32.mrf.mxu0
        %v2220 = vadd.f32 %v2011, %v2219
        %v2221 = vpop.f32.mrf.mxu0
        %2222 = vmatprep.mubr.bf16.mxu0 0
        %2223 = vmatmul.mubr.bf16.gmra.mxu0 %v998
        %v2224 = vpop.f32.mrf.mxu0
        %v2225 = vadd.f32 %v2016, %v2224
        %v2226 = vpop.f32.mrf.mxu0
        %v2227 = vpop.f32.mrf.mxu0
        %v2228 = vadd.f32 %v2019, %v2227
        %v2229 = vpop.f32.mrf.mxu0
        %2230 = vmatprep.mubr.bf16.mxu0 0
        %2231 = vmatmul.mubr.bf16.gmra.mxu0 %v999
        %v2232 = vpop.f32.mrf.mxu0
        %v2233 = vadd.f32 %v2024, %v2232
        %v2234 = vpop.f32.mrf.mxu0
        %v2235 = vpop.f32.mrf.mxu0
        %v2236 = vadd.f32 %v2027, %v2235
        %v2237 = vpop.f32.mrf.mxu0
        %2238 = vmatprep.mubr.bf16.mxu0 0
        %2239 = vmatmul.mubr.bf16.gmra.mxu0 %v1000
        %v2240 = vpop.f32.mrf.mxu0
        %v2241 = vadd.f32 %v2032, %v2240
        %v2242 = vpop.f32.mrf.mxu0
        %v2243 = vpop.f32.mrf.mxu0
        %v2244 = vadd.f32 %v2035, %v2243
        %v2245 = vpop.f32.mrf.mxu0
        %2246 = vmatprep.mubr.bf16.mxu0 0
        %2247 = vmatmul.mubr.bf16.gmra.mxu0 %v1001
        %v2248 = vpop.f32.mrf.mxu0
        %v2249 = vadd.f32 %v2040, %v2248
        %v2250 = vpop.f32.mrf.mxu0
        %v2251 = vpop.f32.mrf.mxu0
        %v2252 = vadd.f32 %v2043, %v2251
        %v2253 = vpop.f32.mrf.mxu0
        %2254 = vmatprep.mubr.bf16.mxu0 0
        %2255 = vmatmul.mubr.bf16.gmra.mxu0 %v1002
        %v2256 = vpop.f32.mrf.mxu0
        %v2257 = vadd.f32 %v2048, %v2256
        %v2258 = vpop.f32.mrf.mxu0
        %v2259 = vpop.f32.mrf.mxu0
        %v2260 = vadd.f32 %v2051, %v2259
        %v2261 = vpop.f32.mrf.mxu0
        %2262 = vmatprep.mubr.bf16.mxu0 0
        %2263 = vmatmul.mubr.bf16.gmra.mxu0 %v1003
        %v2264 = vpop.f32.mrf.mxu0
        %v2265 = vadd.f32 %v2056, %v2264
        %v2266 = vpop.f32.mrf.mxu0
        %v2267 = vpop.f32.mrf.mxu0
        %v2268 = vadd.f32 %v2059, %v2267
        %v2269 = vpop.f32.mrf.mxu0
        %2270 = vmatprep.mubr.bf16.mxu0 0
        %2271 = vmatmul.mubr.bf16.gmra.mxu0 %v1004
        %v2272 = vpop.f32.mrf.mxu0
        %v2273 = vadd.f32 %v2064, %v2272
        %v2274 = vpop.f32.mrf.mxu0
        %v2275 = vpop.f32.mrf.mxu0
        %v2276 = vadd.f32 %v2067, %v2275
        %v2277 = vpop.f32.mrf.mxu0
        %2278 = vmatprep.mubr.bf16.mxu0 0
        %2279 = vmatmul.mubr.bf16.gmra.mxu0 %v1005
        %v2280 = vpop.f32.mrf.mxu0
        %v2281 = vadd.f32 %v2072, %v2280
        %v2282 = vpop.f32.mrf.mxu0
        %v2283 = vpop.f32.mrf.mxu0
        %v2284 = vadd.f32 %v2075, %v2283
        %v2285 = vpop.f32.mrf.mxu0
        %2286 = vmatprep.mubr.bf16.mxu0 0
        %2287 = vmatmul.mubr.bf16.gmra.mxu0 %v1006
        %v2288 = vpop.f32.mrf.mxu0
        %v2289 = vadd.f32 %v2080, %v2288
        %v2290 = vpop.f32.mrf.mxu0
        %v2291 = vpop.f32.mrf.mxu0
        %v2292 = vadd.f32 %v2083, %v2291
        %v2293 = vpop.f32.mrf.mxu0
        %2294 = vmatprep.mubr.bf16.mxu0 0
        %2295 = vmatmul.mubr.bf16.gmra.mxu0 %v1007
        %v2296 = vpop.f32.mrf.mxu0
        %v2297 = vadd.f32 %v2088, %v2296
        %v2298 = vpop.f32.mrf.mxu0
        %v2299 = vpop.f32.mrf.mxu0
        %v2300 = vadd.f32 %v2091, %v2299
        %v2301 = vpop.f32.mrf.mxu0
        %2302 = vmatprep.mubr.bf16.mxu0 0
        %2303 = vmatmul.mubr.bf16.gmra.mxu0 %v1008
        %v2304 = vpop.f32.mrf.mxu0
        %v2305 = vadd.f32 %v2096, %v2304
        %v2306 = vpop.f32.mrf.mxu0
        %v2307 = vpop.f32.mrf.mxu0
        %v2308 = vadd.f32 %v2099, %v2307
        %v2309 = vpop.f32.mrf.mxu0
        %2310 = vdwg.mxu0
        %2311 = vst [vmem:[%s1025 + $0x8] sm:$0xff] %v1829
        %2312 = vst [vmem:[%s1025 + $0x10] sm:$0xff] %v1830
        %2313 = vst [vmem:[%s1025 + $0x28] sm:$0xff] %v1831
        %2314 = vst [vmem:[%s1025 + $0x30] sm:$0xff] %v1832
        %2315 = vst [vmem:[%s1025 + $0x48] sm:$0xff] %v1833
        %2316 = vst [vmem:[%s1025 + $0x50] sm:$0xff] %v1834
        %2317 = vst [vmem:[%s1025 + $0x68] sm:$0xff] %v1835
        %2318 = vst [vmem:[%s1025 + $0x70] sm:$0xff] %v1836
        %2319 = vst [vmem:[%s1025 + $0x88] sm:$0xff] %v1837
        %2320 = vst [vmem:[%s1025 + $0x90] sm:$0xff] %v1838
        %2321 = vst [vmem:[%s1025 + $0xa8] sm:$0xff] %v1839
        %2322 = vst [vmem:[%s1025 + $0xb0] sm:$0xff] %v1840
        %2323 = vst [vmem:[%s1025 + $0xc8] sm:$0xff] %v1841
        %2324 = vst [vmem:[%s1025 + $0xd0] sm:$0xff] %v1842
        %2325 = vst [vmem:[%s1025 + $0xe8] sm:$0xff] %v1843
        %2326 = vst [vmem:[%s1025 + $0xf0] sm:$0xff] %v1844
        %2327 = vst [vmem:[%s1025 + $0x108] sm:$0xff] %v1845
        %2328 = vst [vmem:[%s1025 + $0x110] sm:$0xff] %v1846
        %2329 = vst [vmem:[%s1025 + $0x128] sm:$0xff] %v1847
        %2330 = vst [vmem:[%s1025 + $0x130] sm:$0xff] %v1848
        %2331 = vst [vmem:[%s1025 + $0x148] sm:$0xff] %v1849
        %2332 = vst [vmem:[%s1025 + $0x150] sm:$0xff] %v1850
        %2333 = vst [vmem:[%s1025 + $0x168] sm:$0xff] %v1851
        %2334 = vst [vmem:[%s1025 + $0x170] sm:$0xff] %v1852
        %2335 = vst [vmem:[%s1025 + $0x188] sm:$0xff] %v1853
        %2336 = vst [vmem:[%s1025 + $0x190] sm:$0xff] %v1854
        %2337 = vst [vmem:[%s1025 + $0x1a8] sm:$0xff] %v1855
        %2338 = vst [vmem:[%s1025 + $0x1b0] sm:$0xff] %v1856
        %2339 = vst [vmem:[%s1025 + $0x1c8] sm:$0xff] %v1857
        %2340 = vst [vmem:[%s1025 + $0x1d0] sm:$0xff] %v1858
        %2341 = vst [vmem:[%s1025 + $0x1e8] sm:$0xff] %v1859
        %2342 = vst [vmem:[%s1025 + $0x1f0] sm:$0xff] %v1860
        %v2343 = vld [vmem:[%s1025 + $0x6] sm:$0xff]
        %v2344 = vld [vmem:[%s1025 + $0xe] sm:$0xff]
        %v2345 = vld [vmem:[%s1025 + $0x26] sm:$0xff]
        %v2346 = vld [vmem:[%s1025 + $0x2e] sm:$0xff]
        %v2347 = vld [vmem:[%s1025 + $0x46] sm:$0xff]
        %v2348 = vld [vmem:[%s1025 + $0x4e] sm:$0xff]
        %v2349 = vld [vmem:[%s1025 + $0x66] sm:$0xff]
        %v2350 = vld [vmem:[%s1025 + $0x6e] sm:$0xff]
        %v2351 = vld [vmem:[%s1025 + $0x86] sm:$0xff]
        %v2352 = vld [vmem:[%s1025 + $0x8e] sm:$0xff]
        %v2353 = vld [vmem:[%s1025 + $0xa6] sm:$0xff]
        %v2354 = vld [vmem:[%s1025 + $0xae] sm:$0xff]
        %v2355 = vld [vmem:[%s1025 + $0xc6] sm:$0xff]
        %v2356 = vld [vmem:[%s1025 + $0xce] sm:$0xff]
        %v2357 = vld [vmem:[%s1025 + $0xe6] sm:$0xff]
        %v2358 = vld [vmem:[%s1025 + $0xee] sm:$0xff]
        %v2359 = vld [vmem:[%s1025 + $0x106] sm:$0xff]
        %v2360 = vld [vmem:[%s1025 + $0x10e] sm:$0xff]
        %v2361 = vld [vmem:[%s1025 + $0x126] sm:$0xff]
        %v2362 = vld [vmem:[%s1025 + $0x12e] sm:$0xff]
        %v2363 = vld [vmem:[%s1025 + $0x146] sm:$0xff]
        %v2364 = vld [vmem:[%s1025 + $0x14e] sm:$0xff]
        %v2365 = vld [vmem:[%s1025 + $0x166] sm:$0xff]
        %v2366 = vld [vmem:[%s1025 + $0x16e] sm:$0xff]
        %v2367 = vld [vmem:[%s1025 + $0x186] sm:$0xff]
        %v2368 = vld [vmem:[%s1025 + $0x18e] sm:$0xff]
        %v2369 = vld [vmem:[%s1025 + $0x1a6] sm:$0xff]
        %v2370 = vld [vmem:[%s1025 + $0x1ae] sm:$0xff]
        %v2371 = vld [vmem:[%s1025 + $0x1c6] sm:$0xff]
        %v2372 = vld [vmem:[%s1025 + $0x1ce] sm:$0xff]
        %v2373 = vld [vmem:[%s1025 + $0x1e6] sm:$0xff]
        %v2374 = vld [vmem:[%s1025 + $0x1ee] sm:$0xff]
        %v2375 = vsel %vm985, %v2343, -3e+38
        %v2376 = vsel %vm986, %v2344, -3e+38
        %v2377 = vsel %vm985, %v2345, -3e+38
        %v2378 = vsel %vm986, %v2346, -3e+38
        %v2379 = vsel %vm985, %v2347, -3e+38
        %v2380 = vsel %vm986, %v2348, -3e+38
        %v2381 = vsel %vm985, %v2349, -3e+38
        %v2382 = vsel %vm986, %v2350, -3e+38
        %v2383 = vsel %vm985, %v2351, -3e+38
        %v2384 = vsel %vm986, %v2352, -3e+38
        %v2385 = vsel %vm985, %v2353, -3e+38
        %v2386 = vsel %vm986, %v2354, -3e+38
        %v2387 = vsel %vm985, %v2355, -3e+38
        %v2388 = vsel %vm986, %v2356, -3e+38
        %v2389 = vsel %vm985, %v2357, -3e+38
        %v2390 = vsel %vm986, %v2358, -3e+38
        %v2391 = vsel %vm985, %v2359, -3e+38
        %v2392 = vsel %vm986, %v2360, -3e+38
        %v2393 = vsel %vm985, %v2361, -3e+38
        %v2394 = vsel %vm986, %v2362, -3e+38
        %v2395 = vsel %vm985, %v2363, -3e+38
        %v2396 = vsel %vm986, %v2364, -3e+38
        %v2397 = vsel %vm985, %v2365, -3e+38
        %v2398 = vsel %vm986, %v2366, -3e+38
        %v2399 = vsel %vm985, %v2367, -3e+38
        %v2400 = vsel %vm986, %v2368, -3e+38
        %v2401 = vsel %vm985, %v2369, -3e+38
        %v2402 = vsel %vm986, %v2370, -3e+38
        %v2403 = vsel %vm985, %v2371, -3e+38
        %v2404 = vsel %vm986, %v2372, -3e+38
        %v2405 = vsel %vm985, %v2373, -3e+38
        %v2406 = vsel %vm986, %v2374, -3e+38
        %v2407 = vld [vmem:[%s1025 + $0x7] sm:$0xff]
        %v2408 = vld [vmem:[%s1025 + $0xf] sm:$0xff]
        %v2409 = vld [vmem:[%s1025 + $0x27] sm:$0xff]
        %v2410 = vld [vmem:[%s1025 + $0x2f] sm:$0xff]
        %v2411 = vld [vmem:[%s1025 + $0x47] sm:$0xff]
        %v2412 = vld [vmem:[%s1025 + $0x4f] sm:$0xff]
        %v2413 = vld [vmem:[%s1025 + $0x67] sm:$0xff]
        %v2414 = vld [vmem:[%s1025 + $0x6f] sm:$0xff]
        %v2415 = vld [vmem:[%s1025 + $0x87] sm:$0xff]
        %v2416 = vld [vmem:[%s1025 + $0x8f] sm:$0xff]
        %v2417 = vld [vmem:[%s1025 + $0xa7] sm:$0xff]
        %v2418 = vld [vmem:[%s1025 + $0xaf] sm:$0xff]
        %v2419 = vld [vmem:[%s1025 + $0xc7] sm:$0xff]
        %v2420 = vld [vmem:[%s1025 + $0xcf] sm:$0xff]
        %v2421 = vld [vmem:[%s1025 + $0xe7] sm:$0xff]
        %v2422 = vld [vmem:[%s1025 + $0xef] sm:$0xff]
        %v2423 = vld [vmem:[%s1025 + $0x107] sm:$0xff]
        %v2424 = vld [vmem:[%s1025 + $0x10f] sm:$0xff]
        %v2425 = vld [vmem:[%s1025 + $0x127] sm:$0xff]
        %v2426 = vld [vmem:[%s1025 + $0x12f] sm:$0xff]
        %v2427 = vld [vmem:[%s1025 + $0x147] sm:$0xff]
        %v2428 = vld [vmem:[%s1025 + $0x14f] sm:$0xff]
        %v2429 = vld [vmem:[%s1025 + $0x167] sm:$0xff]
        %v2430 = vld [vmem:[%s1025 + $0x16f] sm:$0xff]
        %v2431 = vld [vmem:[%s1025 + $0x187] sm:$0xff]
        %v2432 = vld [vmem:[%s1025 + $0x18f] sm:$0xff]
        %v2433 = vld [vmem:[%s1025 + $0x1a7] sm:$0xff]
        %v2434 = vld [vmem:[%s1025 + $0x1af] sm:$0xff]
        %v2435 = vld [vmem:[%s1025 + $0x1c7] sm:$0xff]
        %v2436 = vld [vmem:[%s1025 + $0x1cf] sm:$0xff]
        %v2437 = vld [vmem:[%s1025 + $0x1e7] sm:$0xff]
        %v2438 = vld [vmem:[%s1025 + $0x1ef] sm:$0xff]
        %v2439 = vsel %vm987, %v2407, -3e+38
        %v2440 = vsel %vm988, %v2408, -3e+38
        %v2441 = vsel %vm987, %v2409, -3e+38
        %v2442 = vsel %vm988, %v2410, -3e+38
        %v2443 = vsel %vm987, %v2411, -3e+38
        %v2444 = vsel %vm988, %v2412, -3e+38
        %v2445 = vsel %vm987, %v2413, -3e+38
        %v2446 = vsel %vm988, %v2414, -3e+38
        %v2447 = vsel %vm987, %v2415, -3e+38
        %v2448 = vsel %vm988, %v2416, -3e+38
        %v2449 = vsel %vm987, %v2417, -3e+38
        %v2450 = vsel %vm988, %v2418, -3e+38
        %v2451 = vsel %vm987, %v2419, -3e+38
        %v2452 = vsel %vm988, %v2420, -3e+38
        %v2453 = vsel %vm987, %v2421, -3e+38
        %v2454 = vsel %vm988, %v2422, -3e+38
        %v2455 = vsel %vm987, %v2423, -3e+38
        %v2456 = vsel %vm988, %v2424, -3e+38
        %v2457 = vsel %vm987, %v2425, -3e+38
        %v2458 = vsel %vm988, %v2426, -3e+38
        %v2459 = vsel %vm987, %v2427, -3e+38
        %v2460 = vsel %vm988, %v2428, -3e+38
        %v2461 = vsel %vm987, %v2429, -3e+38
        %v2462 = vsel %vm988, %v2430, -3e+38
        %v2463 = vsel %vm987, %v2431, -3e+38
        %v2464 = vsel %vm988, %v2432, -3e+38
        %v2465 = vsel %vm987, %v2433, -3e+38
        %v2466 = vsel %vm988, %v2434, -3e+38
        %v2467 = vsel %vm987, %v2435, -3e+38
        %v2468 = vsel %vm988, %v2436, -3e+38
        %v2469 = vsel %vm987, %v2437, -3e+38
        %v2470 = vsel %vm988, %v2438, -3e+38
        %v2471 = vmax.f32 %v2375, %v2439
        %v2472 = vmax.f32 %v2376, %v2440
        %v2473 = vmax.f32 %v2377, %v2441
        %v2474 = vmax.f32 %v2378, %v2442
        %v2475 = vmax.f32 %v2379, %v2443
        %v2476 = vmax.f32 %v2380, %v2444
        %v2477 = vmax.f32 %v2381, %v2445
        %v2478 = vmax.f32 %v2382, %v2446
        %v2479 = vmax.f32 %v2383, %v2447
        %v2480 = vmax.f32 %v2384, %v2448
        %v2481 = vmax.f32 %v2385, %v2449
        %v2482 = vmax.f32 %v2386, %v2450
        %v2483 = vmax.f32 %v2387, %v2451
        %v2484 = vmax.f32 %v2388, %v2452
        %v2485 = vmax.f32 %v2389, %v2453
        %v2486 = vmax.f32 %v2390, %v2454
        %v2487 = vmax.f32 %v2391, %v2455
        %v2488 = vmax.f32 %v2392, %v2456
        %v2489 = vmax.f32 %v2393, %v2457
        %v2490 = vmax.f32 %v2394, %v2458
        %v2491 = vmax.f32 %v2395, %v2459
        %v2492 = vmax.f32 %v2396, %v2460
        %v2493 = vmax.f32 %v2397, %v2461
        %v2494 = vmax.f32 %v2398, %v2462
        %v2495 = vmax.f32 %v2399, %v2463
        %v2496 = vmax.f32 %v2400, %v2464
        %v2497 = vmax.f32 %v2401, %v2465
        %v2498 = vmax.f32 %v2402, %v2466
        %v2499 = vmax.f32 %v2403, %v2467
        %v2500 = vmax.f32 %v2404, %v2468
        %v2501 = vmax.f32 %v2405, %v2469
        %v2502 = vmax.f32 %v2406, %v2470
        %v2503 = vmax.f32 %v1829, %v2471
        %v2504 = vmax.f32 %v1830, %v2472
        %v2505 = vmax.f32 %v1831, %v2473
        %v2506 = vmax.f32 %v1832, %v2474
        %v2507 = vmax.f32 %v1833, %v2475
        %v2508 = vmax.f32 %v1834, %v2476
        %v2509 = vmax.f32 %v1835, %v2477
        %v2510 = vmax.f32 %v1836, %v2478
        %v2511 = vmax.f32 %v1837, %v2479
        %v2512 = vmax.f32 %v1838, %v2480
        %v2513 = vmax.f32 %v1839, %v2481
        %v2514 = vmax.f32 %v1840, %v2482
        %v2515 = vmax.f32 %v1841, %v2483
        %v2516 = vmax.f32 %v1842, %v2484
        %v2517 = vmax.f32 %v1843, %v2485
        %v2518 = vmax.f32 %v1844, %v2486
        %v2519 = vmax.f32 %v1845, %v2487
        %v2520 = vmax.f32 %v1846, %v2488
        %v2521 = vmax.f32 %v1847, %v2489
        %v2522 = vmax.f32 %v1848, %v2490
        %v2523 = vmax.f32 %v1849, %v2491
        %v2524 = vmax.f32 %v1850, %v2492
        %v2525 = vmax.f32 %v1851, %v2493
        %v2526 = vmax.f32 %v1852, %v2494
        %v2527 = vmax.f32 %v1853, %v2495
        %v2528 = vmax.f32 %v1854, %v2496
        %v2529 = vmax.f32 %v1855, %v2497
        %v2530 = vmax.f32 %v1856, %v2498
        %v2531 = vmax.f32 %v1857, %v2499
        %v2532 = vmax.f32 %v1858, %v2500
        %v2533 = vmax.f32 %v1859, %v2501
        %v2534 = vmax.f32 %v1860, %v2502
        %v2535 = vld [vmem:[%s1025 + $0x9] sm:$0xff]
        %v2536 = vld [vmem:[%s1025 + $0x11] sm:$0xff]
        %v2537 = vld [vmem:[%s1025 + $0x29] sm:$0xff]
        %v2538 = vld [vmem:[%s1025 + $0x31] sm:$0xff]
        %v2539 = vld [vmem:[%s1025 + $0x49] sm:$0xff]
        %v2540 = vld [vmem:[%s1025 + $0x51] sm:$0xff]
        %v2541 = vld [vmem:[%s1025 + $0x69] sm:$0xff]
        %v2542 = vld [vmem:[%s1025 + $0x71] sm:$0xff]
        %v2543 = vld [vmem:[%s1025 + $0x89] sm:$0xff]
        %v2544 = vld [vmem:[%s1025 + $0x91] sm:$0xff]
        %v2545 = vld [vmem:[%s1025 + $0xa9] sm:$0xff]
        %v2546 = vld [vmem:[%s1025 + $0xb1] sm:$0xff]
        %v2547 = vld [vmem:[%s1025 + $0xc9] sm:$0xff]
        %v2548 = vld [vmem:[%s1025 + $0xd1] sm:$0xff]
        %v2549 = vld [vmem:[%s1025 + $0xe9] sm:$0xff]
        %v2550 = vld [vmem:[%s1025 + $0xf1] sm:$0xff]
        %v2551 = vld [vmem:[%s1025 + $0x109] sm:$0xff]
        %v2552 = vld [vmem:[%s1025 + $0x111] sm:$0xff]
        %v2553 = vld [vmem:[%s1025 + $0x129] sm:$0xff]
        %v2554 = vld [vmem:[%s1025 + $0x131] sm:$0xff]
        %v2555 = vld [vmem:[%s1025 + $0x149] sm:$0xff]
        %v2556 = vld [vmem:[%s1025 + $0x151] sm:$0xff]
        %v2557 = vld [vmem:[%s1025 + $0x169] sm:$0xff]
        %v2558 = vld [vmem:[%s1025 + $0x171] sm:$0xff]
        %v2559 = vld [vmem:[%s1025 + $0x189] sm:$0xff]
        %v2560 = vld [vmem:[%s1025 + $0x191] sm:$0xff]
        %v2561 = vld [vmem:[%s1025 + $0x1a9] sm:$0xff]
        %v2562 = vld [vmem:[%s1025 + $0x1b1] sm:$0xff]
        %v2563 = vld [vmem:[%s1025 + $0x1c9] sm:$0xff]
        %v2564 = vld [vmem:[%s1025 + $0x1d1] sm:$0xff]
        %v2565 = vld [vmem:[%s1025 + $0x1e9] sm:$0xff]
        %v2566 = vld [vmem:[%s1025 + $0x1f1] sm:$0xff]
        %v2567 = vsel %vm989, %v2535, -3e+38
        %v2568 = vsel %vm990, %v2536, -3e+38
        %v2569 = vsel %vm989, %v2537, -3e+38
        %v2570 = vsel %vm990, %v2538, -3e+38
        %v2571 = vsel %vm989, %v2539, -3e+38
        %v2572 = vsel %vm990, %v2540, -3e+38
        %v2573 = vsel %vm989, %v2541, -3e+38
        %v2574 = vsel %vm990, %v2542, -3e+38
        %v2575 = vsel %vm989, %v2543, -3e+38
        %v2576 = vsel %vm990, %v2544, -3e+38
        %v2577 = vsel %vm989, %v2545, -3e+38
        %v2578 = vsel %vm990, %v2546, -3e+38
        %v2579 = vsel %vm989, %v2547, -3e+38
        %v2580 = vsel %vm990, %v2548, -3e+38
        %v2581 = vsel %vm989, %v2549, -3e+38
        %v2582 = vsel %vm990, %v2550, -3e+38
        %v2583 = vsel %vm989, %v2551, -3e+38
        %v2584 = vsel %vm990, %v2552, -3e+38
        %v2585 = vsel %vm989, %v2553, -3e+38
        %v2586 = vsel %vm990, %v2554, -3e+38
        %v2587 = vsel %vm989, %v2555, -3e+38
        %v2588 = vsel %vm990, %v2556, -3e+38
        %v2589 = vsel %vm989, %v2557, -3e+38
        %v2590 = vsel %vm990, %v2558, -3e+38
        %v2591 = vsel %vm989, %v2559, -3e+38
        %v2592 = vsel %vm990, %v2560, -3e+38
        %v2593 = vsel %vm989, %v2561, -3e+38
        %v2594 = vsel %vm990, %v2562, -3e+38
        %v2595 = vsel %vm989, %v2563, -3e+38
        %v2596 = vsel %vm990, %v2564, -3e+38
        %v2597 = vsel %vm989, %v2565, -3e+38
        %v2598 = vsel %vm990, %v2566, -3e+38
        %v2599 = vld [vmem:[%s1025 + $0xa] sm:$0xff]
        %v2600 = vld [vmem:[%s1025 + $0x12] sm:$0xff]
        %v2601 = vld [vmem:[%s1025 + $0x2a] sm:$0xff]
        %v2602 = vld [vmem:[%s1025 + $0x32] sm:$0xff]
        %v2603 = vld [vmem:[%s1025 + $0x4a] sm:$0xff]
        %v2604 = vld [vmem:[%s1025 + $0x52] sm:$0xff]
        %v2605 = vld [vmem:[%s1025 + $0x6a] sm:$0xff]
        %v2606 = vld [vmem:[%s1025 + $0x72] sm:$0xff]
        %v2607 = vld [vmem:[%s1025 + $0x8a] sm:$0xff]
        %v2608 = vld [vmem:[%s1025 + $0x92] sm:$0xff]
        %v2609 = vld [vmem:[%s1025 + $0xaa] sm:$0xff]
        %v2610 = vld [vmem:[%s1025 + $0xb2] sm:$0xff]
        %v2611 = vld [vmem:[%s1025 + $0xca] sm:$0xff]
        %v2612 = vld [vmem:[%s1025 + $0xd2] sm:$0xff]
        %v2613 = vld [vmem:[%s1025 + $0xea] sm:$0xff]
        %v2614 = vld [vmem:[%s1025 + $0xf2] sm:$0xff]
        %v2615 = vld [vmem:[%s1025 + $0x10a] sm:$0xff]
        %v2616 = vld [vmem:[%s1025 + $0x112] sm:$0xff]
        %v2617 = vld [vmem:[%s1025 + $0x12a] sm:$0xff]
        %v2618 = vld [vmem:[%s1025 + $0x132] sm:$0xff]
        %v2619 = vld [vmem:[%s1025 + $0x14a] sm:$0xff]
        %v2620 = vld [vmem:[%s1025 + $0x152] sm:$0xff]
        %v2621 = vld [vmem:[%s1025 + $0x16a] sm:$0xff]
        %v2622 = vld [vmem:[%s1025 + $0x172] sm:$0xff]
        %v2623 = vld [vmem:[%s1025 + $0x18a] sm:$0xff]
        %v2624 = vld [vmem:[%s1025 + $0x192] sm:$0xff]
        %v2625 = vld [vmem:[%s1025 + $0x1aa] sm:$0xff]
        %v2626 = vld [vmem:[%s1025 + $0x1b2] sm:$0xff]
        %v2627 = vld [vmem:[%s1025 + $0x1ca] sm:$0xff]
        %v2628 = vld [vmem:[%s1025 + $0x1d2] sm:$0xff]
        %v2629 = vld [vmem:[%s1025 + $0x1ea] sm:$0xff]
        %v2630 = vld [vmem:[%s1025 + $0x1f2] sm:$0xff]
        %v2631 = vsel %vm991, %v2599, -3e+38
        %v2632 = vsel %vm992, %v2600, -3e+38
        %v2633 = vsel %vm991, %v2601, -3e+38
        %v2634 = vsel %vm992, %v2602, -3e+38
        %v2635 = vsel %vm991, %v2603, -3e+38
        %v2636 = vsel %vm992, %v2604, -3e+38
        %v2637 = vsel %vm991, %v2605, -3e+38
        %v2638 = vsel %vm992, %v2606, -3e+38
        %v2639 = vsel %vm991, %v2607, -3e+38
        %v2640 = vsel %vm992, %v2608, -3e+38
        %v2641 = vsel %vm991, %v2609, -3e+38
        %v2642 = vsel %vm992, %v2610, -3e+38
        %v2643 = vsel %vm991, %v2611, -3e+38
        %v2644 = vsel %vm992, %v2612, -3e+38
        %v2645 = vsel %vm991, %v2613, -3e+38
        %v2646 = vsel %vm992, %v2614, -3e+38
        %v2647 = vsel %vm991, %v2615, -3e+38
        %v2648 = vsel %vm992, %v2616, -3e+38
        %v2649 = vsel %vm991, %v2617, -3e+38
        %v2650 = vsel %vm992, %v2618, -3e+38
        %v2651 = vsel %vm991, %v2619, -3e+38
        %v2652 = vsel %vm992, %v2620, -3e+38
        %v2653 = vsel %vm991, %v2621, -3e+38
        %v2654 = vsel %vm992, %v2622, -3e+38
        %v2655 = vsel %vm991, %v2623, -3e+38
        %v2656 = vsel %vm992, %v2624, -3e+38
        %v2657 = vsel %vm991, %v2625, -3e+38
        %v2658 = vsel %vm992, %v2626, -3e+38
        %v2659 = vsel %vm991, %v2627, -3e+38
        %v2660 = vsel %vm992, %v2628, -3e+38
        %v2661 = vsel %vm991, %v2629, -3e+38
        %v2662 = vsel %vm992, %v2630, -3e+38
        %v2663 = vmax.f32 %v2567, %v2631
        %v2664 = vmax.f32 %v2568, %v2632
        %v2665 = vmax.f32 %v2569, %v2633
        %v2666 = vmax.f32 %v2570, %v2634
        %v2667 = vmax.f32 %v2571, %v2635
        %v2668 = vmax.f32 %v2572, %v2636
        %v2669 = vmax.f32 %v2573, %v2637
        %v2670 = vmax.f32 %v2574, %v2638
        %v2671 = vmax.f32 %v2575, %v2639
        %v2672 = vmax.f32 %v2576, %v2640
        %v2673 = vmax.f32 %v2577, %v2641
        %v2674 = vmax.f32 %v2578, %v2642
        %v2675 = vmax.f32 %v2579, %v2643
        %v2676 = vmax.f32 %v2580, %v2644
        %v2677 = vmax.f32 %v2581, %v2645
        %v2678 = vmax.f32 %v2582, %v2646
        %v2679 = vmax.f32 %v2583, %v2647
        %v2680 = vmax.f32 %v2584, %v2648
        %v2681 = vmax.f32 %v2585, %v2649
        %v2682 = vmax.f32 %v2586, %v2650
        %v2683 = vmax.f32 %v2587, %v2651
        %v2684 = vmax.f32 %v2588, %v2652
        %v2685 = vmax.f32 %v2589, %v2653
        %v2686 = vmax.f32 %v2590, %v2654
        %v2687 = vmax.f32 %v2591, %v2655
        %v2688 = vmax.f32 %v2592, %v2656
        %v2689 = vmax.f32 %v2593, %v2657
        %v2690 = vmax.f32 %v2594, %v2658
        %v2691 = vmax.f32 %v2595, %v2659
        %v2692 = vmax.f32 %v2596, %v2660
        %v2693 = vmax.f32 %v2597, %v2661
        %v2694 = vmax.f32 %v2598, %v2662
        %v2695 = vmax.f32 %v2503, %v2663
        %v2696 = vmax.f32 %v2504, %v2664
        %v2697 = vmax.f32 %v2505, %v2665
        %v2698 = vmax.f32 %v2506, %v2666
        %v2699 = vmax.f32 %v2507, %v2667
        %v2700 = vmax.f32 %v2508, %v2668
        %v2701 = vmax.f32 %v2509, %v2669
        %v2702 = vmax.f32 %v2510, %v2670
        %v2703 = vmax.f32 %v2511, %v2671
        %v2704 = vmax.f32 %v2512, %v2672
        %v2705 = vmax.f32 %v2513, %v2673
        %v2706 = vmax.f32 %v2514, %v2674
        %v2707 = vmax.f32 %v2515, %v2675
        %v2708 = vmax.f32 %v2516, %v2676
        %v2709 = vmax.f32 %v2517, %v2677
        %v2710 = vmax.f32 %v2518, %v2678
        %v2711 = vmax.f32 %v2519, %v2679
        %v2712 = vmax.f32 %v2520, %v2680
        %v2713 = vmax.f32 %v2521, %v2681
        %v2714 = vmax.f32 %v2522, %v2682
        %v2715 = vmax.f32 %v2523, %v2683
        %v2716 = vmax.f32 %v2524, %v2684
        %v2717 = vmax.f32 %v2525, %v2685
        %v2718 = vmax.f32 %v2526, %v2686
        %v2719 = vmax.f32 %v2527, %v2687
        %v2720 = vmax.f32 %v2528, %v2688
        %v2721 = vmax.f32 %v2529, %v2689
        %v2722 = vmax.f32 %v2530, %v2690
        %v2723 = vmax.f32 %v2531, %v2691
        %v2724 = vmax.f32 %v2532, %v2692
        %v2725 = vmax.f32 %v2533, %v2693
        %v2726 = vmax.f32 %v2534, %v2694
        %2727 = vst [vmem:[%s1025 + $0x8] sm:$0xff] %v2695
        %2728 = vst [vmem:[%s1025 + $0x10] sm:$0xff] %v2696
        %2729 = vst [vmem:[%s1025 + $0x28] sm:$0xff] %v2697
        %2730 = vst [vmem:[%s1025 + $0x30] sm:$0xff] %v2698
        %2731 = vst [vmem:[%s1025 + $0x48] sm:$0xff] %v2699
        %2732 = vst [vmem:[%s1025 + $0x50] sm:$0xff] %v2700
        %2733 = vst [vmem:[%s1025 + $0x68] sm:$0xff] %v2701
        %2734 = vst [vmem:[%s1025 + $0x70] sm:$0xff] %v2702
        %2735 = vst [vmem:[%s1025 + $0x88] sm:$0xff] %v2703
        %2736 = vst [vmem:[%s1025 + $0x90] sm:$0xff] %v2704
        %2737 = vst [vmem:[%s1025 + $0xa8] sm:$0xff] %v2705
        %2738 = vst [vmem:[%s1025 + $0xb0] sm:$0xff] %v2706
        %2739 = vst [vmem:[%s1025 + $0xc8] sm:$0xff] %v2707
        %2740 = vst [vmem:[%s1025 + $0xd0] sm:$0xff] %v2708
        %2741 = vst [vmem:[%s1025 + $0xe8] sm:$0xff] %v2709
        %2742 = vst [vmem:[%s1025 + $0xf0] sm:$0xff] %v2710
        %2743 = vst [vmem:[%s1025 + $0x108] sm:$0xff] %v2711
        %2744 = vst [vmem:[%s1025 + $0x110] sm:$0xff] %v2712
        %2745 = vst [vmem:[%s1025 + $0x128] sm:$0xff] %v2713
        %2746 = vst [vmem:[%s1025 + $0x130] sm:$0xff] %v2714
        %2747 = vst [vmem:[%s1025 + $0x148] sm:$0xff] %v2715
        %2748 = vst [vmem:[%s1025 + $0x150] sm:$0xff] %v2716
        %2749 = vst [vmem:[%s1025 + $0x168] sm:$0xff] %v2717
        %2750 = vst [vmem:[%s1025 + $0x170] sm:$0xff] %v2718
        %2751 = vst [vmem:[%s1025 + $0x188] sm:$0xff] %v2719
        %2752 = vst [vmem:[%s1025 + $0x190] sm:$0xff] %v2720
        %2753 = vst [vmem:[%s1025 + $0x1a8] sm:$0xff] %v2721
        %2754 = vst [vmem:[%s1025 + $0x1b0] sm:$0xff] %v2722
        %2755 = vst [vmem:[%s1025 + $0x1c8] sm:$0xff] %v2723
        %2756 = vst [vmem:[%s1025 + $0x1d0] sm:$0xff] %v2724
        %2757 = vst [vmem:[%s1025 + $0x1e8] sm:$0xff] %v2725
        %2758 = vst [vmem:[%s1025 + $0x1f0] sm:$0xff] %v2726
        %v2759 = vld [vmem:[#allocation2 + $0x8] sm:$0xff]
        %v2760 = vld [vmem:[#allocation2 + $0x10] sm:$0xff]
        %v2761 = vld [vmem:[#allocation2 + $0x28] sm:$0xff]
        %v2762 = vld [vmem:[#allocation2 + $0x30] sm:$0xff]
        %v2763 = vld [vmem:[#allocation2 + $0x48] sm:$0xff]
        %v2764 = vld [vmem:[#allocation2 + $0x50] sm:$0xff]
        %v2765 = vld [vmem:[#allocation2 + $0x68] sm:$0xff]
        %v2766 = vld [vmem:[#allocation2 + $0x70] sm:$0xff]
        %v2767 = vld [vmem:[#allocation2 + $0x88] sm:$0xff]
        %v2768 = vld [vmem:[#allocation2 + $0x90] sm:$0xff]
        %v2769 = vld [vmem:[#allocation2 + $0xa8] sm:$0xff]
        %v2770 = vld [vmem:[#allocation2 + $0xb0] sm:$0xff]
        %v2771 = vld [vmem:[#allocation2 + $0xc8] sm:$0xff]
        %v2772 = vld [vmem:[#allocation2 + $0xd0] sm:$0xff]
        %v2773 = vld [vmem:[#allocation2 + $0xe8] sm:$0xff]
        %v2774 = vld [vmem:[#allocation2 + $0xf0] sm:$0xff]
        %v2775 = vld [vmem:[#allocation2 + $0x108] sm:$0xff]
        %v2776 = vld [vmem:[#allocation2 + $0x110] sm:$0xff]
        %v2777 = vld [vmem:[#allocation2 + $0x128] sm:$0xff]
        %v2778 = vld [vmem:[#allocation2 + $0x130] sm:$0xff]
        %v2779 = vld [vmem:[#allocation2 + $0x148] sm:$0xff]
        %v2780 = vld [vmem:[#allocation2 + $0x150] sm:$0xff]
        %v2781 = vld [vmem:[#allocation2 + $0x168] sm:$0xff]
        %v2782 = vld [vmem:[#allocation2 + $0x170] sm:$0xff]
        %v2783 = vld [vmem:[#allocation2 + $0x188] sm:$0xff]
        %v2784 = vld [vmem:[#allocation2 + $0x190] sm:$0xff]
        %v2785 = vld [vmem:[#allocation2 + $0x1a8] sm:$0xff]
        %v2786 = vld [vmem:[#allocation2 + $0x1b0] sm:$0xff]
        %v2787 = vld [vmem:[#allocation2 + $0x1c8] sm:$0xff]
        %v2788 = vld [vmem:[#allocation2 + $0x1d0] sm:$0xff]
        %v2789 = vld [vmem:[#allocation2 + $0x1e8] sm:$0xff]
        %v2790 = vld [vmem:[#allocation2 + $0x1f0] sm:$0xff]
        %v2791 = vsel 0, %v2759, -3e+38
        %v2792 = vsel 0, %v2760, -3e+38
        %v2793 = vsel 0, %v2761, -3e+38
        %v2794 = vsel 0, %v2762, -3e+38
        %v2795 = vsel 1, %v2763, -3e+38
        %v2796 = vsel 1, %v2764, -3e+38
        %v2797 = vsel 1, %v2765, -3e+38
        %v2798 = vsel 1, %v2766, -3e+38
        %v2799 = vsel 1, %v2767, -3e+38
        %v2800 = vsel 1, %v2768, -3e+38
        %v2801 = vsel 1, %v2769, -3e+38
        %v2802 = vsel 1, %v2770, -3e+38
        %v2803 = vsel 1, %v2771, -3e+38
        %v2804 = vsel 1, %v2772, -3e+38
        %v2805 = vsel 1, %v2773, -3e+38
        %v2806 = vsel 1, %v2774, -3e+38
        %v2807 = vsel 1, %v2775, -3e+38
        %v2808 = vsel 1, %v2776, -3e+38
        %v2809 = vsel 1, %v2777, -3e+38
        %v2810 = vsel 1, %v2778, -3e+38
        %v2811 = vsel 1, %v2779, -3e+38
        %v2812 = vsel 1, %v2780, -3e+38
        %v2813 = vsel 1, %v2781, -3e+38
        %v2814 = vsel 1, %v2782, -3e+38
        %v2815 = vsel 1, %v2783, -3e+38
        %v2816 = vsel 1, %v2784, -3e+38
        %v2817 = vsel 1, %v2785, -3e+38
        %v2818 = vsel 1, %v2786, -3e+38
        %v2819 = vsel 1, %v2787, -3e+38
        %v2820 = vsel 1, %v2788, -3e+38
        %v2821 = vsel 1, %v2789, -3e+38
        %v2822 = vsel 1, %v2790, -3e+38
        %v2823 = vld [vmem:[%s1538 + $0x8] sm:$0xff]
        %v2824 = vld [vmem:[%s1538 + $0x10] sm:$0xff]
        %v2825 = vld [vmem:[%s1538 + $0x28] sm:$0xff]
        %v2826 = vld [vmem:[%s1538 + $0x30] sm:$0xff]
        %v2827 = vld [vmem:[%s1538 + $0x48] sm:$0xff]
        %v2828 = vld [vmem:[%s1538 + $0x50] sm:$0xff]
        %v2829 = vld [vmem:[%s1538 + $0x68] sm:$0xff]
        %v2830 = vld [vmem:[%s1538 + $0x70] sm:$0xff]
        %v2831 = vld [vmem:[%s1538 + $0x88] sm:$0xff]
        %v2832 = vld [vmem:[%s1538 + $0x90] sm:$0xff]
        %v2833 = vld [vmem:[%s1538 + $0xa8] sm:$0xff]
        %v2834 = vld [vmem:[%s1538 + $0xb0] sm:$0xff]
        %v2835 = vld [vmem:[%s1538 + $0xc8] sm:$0xff]
        %v2836 = vld [vmem:[%s1538 + $0xd0] sm:$0xff]
        %v2837 = vld [vmem:[%s1538 + $0xe8] sm:$0xff]
        %v2838 = vld [vmem:[%s1538 + $0xf0] sm:$0xff]
        %v2839 = vld [vmem:[%s1538 + $0x108] sm:$0xff]
        %v2840 = vld [vmem:[%s1538 + $0x110] sm:$0xff]
        %v2841 = vld [vmem:[%s1538 + $0x128] sm:$0xff]
        %v2842 = vld [vmem:[%s1538 + $0x130] sm:$0xff]
        %v2843 = vld [vmem:[%s1538 + $0x148] sm:$0xff]
        %v2844 = vld [vmem:[%s1538 + $0x150] sm:$0xff]
        %v2845 = vld [vmem:[%s1538 + $0x168] sm:$0xff]
        %v2846 = vld [vmem:[%s1538 + $0x170] sm:$0xff]
        %v2847 = vld [vmem:[%s1538 + $0x188] sm:$0xff]
        %v2848 = vld [vmem:[%s1538 + $0x190] sm:$0xff]
        %v2849 = vld [vmem:[%s1538 + $0x1a8] sm:$0xff]
        %v2850 = vld [vmem:[%s1538 + $0x1b0] sm:$0xff]
        %v2851 = vld [vmem:[%s1538 + $0x1c8] sm:$0xff]
        %v2852 = vld [vmem:[%s1538 + $0x1d0] sm:$0xff]
        %v2853 = vld [vmem:[%s1538 + $0x1e8] sm:$0xff]
        %v2854 = vld [vmem:[%s1538 + $0x1f0] sm:$0xff]
        %v2855 = vsel 0, %v2823, -3e+38
        %v2856 = vsel 0, %v2824, -3e+38
        %v2857 = vsel 1, %v2825, -3e+38
        %v2858 = vsel 1, %v2826, -3e+38
        %v2859 = vsel 1, %v2827, -3e+38
        %v2860 = vsel 1, %v2828, -3e+38
        %v2861 = vsel 1, %v2829, -3e+38
        %v2862 = vsel 1, %v2830, -3e+38
        %v2863 = vsel 1, %v2831, -3e+38
        %v2864 = vsel 1, %v2832, -3e+38
        %v2865 = vsel 1, %v2833, -3e+38
        %v2866 = vsel 1, %v2834, -3e+38
        %v2867 = vsel 1, %v2835, -3e+38
        %v2868 = vsel 1, %v2836, -3e+38
        %v2869 = vsel 1, %v2837, -3e+38
        %v2870 = vsel 1, %v2838, -3e+38
        %v2871 = vsel 1, %v2839, -3e+38
        %v2872 = vsel 1, %v2840, -3e+38
        %v2873 = vsel 1, %v2841, -3e+38
        %v2874 = vsel 1, %v2842, -3e+38
        %v2875 = vsel 1, %v2843, -3e+38
        %v2876 = vsel 1, %v2844, -3e+38
        %v2877 = vsel 1, %v2845, -3e+38
        %v2878 = vsel 1, %v2846, -3e+38
        %v2879 = vsel 1, %v2847, -3e+38
        %v2880 = vsel 1, %v2848, -3e+38
        %v2881 = vsel 1, %v2849, -3e+38
        %v2882 = vsel 1, %v2850, -3e+38
        %v2883 = vsel 1, %v2851, -3e+38
        %v2884 = vsel 1, %v2852, -3e+38
        %v2885 = vsel 1, %v2853, -3e+38
        %v2886 = vsel 1, %v2854, -3e+38
        %v2887 = vmax.f32 %v2791, %v2855
        %v2888 = vmax.f32 %v2792, %v2856
        %v2889 = vmax.f32 %v2793, %v2857
        %v2890 = vmax.f32 %v2794, %v2858
        %v2891 = vmax.f32 %v2795, %v2859
        %v2892 = vmax.f32 %v2796, %v2860
        %v2893 = vmax.f32 %v2797, %v2861
        %v2894 = vmax.f32 %v2798, %v2862
        %v2895 = vmax.f32 %v2799, %v2863
        %v2896 = vmax.f32 %v2800, %v2864
        %v2897 = vmax.f32 %v2801, %v2865
        %v2898 = vmax.f32 %v2802, %v2866
        %v2899 = vmax.f32 %v2803, %v2867
        %v2900 = vmax.f32 %v2804, %v2868
        %v2901 = vmax.f32 %v2805, %v2869
        %v2902 = vmax.f32 %v2806, %v2870
        %v2903 = vmax.f32 %v2807, %v2871
        %v2904 = vmax.f32 %v2808, %v2872
        %v2905 = vmax.f32 %v2809, %v2873
        %v2906 = vmax.f32 %v2810, %v2874
        %v2907 = vmax.f32 %v2811, %v2875
        %v2908 = vmax.f32 %v2812, %v2876
        %v2909 = vmax.f32 %v2813, %v2877
        %v2910 = vmax.f32 %v2814, %v2878
        %v2911 = vmax.f32 %v2815, %v2879
        %v2912 = vmax.f32 %v2816, %v2880
        %v2913 = vmax.f32 %v2817, %v2881
        %v2914 = vmax.f32 %v2818, %v2882
        %v2915 = vmax.f32 %v2819, %v2883
        %v2916 = vmax.f32 %v2820, %v2884
        %v2917 = vmax.f32 %v2821, %v2885
        %v2918 = vmax.f32 %v2822, %v2886
        %v2919 = vmax.f32 %v2695, %v2887
        %v2920 = vmax.f32 %v2696, %v2888
        %v2921 = vmax.f32 %v2697, %v2889
        %v2922 = vmax.f32 %v2698, %v2890
        %v2923 = vmax.f32 %v2699, %v2891
        %v2924 = vmax.f32 %v2700, %v2892
        %v2925 = vmax.f32 %v2701, %v2893
        %v2926 = vmax.f32 %v2702, %v2894
        %v2927 = vmax.f32 %v2703, %v2895
        %v2928 = vmax.f32 %v2704, %v2896
        %v2929 = vmax.f32 %v2705, %v2897
        %v2930 = vmax.f32 %v2706, %v2898
        %v2931 = vmax.f32 %v2707, %v2899
        %v2932 = vmax.f32 %v2708, %v2900
        %v2933 = vmax.f32 %v2709, %v2901
        %v2934 = vmax.f32 %v2710, %v2902
        %v2935 = vmax.f32 %v2711, %v2903
        %v2936 = vmax.f32 %v2712, %v2904
        %v2937 = vmax.f32 %v2713, %v2905
        %v2938 = vmax.f32 %v2714, %v2906
        %v2939 = vmax.f32 %v2715, %v2907
        %v2940 = vmax.f32 %v2716, %v2908
        %v2941 = vmax.f32 %v2717, %v2909
        %v2942 = vmax.f32 %v2718, %v2910
        %v2943 = vmax.f32 %v2719, %v2911
        %v2944 = vmax.f32 %v2720, %v2912
        %v2945 = vmax.f32 %v2721, %v2913
        %v2946 = vmax.f32 %v2722, %v2914
        %v2947 = vmax.f32 %v2723, %v2915
        %v2948 = vmax.f32 %v2724, %v2916
        %v2949 = vmax.f32 %v2725, %v2917
        %v2950 = vmax.f32 %v2726, %v2918
        %v2951 = vld [vmem:[%s1667 + $0x8] sm:$0xff]
        %v2952 = vld [vmem:[%s1667 + $0x10] sm:$0xff]
        %v2953 = vld [vmem:[%s1667 + $0x28] sm:$0xff]
        %v2954 = vld [vmem:[%s1667 + $0x30] sm:$0xff]
        %v2955 = vld [vmem:[%s1667 + $0x48] sm:$0xff]
        %v2956 = vld [vmem:[%s1667 + $0x50] sm:$0xff]
        %v2957 = vld [vmem:[%s1667 + $0x68] sm:$0xff]
        %v2958 = vld [vmem:[%s1667 + $0x70] sm:$0xff]
        %v2959 = vld [vmem:[%s1667 + $0x88] sm:$0xff]
        %v2960 = vld [vmem:[%s1667 + $0x90] sm:$0xff]
        %v2961 = vld [vmem:[%s1667 + $0xa8] sm:$0xff]
        %v2962 = vld [vmem:[%s1667 + $0xb0] sm:$0xff]
        %v2963 = vld [vmem:[%s1667 + $0xc8] sm:$0xff]
        %v2964 = vld [vmem:[%s1667 + $0xd0] sm:$0xff]
        %v2965 = vld [vmem:[%s1667 + $0xe8] sm:$0xff]
        %v2966 = vld [vmem:[%s1667 + $0xf0] sm:$0xff]
        %v2967 = vld [vmem:[%s1667 + $0x108] sm:$0xff]
        %v2968 = vld [vmem:[%s1667 + $0x110] sm:$0xff]
        %v2969 = vld [vmem:[%s1667 + $0x128] sm:$0xff]
        %v2970 = vld [vmem:[%s1667 + $0x130] sm:$0xff]
        %v2971 = vld [vmem:[%s1667 + $0x148] sm:$0xff]
        %v2972 = vld [vmem:[%s1667 + $0x150] sm:$0xff]
        %v2973 = vld [vmem:[%s1667 + $0x168] sm:$0xff]
        %v2974 = vld [vmem:[%s1667 + $0x170] sm:$0xff]
        %v2975 = vld [vmem:[%s1667 + $0x188] sm:$0xff]
        %v2976 = vld [vmem:[%s1667 + $0x190] sm:$0xff]
        %v2977 = vld [vmem:[%s1667 + $0x1a8] sm:$0xff]
        %v2978 = vld [vmem:[%s1667 + $0x1b0] sm:$0xff]
        %v2979 = vld [vmem:[%s1667 + $0x1c8] sm:$0xff]
        %v2980 = vld [vmem:[%s1667 + $0x1d0] sm:$0xff]
        %v2981 = vld [vmem:[%s1667 + $0x1e8] sm:$0xff]
        %v2982 = vld [vmem:[%s1667 + $0x1f0] sm:$0xff]
        %v2983 = vsel 1, %v2951, -3e+38
        %v2984 = vsel 1, %v2952, -3e+38
        %v2985 = vsel 1, %v2953, -3e+38
        %v2986 = vsel 1, %v2954, -3e+38
        %v2987 = vsel 1, %v2955, -3e+38
        %v2988 = vsel 1, %v2956, -3e+38
        %v2989 = vsel 1, %v2957, -3e+38
        %v2990 = vsel 1, %v2958, -3e+38
        %v2991 = vsel 1, %v2959, -3e+38
        %v2992 = vsel 1, %v2960, -3e+38
        %v2993 = vsel 1, %v2961, -3e+38
        %v2994 = vsel 1, %v2962, -3e+38
        %v2995 = vsel 1, %v2963, -3e+38
        %v2996 = vsel 1, %v2964, -3e+38
        %v2997 = vsel 1, %v2965, -3e+38
        %v2998 = vsel 1, %v2966, -3e+38
        %v2999 = vsel 1, %v2967, -3e+38
        %v3000 = vsel 1, %v2968, -3e+38
        %v3001 = vsel 1, %v2969, -3e+38
        %v3002 = vsel 1, %v2970, -3e+38
        %v3003 = vsel 1, %v2971, -3e+38
        %v3004 = vsel 1, %v2972, -3e+38
        %v3005 = vsel 1, %v2973, -3e+38
        %v3006 = vsel 1, %v2974, -3e+38
        %v3007 = vsel 1, %v2975, -3e+38
        %v3008 = vsel 1, %v2976, -3e+38
        %v3009 = vsel 1, %v2977, -3e+38
        %v3010 = vsel 1, %v2978, -3e+38
        %v3011 = vsel 1, %v2979, -3e+38
        %v3012 = vsel 1, %v2980, -3e+38
        %v3013 = vsel 0, %v2981, -3e+38
        %v3014 = vsel 0, %v2982, -3e+38
        %v3015 = vld [vmem:[%s1732 + $0x8] sm:$0xff]
        %v3016 = vld [vmem:[%s1732 + $0x10] sm:$0xff]
        %v3017 = vld [vmem:[%s1732 + $0x28] sm:$0xff]
        %v3018 = vld [vmem:[%s1732 + $0x30] sm:$0xff]
        %v3019 = vld [vmem:[%s1732 + $0x48] sm:$0xff]
        %v3020 = vld [vmem:[%s1732 + $0x50] sm:$0xff]
        %v3021 = vld [vmem:[%s1732 + $0x68] sm:$0xff]
        %v3022 = vld [vmem:[%s1732 + $0x70] sm:$0xff]
        %v3023 = vld [vmem:[%s1732 + $0x88] sm:$0xff]
        %v3024 = vld [vmem:[%s1732 + $0x90] sm:$0xff]
        %v3025 = vld [vmem:[%s1732 + $0xa8] sm:$0xff]
        %v3026 = vld [vmem:[%s1732 + $0xb0] sm:$0xff]
        %v3027 = vld [vmem:[%s1732 + $0xc8] sm:$0xff]
        %v3028 = vld [vmem:[%s1732 + $0xd0] sm:$0xff]
        %v3029 = vld [vmem:[%s1732 + $0xe8] sm:$0xff]
        %v3030 = vld [vmem:[%s1732 + $0xf0] sm:$0xff]
        %v3031 = vld [vmem:[%s1732 + $0x108] sm:$0xff]
        %v3032 = vld [vmem:[%s1732 + $0x110] sm:$0xff]
        %v3033 = vld [vmem:[%s1732 + $0x128] sm:$0xff]
        %v3034 = vld [vmem:[%s1732 + $0x130] sm:$0xff]
        %v3035 = vld [vmem:[%s1732 + $0x148] sm:$0xff]
        %v3036 = vld [vmem:[%s1732 + $0x150] sm:$0xff]
        %v3037 = vld [vmem:[%s1732 + $0x168] sm:$0xff]
        %v3038 = vld [vmem:[%s1732 + $0x170] sm:$0xff]
        %v3039 = vld [vmem:[%s1732 + $0x188] sm:$0xff]
        %v3040 = vld [vmem:[%s1732 + $0x190] sm:$0xff]
        %v3041 = vld [vmem:[%s1732 + $0x1a8] sm:$0xff]
        %v3042 = vld [vmem:[%s1732 + $0x1b0] sm:$0xff]
        %v3043 = vld [vmem:[%s1732 + $0x1c8] sm:$0xff]
        %v3044 = vld [vmem:[%s1732 + $0x1d0] sm:$0xff]
        %v3045 = vld [vmem:[%s1732 + $0x1e8] sm:$0xff]
        %v3046 = vld [vmem:[%s1732 + $0x1f0] sm:$0xff]
        %v3047 = vsel 1, %v3015, -3e+38
        %v3048 = vsel 1, %v3016, -3e+38
        %v3049 = vsel 1, %v3017, -3e+38
        %v3050 = vsel 1, %v3018, -3e+38
        %v3051 = vsel 1, %v3019, -3e+38
        %v3052 = vsel 1, %v3020, -3e+38
        %v3053 = vsel 1, %v3021, -3e+38
        %v3054 = vsel 1, %v3022, -3e+38
        %v3055 = vsel 1, %v3023, -3e+38
        %v3056 = vsel 1, %v3024, -3e+38
        %v3057 = vsel 1, %v3025, -3e+38
        %v3058 = vsel 1, %v3026, -3e+38
        %v3059 = vsel 1, %v3027, -3e+38
        %v3060 = vsel 1, %v3028, -3e+38
        %v3061 = vsel 1, %v3029, -3e+38
        %v3062 = vsel 1, %v3030, -3e+38
        %v3063 = vsel 1, %v3031, -3e+38
        %v3064 = vsel 1, %v3032, -3e+38
        %v3065 = vsel 1, %v3033, -3e+38
        %v3066 = vsel 1, %v3034, -3e+38
        %v3067 = vsel 1, %v3035, -3e+38
        %v3068 = vsel 1, %v3036, -3e+38
        %v3069 = vsel 1, %v3037, -3e+38
        %v3070 = vsel 1, %v3038, -3e+38
        %v3071 = vsel 1, %v3039, -3e+38
        %v3072 = vsel 1, %v3040, -3e+38
        %v3073 = vsel 1, %v3041, -3e+38
        %v3074 = vsel 1, %v3042, -3e+38
        %v3075 = vsel 0, %v3043, -3e+38
        %v3076 = vsel 0, %v3044, -3e+38
        %v3077 = vsel 0, %v3045, -3e+38
        %v3078 = vsel 0, %v3046, -3e+38
        %v3079 = vmax.f32 %v2983, %v3047
        %v3080 = vmax.f32 %v2984, %v3048
        %v3081 = vmax.f32 %v2985, %v3049
        %v3082 = vmax.f32 %v2986, %v3050
        %v3083 = vmax.f32 %v2987, %v3051
        %v3084 = vmax.f32 %v2988, %v3052
        %v3085 = vmax.f32 %v2989, %v3053
        %v3086 = vmax.f32 %v2990, %v3054
        %v3087 = vmax.f32 %v2991, %v3055
        %v3088 = vmax.f32 %v2992, %v3056
        %v3089 = vmax.f32 %v2993, %v3057
        %v3090 = vmax.f32 %v2994, %v3058
        %v3091 = vmax.f32 %v2995, %v3059
        %v3092 = vmax.f32 %v2996, %v3060
        %v3093 = vmax.f32 %v2997, %v3061
        %v3094 = vmax.f32 %v2998, %v3062
        %v3095 = vmax.f32 %v2999, %v3063
        %v3096 = vmax.f32 %v3000, %v3064
        %v3097 = vmax.f32 %v3001, %v3065
        %v3098 = vmax.f32 %v3002, %v3066
        %v3099 = vmax.f32 %v3003, %v3067
        %v3100 = vmax.f32 %v3004, %v3068
        %v3101 = vmax.f32 %v3005, %v3069
        %v3102 = vmax.f32 %v3006, %v3070
        %v3103 = vmax.f32 %v3007, %v3071
        %v3104 = vmax.f32 %v3008, %v3072
        %v3105 = vmax.f32 %v3009, %v3073
        %v3106 = vmax.f32 %v3010, %v3074
        %v3107 = vmax.f32 %v3011, %v3075
        %v3108 = vmax.f32 %v3012, %v3076
        %v3109 = vmax.f32 %v3013, %v3077
        %v3110 = vmax.f32 %v3014, %v3078
        %v3111 = vmax.f32 %v2919, %v3079
        %v3112 = vmax.f32 %v2920, %v3080
        %v3113 = vmax.f32 %v2921, %v3081
        %v3114 = vmax.f32 %v2922, %v3082
        %v3115 = vmax.f32 %v2923, %v3083
        %v3116 = vmax.f32 %v2924, %v3084
        %v3117 = vmax.f32 %v2925, %v3085
        %v3118 = vmax.f32 %v2926, %v3086
        %v3119 = vmax.f32 %v2927, %v3087
        %v3120 = vmax.f32 %v2928, %v3088
        %v3121 = vmax.f32 %v2929, %v3089
        %v3122 = vmax.f32 %v2930, %v3090
        %v3123 = vmax.f32 %v2931, %v3091
        %v3124 = vmax.f32 %v2932, %v3092
        %v3125 = vmax.f32 %v2933, %v3093
        %v3126 = vmax.f32 %v2934, %v3094
        %v3127 = vmax.f32 %v2935, %v3095
        %v3128 = vmax.f32 %v2936, %v3096
        %v3129 = vmax.f32 %v2937, %v3097
        %v3130 = vmax.f32 %v2938, %v3098
        %v3131 = vmax.f32 %v2939, %v3099
        %v3132 = vmax.f32 %v2940, %v3100
        %v3133 = vmax.f32 %v2941, %v3101
        %v3134 = vmax.f32 %v2942, %v3102
        %v3135 = vmax.f32 %v2943, %v3103
        %v3136 = vmax.f32 %v2944, %v3104
        %v3137 = vmax.f32 %v2945, %v3105
        %v3138 = vmax.f32 %v2946, %v3106
        %v3139 = vmax.f32 %v2947, %v3107
        %v3140 = vmax.f32 %v2948, %v3108
        %v3141 = vmax.f32 %v2949, %v3109
        %v3142 = vmax.f32 %v2950, %v3110
        %v3143 = vpack.c.bf16 %v3112, %v3111
        %v3144 = vpack.c.bf16 %v3114, %v3113
        %v3145 = vpack.c.bf16 %v3116, %v3115
        %v3146 = vpack.c.bf16 %v3118, %v3117
        %v3147 = vpack.c.bf16 %v3120, %v3119
        %v3148 = vpack.c.bf16 %v3122, %v3121
        %v3149 = vpack.c.bf16 %v3124, %v3123
        %v3150 = vpack.c.bf16 %v3126, %v3125
        %v3151 = vpack.c.bf16 %v3128, %v3127
        %v3152 = vpack.c.bf16 %v3130, %v3129
        %v3153 = vpack.c.bf16 %v3132, %v3131
        %v3154 = vpack.c.bf16 %v3134, %v3133
        %v3155 = vpack.c.bf16 %v3136, %v3135
        %v3156 = vpack.c.bf16 %v3138, %v3137
        %v3157 = vpack.c.bf16 %v3140, %v3139
        %v3158 = vpack.c.bf16 %v3142, %v3141
        %v3159 = vld [vmem:[#allocation11] sm:$0xf]
        %v3160 = vld [vmem:[#allocation11 + $0x4] sm:$0xf]
        %v3161 = vld [vmem:[#allocation11 + $0x8] sm:$0xf]
        %v3162 = vld [vmem:[#allocation11 + $0xc] sm:$0xf]
        %v3163 = vld [vmem:[#allocation11 + $0x10] sm:$0xf]
        %v3164 = vld [vmem:[#allocation11 + $0x14] sm:$0xf]
        %v3165 = vld [vmem:[#allocation11 + $0x18] sm:$0xf]
        %v3166 = vld [vmem:[#allocation11 + $0x1c] sm:$0xf]
        %v3167 = vld [vmem:[#allocation11 + $0x20] sm:$0xf]
        %v3168 = vld [vmem:[#allocation11 + $0x24] sm:$0xf]
        %v3169 = vld [vmem:[#allocation11 + $0x28] sm:$0xf]
        %v3170 = vld [vmem:[#allocation11 + $0x2c] sm:$0xf]
        %v3171 = vld [vmem:[#allocation11 + $0x30] sm:$0xf]
        %v3172 = vld [vmem:[#allocation11 + $0x34] sm:$0xf]
        %v3173 = vld [vmem:[#allocation11 + $0x38] sm:$0xf]
        %v3174 = vld [vmem:[#allocation11 + $0x3c] sm:$0xf]
        %v3191 = vunpack.c.l.b16 %v3159
        %v3192 = vunpack.c.l.b16 %v3160
        %v3193 = vunpack.c.l.b16 %v3161
        %v3194 = vunpack.c.l.b16 %v3162
        %v3195 = vunpack.c.l.b16 %v3163
        %v3196 = vunpack.c.l.b16 %v3164
        %v3197 = vunpack.c.l.b16 %v3165
        %v3198 = vunpack.c.l.b16 %v3166
        %v3199 = vunpack.c.l.b16 %v3167
        %v3200 = vunpack.c.l.b16 %v3168
        %v3201 = vunpack.c.l.b16 %v3169
        %v3202 = vunpack.c.l.b16 %v3170
        %v3203 = vunpack.c.l.b16 %v3171
        %v3204 = vunpack.c.l.b16 %v3172
        %v3205 = vunpack.c.l.b16 %v3173
        %v3206 = vunpack.c.l.b16 %v3174
        %v3207 = vpack.c.b16 %v3192, %v3191
        %v3208 = vpack.c.b16 %v3194, %v3193
        %v3209 = vpack.c.b16 %v3196, %v3195
        %v3210 = vpack.c.b16 %v3198, %v3197
        %v3211 = vpack.c.b16 %v3200, %v3199
        %v3212 = vpack.c.b16 %v3202, %v3201
        %v3213 = vpack.c.b16 %v3204, %v3203
        %v3214 = vpack.c.b16 %v3206, %v3205
        %3223 = vmatprep.subr.bf16.mxu0 0
        %3224 = vmatpush1.bf16.msra.mxu0 %v3214
        %3225 = vmatprep.subr.bf16.mxu0 0
        %3226 = vmatpush1.bf16.msra.mxu0 %v3213
        %3227 = vmatprep.subr.bf16.mxu0 0
        %3228 = vmatpush1.bf16.msra.mxu0 %v3212
        %3229 = vmatprep.subr.bf16.mxu0 0
        %3230 = vmatpush1.bf16.msra.mxu0 %v3211
        %3231 = vmatprep.subr.bf16.mxu0 0
        %3232 = vmatpush1.bf16.msra.mxu0 %v3210
        %3233 = vmatprep.subr.bf16.mxu0 0
        %3234 = vmatpush1.bf16.msra.mxu0 %v3209
        %3235 = vmatprep.subr.bf16.mxu0 0
        %3236 = vmatpush1.bf16.msra.mxu0 %v3208
        %3237 = vmatprep.subr.bf16.mxu0 0
        %3238 = vmatpush1.bf16.msra.mxu0 %v3207
        %3239 = vmatprep.subr.bf16.mxu0 0
        %3240 = vmatpush2.bf16.msra.mxu0 0
        %3241 = vmatprep.subr.bf16.mxu0 0
        %3242 = vmatpush2.bf16.msra.mxu0 0
        %3243 = vmatprep.subr.bf16.mxu0 0
        %3244 = vmatpush2.bf16.msra.mxu0 0
        %3245 = vmatprep.subr.bf16.mxu0 0
        %3246 = vmatpush2.bf16.msra.mxu0 0
        %3247 = vmatprep.subr.bf16.mxu0 0
        %3248 = vmatpush2.bf16.msra.mxu0 0
        %3249 = vmatprep.subr.bf16.mxu0 0
        %3250 = vmatpush2.bf16.msra.mxu0 0
        %3251 = vmatprep.subr.bf16.mxu0 0
        %3252 = vmatpush2.bf16.msra.mxu0 0
        %3253 = vmatprep.subr.bf16.mxu0 0
        %3254 = vmatpush2.bf16.msra.mxu0 0
        %3255 = vmatprep.mubr.bf16.mxu0 0
        %3256 = vmatmul.mubr.bf16.gmra.mxu0 %v3143
        %v3257 = vpop.f32.mrf.mxu0
        %v3258 = vadd.f32 0.0, %v3257
        %v3259 = vpop.f32.mrf.mxu0
        %v3260 = vpop.f32.mrf.mxu0
        %v3261 = vadd.f32 0.0, %v3260
        %v3262 = vpop.f32.mrf.mxu0
        %3263 = vmatprep.mubr.bf16.mxu0 0
        %3264 = vmatmul.mubr.bf16.gmra.mxu0 %v3144
        %v3265 = vpop.f32.mrf.mxu0
        %v3266 = vadd.f32 0.0, %v3265
        %v3267 = vpop.f32.mrf.mxu0
        %v3268 = vpop.f32.mrf.mxu0
        %v3269 = vadd.f32 0.0, %v3268
        %v3270 = vpop.f32.mrf.mxu0
        %3271 = vmatprep.mubr.bf16.mxu0 0
        %3272 = vmatmul.mubr.bf16.gmra.mxu0 %v3145
        %v3273 = vpop.f32.mrf.mxu0
        %v3274 = vadd.f32 0.0, %v3273
        %v3275 = vpop.f32.mrf.mxu0
        %v3276 = vpop.f32.mrf.mxu0
        %v3277 = vadd.f32 0.0, %v3276
        %v3278 = vpop.f32.mrf.mxu0
        %3279 = vmatprep.mubr.bf16.mxu0 0
        %3280 = vmatmul.mubr.bf16.gmra.mxu0 %v3146
        %v3281 = vpop.f32.mrf.mxu0
        %v3282 = vadd.f32 0.0, %v3281
        %v3283 = vpop.f32.mrf.mxu0
        %v3284 = vpop.f32.mrf.mxu0
        %v3285 = vadd.f32 0.0, %v3284
        %v3286 = vpop.f32.mrf.mxu0
        %3287 = vmatprep.mubr.bf16.mxu0 0
        %3288 = vmatmul.mubr.bf16.gmra.mxu0 %v3147
        %v3289 = vpop.f32.mrf.mxu0
        %v3290 = vadd.f32 0.0, %v3289
        %v3291 = vpop.f32.mrf.mxu0
        %v3292 = vpop.f32.mrf.mxu0
        %v3293 = vadd.f32 0.0, %v3292
        %v3294 = vpop.f32.mrf.mxu0
        %3295 = vmatprep.mubr.bf16.mxu0 0
        %3296 = vmatmul.mubr.bf16.gmra.mxu0 %v3148
        %v3297 = vpop.f32.mrf.mxu0
        %v3298 = vadd.f32 0.0, %v3297
        %v3299 = vpop.f32.mrf.mxu0
        %v3300 = vpop.f32.mrf.mxu0
        %v3301 = vadd.f32 0.0, %v3300
        %v3302 = vpop.f32.mrf.mxu0
        %3303 = vmatprep.mubr.bf16.mxu0 0
        %3304 = vmatmul.mubr.bf16.gmra.mxu0 %v3149
        %v3305 = vpop.f32.mrf.mxu0
        %v3306 = vadd.f32 0.0, %v3305
        %v3307 = vpop.f32.mrf.mxu0
        %v3308 = vpop.f32.mrf.mxu0
        %v3309 = vadd.f32 0.0, %v3308
        %v3310 = vpop.f32.mrf.mxu0
        %3311 = vmatprep.mubr.bf16.mxu0 0
        %3312 = vmatmul.mubr.bf16.gmra.mxu0 %v3150
        %v3313 = vpop.f32.mrf.mxu0
        %v3314 = vadd.f32 0.0, %v3313
        %v3315 = vpop.f32.mrf.mxu0
        %v3316 = vpop.f32.mrf.mxu0
        %v3317 = vadd.f32 0.0, %v3316
        %v3318 = vpop.f32.mrf.mxu0
        %3319 = vmatprep.mubr.bf16.mxu0 0
        %3320 = vmatmul.mubr.bf16.gmra.mxu0 %v3151
        %v3321 = vpop.f32.mrf.mxu0
        %v3322 = vadd.f32 0.0, %v3321
        %v3323 = vpop.f32.mrf.mxu0
        %v3324 = vpop.f32.mrf.mxu0
        %v3325 = vadd.f32 0.0, %v3324
        %v3326 = vpop.f32.mrf.mxu0
        %3327 = vmatprep.mubr.bf16.mxu0 0
        %3328 = vmatmul.mubr.bf16.gmra.mxu0 %v3152
        %v3329 = vpop.f32.mrf.mxu0
        %v3330 = vadd.f32 0.0, %v3329
        %v3331 = vpop.f32.mrf.mxu0
        %v3332 = vpop.f32.mrf.mxu0
        %v3333 = vadd.f32 0.0, %v3332
        %v3334 = vpop.f32.mrf.mxu0
        %3335 = vmatprep.mubr.bf16.mxu0 0
        %3336 = vmatmul.mubr.bf16.gmra.mxu0 %v3153
        %v3337 = vpop.f32.mrf.mxu0
        %v3338 = vadd.f32 0.0, %v3337
        %v3339 = vpop.f32.mrf.mxu0
        %v3340 = vpop.f32.mrf.mxu0
        %v3341 = vadd.f32 0.0, %v3340
        %v3342 = vpop.f32.mrf.mxu0
        %3343 = vmatprep.mubr.bf16.mxu0 0
        %3344 = vmatmul.mubr.bf16.gmra.mxu0 %v3154
        %v3345 = vpop.f32.mrf.mxu0
        %v3346 = vadd.f32 0.0, %v3345
        %v3347 = vpop.f32.mrf.mxu0
        %v3348 = vpop.f32.mrf.mxu0
        %v3349 = vadd.f32 0.0, %v3348
        %v3350 = vpop.f32.mrf.mxu0
        %3351 = vmatprep.mubr.bf16.mxu0 0
        %3352 = vmatmul.mubr.bf16.gmra.mxu0 %v3155
        %v3353 = vpop.f32.mrf.mxu0
        %v3354 = vadd.f32 0.0, %v3353
        %v3355 = vpop.f32.mrf.mxu0
        %v3356 = vpop.f32.mrf.mxu0
        %v3357 = vadd.f32 0.0, %v3356
        %v3358 = vpop.f32.mrf.mxu0
        %3359 = vmatprep.mubr.bf16.mxu0 0
        %3360 = vmatmul.mubr.bf16.gmra.mxu0 %v3156
        %v3361 = vpop.f32.mrf.mxu0
        %v3362 = vadd.f32 0.0, %v3361
        %v3363 = vpop.f32.mrf.mxu0
        %v3364 = vpop.f32.mrf.mxu0
        %v3365 = vadd.f32 0.0, %v3364
        %v3366 = vpop.f32.mrf.mxu0
        %3367 = vmatprep.mubr.bf16.mxu0 0
        %3368 = vmatmul.mubr.bf16.gmra.mxu0 %v3157
        %v3369 = vpop.f32.mrf.mxu0
        %v3370 = vadd.f32 0.0, %v3369
        %v3371 = vpop.f32.mrf.mxu0
        %v3372 = vpop.f32.mrf.mxu0
        %v3373 = vadd.f32 0.0, %v3372
        %v3374 = vpop.f32.mrf.mxu0
        %3375 = vmatprep.mubr.bf16.mxu0 0
        %3376 = vmatmul.mubr.bf16.gmra.mxu0 %v3158
        %v3377 = vpop.f32.mrf.mxu0
        %v3378 = vadd.f32 0.0, %v3377
        %v3379 = vpop.f32.mrf.mxu0
        %v3380 = vpop.f32.mrf.mxu0
        %v3381 = vadd.f32 0.0, %v3380
        %v3382 = vpop.f32.mrf.mxu0
        %3383 = vdwg.mxu0
        %v3384 = vadd.f32 %v2185, %v3258
        %v3385 = vadd.f32 %v2188, %v3261
        %v3386 = vadd.f32 %v2193, %v3266
        %v3387 = vadd.f32 %v2196, %v3269
        %v3388 = vadd.f32 %v2201, %v3274
        %v3389 = vadd.f32 %v2204, %v3277
        %v3390 = vadd.f32 %v2209, %v3282
        %v3391 = vadd.f32 %v2212, %v3285
        %v3392 = vadd.f32 %v2217, %v3290
        %v3393 = vadd.f32 %v2220, %v3293
        %v3394 = vadd.f32 %v2225, %v3298
        %v3395 = vadd.f32 %v2228, %v3301
        %v3396 = vadd.f32 %v2233, %v3306
        %v3397 = vadd.f32 %v2236, %v3309
        %v3398 = vadd.f32 %v2241, %v3314
        %v3399 = vadd.f32 %v2244, %v3317
        %v3400 = vadd.f32 %v2249, %v3322
        %v3401 = vadd.f32 %v2252, %v3325
        %v3402 = vadd.f32 %v2257, %v3330
        %v3403 = vadd.f32 %v2260, %v3333
        %v3404 = vadd.f32 %v2265, %v3338
        %v3405 = vadd.f32 %v2268, %v3341
        %v3406 = vadd.f32 %v2273, %v3346
        %v3407 = vadd.f32 %v2276, %v3349
        %v3408 = vadd.f32 %v2281, %v3354
        %v3409 = vadd.f32 %v2284, %v3357
        %v3410 = vadd.f32 %v2289, %v3362
        %v3411 = vadd.f32 %v2292, %v3365
        %v3412 = vadd.f32 %v2297, %v3370
        %v3413 = vadd.f32 %v2300, %v3373
        %v3414 = vadd.f32 %v2305, %v3378
        %v3415 = vadd.f32 %v2308, %v3381
        %3416 = vst [vmem:[%s1025 + $0x8] sm:$0xff] %v3111
        %3417 = vst [vmem:[%s1025 + $0x10] sm:$0xff] %v3112
        %3418 = vst [vmem:[%s1025 + $0x28] sm:$0xff] %v3113
        %3419 = vst [vmem:[%s1025 + $0x30] sm:$0xff] %v3114
        %3420 = vst [vmem:[%s1025 + $0x48] sm:$0xff] %v3115
        %3421 = vst [vmem:[%s1025 + $0x50] sm:$0xff] %v3116
        %3422 = vst [vmem:[%s1025 + $0x68] sm:$0xff] %v3117
        %3423 = vst [vmem:[%s1025 + $0x70] sm:$0xff] %v3118
        %3424 = vst [vmem:[%s1025 + $0x88] sm:$0xff] %v3119
        %3425 = vst [vmem:[%s1025 + $0x90] sm:$0xff] %v3120
        %3426 = vst [vmem:[%s1025 + $0xa8] sm:$0xff] %v3121
        %3427 = vst [vmem:[%s1025 + $0xb0] sm:$0xff] %v3122
        %3428 = vst [vmem:[%s1025 + $0xc8] sm:$0xff] %v3123
        %3429 = vst [vmem:[%s1025 + $0xd0] sm:$0xff] %v3124
        %3430 = vst [vmem:[%s1025 + $0xe8] sm:$0xff] %v3125
        %3431 = vst [vmem:[%s1025 + $0xf0] sm:$0xff] %v3126
        %3432 = vst [vmem:[%s1025 + $0x108] sm:$0xff] %v3127
        %3433 = vst [vmem:[%s1025 + $0x110] sm:$0xff] %v3128
        %3434 = vst [vmem:[%s1025 + $0x128] sm:$0xff] %v3129
        %3435 = vst [vmem:[%s1025 + $0x130] sm:$0xff] %v3130
        %3436 = vst [vmem:[%s1025 + $0x148] sm:$0xff] %v3131
        %3437 = vst [vmem:[%s1025 + $0x150] sm:$0xff] %v3132
        %3438 = vst [vmem:[%s1025 + $0x168] sm:$0xff] %v3133
        %3439 = vst [vmem:[%s1025 + $0x170] sm:$0xff] %v3134
        %3440 = vst [vmem:[%s1025 + $0x188] sm:$0xff] %v3135
        %3441 = vst [vmem:[%s1025 + $0x190] sm:$0xff] %v3136
        %3442 = vst [vmem:[%s1025 + $0x1a8] sm:$0xff] %v3137
        %3443 = vst [vmem:[%s1025 + $0x1b0] sm:$0xff] %v3138
        %3444 = vst [vmem:[%s1025 + $0x1c8] sm:$0xff] %v3139
        %3445 = vst [vmem:[%s1025 + $0x1d0] sm:$0xff] %v3140
        %3446 = vst [vmem:[%s1025 + $0x1e8] sm:$0xff] %v3141
        %3447 = vst [vmem:[%s1025 + $0x1f0] sm:$0xff] %v3142
        %v3448 = vld [vmem:[%s1025 + $0x6] sm:$0xff]
        %v3449 = vld [vmem:[%s1025 + $0xe] sm:$0xff]
        %v3450 = vld [vmem:[%s1025 + $0x26] sm:$0xff]
        %v3451 = vld [vmem:[%s1025 + $0x2e] sm:$0xff]
        %v3452 = vld [vmem:[%s1025 + $0x46] sm:$0xff]
        %v3453 = vld [vmem:[%s1025 + $0x4e] sm:$0xff]
        %v3454 = vld [vmem:[%s1025 + $0x66] sm:$0xff]
        %v3455 = vld [vmem:[%s1025 + $0x6e] sm:$0xff]
        %v3456 = vld [vmem:[%s1025 + $0x86] sm:$0xff]
        %v3457 = vld [vmem:[%s1025 + $0x8e] sm:$0xff]
        %v3458 = vld [vmem:[%s1025 + $0xa6] sm:$0xff]
        %v3459 = vld [vmem:[%s1025 + $0xae] sm:$0xff]
        %v3460 = vld [vmem:[%s1025 + $0xc6] sm:$0xff]
        %v3461 = vld [vmem:[%s1025 + $0xce] sm:$0xff]
        %v3462 = vld [vmem:[%s1025 + $0xe6] sm:$0xff]
        %v3463 = vld [vmem:[%s1025 + $0xee] sm:$0xff]
        %v3464 = vld [vmem:[%s1025 + $0x106] sm:$0xff]
        %v3465 = vld [vmem:[%s1025 + $0x10e] sm:$0xff]
        %v3466 = vld [vmem:[%s1025 + $0x126] sm:$0xff]
        %v3467 = vld [vmem:[%s1025 + $0x12e] sm:$0xff]
        %v3468 = vld [vmem:[%s1025 + $0x146] sm:$0xff]
        %v3469 = vld [vmem:[%s1025 + $0x14e] sm:$0xff]
        %v3470 = vld [vmem:[%s1025 + $0x166] sm:$0xff]
        %v3471 = vld [vmem:[%s1025 + $0x16e] sm:$0xff]
        %v3472 = vld [vmem:[%s1025 + $0x186] sm:$0xff]
        %v3473 = vld [vmem:[%s1025 + $0x18e] sm:$0xff]
        %v3474 = vld [vmem:[%s1025 + $0x1a6] sm:$0xff]
        %v3475 = vld [vmem:[%s1025 + $0x1ae] sm:$0xff]
        %v3476 = vld [vmem:[%s1025 + $0x1c6] sm:$0xff]
        %v3477 = vld [vmem:[%s1025 + $0x1ce] sm:$0xff]
        %v3478 = vld [vmem:[%s1025 + $0x1e6] sm:$0xff]
        %v3479 = vld [vmem:[%s1025 + $0x1ee] sm:$0xff]
        %v3480 = vsel %vm985, %v3448, -3e+38
        %v3481 = vsel %vm986, %v3449, -3e+38
        %v3482 = vsel %vm985, %v3450, -3e+38
        %v3483 = vsel %vm986, %v3451, -3e+38
        %v3484 = vsel %vm985, %v3452, -3e+38
        %v3485 = vsel %vm986, %v3453, -3e+38
        %v3486 = vsel %vm985, %v3454, -3e+38
        %v3487 = vsel %vm986, %v3455, -3e+38
        %v3488 = vsel %vm985, %v3456, -3e+38
        %v3489 = vsel %vm986, %v3457, -3e+38
        %v3490 = vsel %vm985, %v3458, -3e+38
        %v3491 = vsel %vm986, %v3459, -3e+38
        %v3492 = vsel %vm985, %v3460, -3e+38
        %v3493 = vsel %vm986, %v3461, -3e+38
        %v3494 = vsel %vm985, %v3462, -3e+38
        %v3495 = vsel %vm986, %v3463, -3e+38
        %v3496 = vsel %vm985, %v3464, -3e+38
        %v3497 = vsel %vm986, %v3465, -3e+38
        %v3498 = vsel %vm985, %v3466, -3e+38
        %v3499 = vsel %vm986, %v3467, -3e+38
        %v3500 = vsel %vm985, %v3468, -3e+38
        %v3501 = vsel %vm986, %v3469, -3e+38
        %v3502 = vsel %vm985, %v3470, -3e+38
        %v3503 = vsel %vm986, %v3471, -3e+38
        %v3504 = vsel %vm985, %v3472, -3e+38
        %v3505 = vsel %vm986, %v3473, -3e+38
        %v3506 = vsel %vm985, %v3474, -3e+38
        %v3507 = vsel %vm986, %v3475, -3e+38
        %v3508 = vsel %vm985, %v3476, -3e+38
        %v3509 = vsel %vm986, %v3477, -3e+38
        %v3510 = vsel %vm985, %v3478, -3e+38
        %v3511 = vsel %vm986, %v3479, -3e+38
        %v3512 = vld [vmem:[%s1025 + $0x7] sm:$0xff]
        %v3513 = vld [vmem:[%s1025 + $0xf] sm:$0xff]
        %v3514 = vld [vmem:[%s1025 + $0x27] sm:$0xff]
        %v3515 = vld [vmem:[%s1025 + $0x2f] sm:$0xff]
        %v3516 = vld [vmem:[%s1025 + $0x47] sm:$0xff]
        %v3517 = vld [vmem:[%s1025 + $0x4f] sm:$0xff]
        %v3518 = vld [vmem:[%s1025 + $0x67] sm:$0xff]
        %v3519 = vld [vmem:[%s1025 + $0x6f] sm:$0xff]
        %v3520 = vld [vmem:[%s1025 + $0x87] sm:$0xff]
        %v3521 = vld [vmem:[%s1025 + $0x8f] sm:$0xff]
        %v3522 = vld [vmem:[%s1025 + $0xa7] sm:$0xff]
        %v3523 = vld [vmem:[%s1025 + $0xaf] sm:$0xff]
        %v3524 = vld [vmem:[%s1025 + $0xc7] sm:$0xff]
        %v3525 = vld [vmem:[%s1025 + $0xcf] sm:$0xff]
        %v3526 = vld [vmem:[%s1025 + $0xe7] sm:$0xff]
        %v3527 = vld [vmem:[%s1025 + $0xef] sm:$0xff]
        %v3528 = vld [vmem:[%s1025 + $0x107] sm:$0xff]
        %v3529 = vld [vmem:[%s1025 + $0x10f] sm:$0xff]
        %v3530 = vld [vmem:[%s1025 + $0x127] sm:$0xff]
        %v3531 = vld [vmem:[%s1025 + $0x12f] sm:$0xff]
        %v3532 = vld [vmem:[%s1025 + $0x147] sm:$0xff]
        %v3533 = vld [vmem:[%s1025 + $0x14f] sm:$0xff]
        %v3534 = vld [vmem:[%s1025 + $0x167] sm:$0xff]
        %v3535 = vld [vmem:[%s1025 + $0x16f] sm:$0xff]
        %v3536 = vld [vmem:[%s1025 + $0x187] sm:$0xff]
        %v3537 = vld [vmem:[%s1025 + $0x18f] sm:$0xff]
        %v3538 = vld [vmem:[%s1025 + $0x1a7] sm:$0xff]
        %v3539 = vld [vmem:[%s1025 + $0x1af] sm:$0xff]
        %v3540 = vld [vmem:[%s1025 + $0x1c7] sm:$0xff]
        %v3541 = vld [vmem:[%s1025 + $0x1cf] sm:$0xff]
        %v3542 = vld [vmem:[%s1025 + $0x1e7] sm:$0xff]
        %v3543 = vld [vmem:[%s1025 + $0x1ef] sm:$0xff]
        %v3544 = vsel %vm987, %v3512, -3e+38
        %v3545 = vsel %vm988, %v3513, -3e+38
        %v3546 = vsel %vm987, %v3514, -3e+38
        %v3547 = vsel %vm988, %v3515, -3e+38
        %v3548 = vsel %vm987, %v3516, -3e+38
        %v3549 = vsel %vm988, %v3517, -3e+38
        %v3550 = vsel %vm987, %v3518, -3e+38
        %v3551 = vsel %vm988, %v3519, -3e+38
        %v3552 = vsel %vm987, %v3520, -3e+38
        %v3553 = vsel %vm988, %v3521, -3e+38
        %v3554 = vsel %vm987, %v3522, -3e+38
        %v3555 = vsel %vm988, %v3523, -3e+38
        %v3556 = vsel %vm987, %v3524, -3e+38
        %v3557 = vsel %vm988, %v3525, -3e+38
        %v3558 = vsel %vm987, %v3526, -3e+38
        %v3559 = vsel %vm988, %v3527, -3e+38
        %v3560 = vsel %vm987, %v3528, -3e+38
        %v3561 = vsel %vm988, %v3529, -3e+38
        %v3562 = vsel %vm987, %v3530, -3e+38
        %v3563 = vsel %vm988, %v3531, -3e+38
        %v3564 = vsel %vm987, %v3532, -3e+38
        %v3565 = vsel %vm988, %v3533, -3e+38
        %v3566 = vsel %vm987, %v3534, -3e+38
        %v3567 = vsel %vm988, %v3535, -3e+38
        %v3568 = vsel %vm987, %v3536, -3e+38
        %v3569 = vsel %vm988, %v3537, -3e+38
        %v3570 = vsel %vm987, %v3538, -3e+38
        %v3571 = vsel %vm988, %v3539, -3e+38
        %v3572 = vsel %vm987, %v3540, -3e+38
        %v3573 = vsel %vm988, %v3541, -3e+38
        %v3574 = vsel %vm987, %v3542, -3e+38
        %v3575 = vsel %vm988, %v3543, -3e+38
        %v3576 = vmax.f32 %v3480, %v3544
        %v3577 = vmax.f32 %v3481, %v3545
        %v3578 = vmax.f32 %v3482, %v3546
        %v3579 = vmax.f32 %v3483, %v3547
        %v3580 = vmax.f32 %v3484, %v3548
        %v3581 = vmax.f32 %v3485, %v3549
        %v3582 = vmax.f32 %v3486, %v3550
        %v3583 = vmax.f32 %v3487, %v3551
        %v3584 = vmax.f32 %v3488, %v3552
        %v3585 = vmax.f32 %v3489, %v3553
        %v3586 = vmax.f32 %v3490, %v3554
        %v3587 = vmax.f32 %v3491, %v3555
        %v3588 = vmax.f32 %v3492, %v3556
        %v3589 = vmax.f32 %v3493, %v3557
        %v3590 = vmax.f32 %v3494, %v3558
        %v3591 = vmax.f32 %v3495, %v3559
        %v3592 = vmax.f32 %v3496, %v3560
        %v3593 = vmax.f32 %v3497, %v3561
        %v3594 = vmax.f32 %v3498, %v3562
        %v3595 = vmax.f32 %v3499, %v3563
        %v3596 = vmax.f32 %v3500, %v3564
        %v3597 = vmax.f32 %v3501, %v3565
        %v3598 = vmax.f32 %v3502, %v3566
        %v3599 = vmax.f32 %v3503, %v3567
        %v3600 = vmax.f32 %v3504, %v3568
        %v3601 = vmax.f32 %v3505, %v3569
        %v3602 = vmax.f32 %v3506, %v3570
        %v3603 = vmax.f32 %v3507, %v3571
        %v3604 = vmax.f32 %v3508, %v3572
        %v3605 = vmax.f32 %v3509, %v3573
        %v3606 = vmax.f32 %v3510, %v3574
        %v3607 = vmax.f32 %v3511, %v3575
        %v3608 = vmax.f32 %v3111, %v3576
        %v3609 = vmax.f32 %v3112, %v3577
        %v3610 = vmax.f32 %v3113, %v3578
        %v3611 = vmax.f32 %v3114, %v3579
        %v3612 = vmax.f32 %v3115, %v3580
        %v3613 = vmax.f32 %v3116, %v3581
        %v3614 = vmax.f32 %v3117, %v3582
        %v3615 = vmax.f32 %v3118, %v3583
        %v3616 = vmax.f32 %v3119, %v3584
        %v3617 = vmax.f32 %v3120, %v3585
        %v3618 = vmax.f32 %v3121, %v3586
        %v3619 = vmax.f32 %v3122, %v3587
        %v3620 = vmax.f32 %v3123, %v3588
        %v3621 = vmax.f32 %v3124, %v3589
        %v3622 = vmax.f32 %v3125, %v3590
        %v3623 = vmax.f32 %v3126, %v3591
        %v3624 = vmax.f32 %v3127, %v3592
        %v3625 = vmax.f32 %v3128, %v3593
        %v3626 = vmax.f32 %v3129, %v3594
        %v3627 = vmax.f32 %v3130, %v3595
        %v3628 = vmax.f32 %v3131, %v3596
        %v3629 = vmax.f32 %v3132, %v3597
        %v3630 = vmax.f32 %v3133, %v3598
        %v3631 = vmax.f32 %v3134, %v3599
        %v3632 = vmax.f32 %v3135, %v3600
        %v3633 = vmax.f32 %v3136, %v3601
        %v3634 = vmax.f32 %v3137, %v3602
        %v3635 = vmax.f32 %v3138, %v3603
        %v3636 = vmax.f32 %v3139, %v3604
        %v3637 = vmax.f32 %v3140, %v3605
        %v3638 = vmax.f32 %v3141, %v3606
        %v3639 = vmax.f32 %v3142, %v3607
        %v3640 = vld [vmem:[%s1025 + $0x9] sm:$0xff]
        %v3641 = vld [vmem:[%s1025 + $0x11] sm:$0xff]
        %v3642 = vld [vmem:[%s1025 + $0x29] sm:$0xff]
        %v3643 = vld [vmem:[%s1025 + $0x31] sm:$0xff]
        %v3644 = vld [vmem:[%s1025 + $0x49] sm:$0xff]
        %v3645 = vld [vmem:[%s1025 + $0x51] sm:$0xff]
        %v3646 = vld [vmem:[%s1025 + $0x69] sm:$0xff]
        %v3647 = vld [vmem:[%s1025 + $0x71] sm:$0xff]
        %v3648 = vld [vmem:[%s1025 + $0x89] sm:$0xff]
        %v3649 = vld [vmem:[%s1025 + $0x91] sm:$0xff]
        %v3650 = vld [vmem:[%s1025 + $0xa9] sm:$0xff]
        %v3651 = vld [vmem:[%s1025 + $0xb1] sm:$0xff]
        %v3652 = vld [vmem:[%s1025 + $0xc9] sm:$0xff]
        %v3653 = vld [vmem:[%s1025 + $0xd1] sm:$0xff]
        %v3654 = vld [vmem:[%s1025 + $0xe9] sm:$0xff]
        %v3655 = vld [vmem:[%s1025 + $0xf1] sm:$0xff]
        %v3656 = vld [vmem:[%s1025 + $0x109] sm:$0xff]
        %v3657 = vld [vmem:[%s1025 + $0x111] sm:$0xff]
        %v3658 = vld [vmem:[%s1025 + $0x129] sm:$0xff]
        %v3659 = vld [vmem:[%s1025 + $0x131] sm:$0xff]
        %v3660 = vld [vmem:[%s1025 + $0x149] sm:$0xff]
        %v3661 = vld [vmem:[%s1025 + $0x151] sm:$0xff]
        %v3662 = vld [vmem:[%s1025 + $0x169] sm:$0xff]
        %v3663 = vld [vmem:[%s1025 + $0x171] sm:$0xff]
        %v3664 = vld [vmem:[%s1025 + $0x189] sm:$0xff]
        %v3665 = vld [vmem:[%s1025 + $0x191] sm:$0xff]
        %v3666 = vld [vmem:[%s1025 + $0x1a9] sm:$0xff]
        %v3667 = vld [vmem:[%s1025 + $0x1b1] sm:$0xff]
        %v3668 = vld [vmem:[%s1025 + $0x1c9] sm:$0xff]
        %v3669 = vld [vmem:[%s1025 + $0x1d1] sm:$0xff]
        %v3670 = vld [vmem:[%s1025 + $0x1e9] sm:$0xff]
        %v3671 = vld [vmem:[%s1025 + $0x1f1] sm:$0xff]
        %v3672 = vsel %vm989, %v3640, -3e+38
        %v3673 = vsel %vm990, %v3641, -3e+38
        %v3674 = vsel %vm989, %v3642, -3e+38
        %v3675 = vsel %vm990, %v3643, -3e+38
        %v3676 = vsel %vm989, %v3644, -3e+38
        %v3677 = vsel %vm990, %v3645, -3e+38
        %v3678 = vsel %vm989, %v3646, -3e+38
        %v3679 = vsel %vm990, %v3647, -3e+38
        %v3680 = vsel %vm989, %v3648, -3e+38
        %v3681 = vsel %vm990, %v3649, -3e+38
        %v3682 = vsel %vm989, %v3650, -3e+38
        %v3683 = vsel %vm990, %v3651, -3e+38
        %v3684 = vsel %vm989, %v3652, -3e+38
        %v3685 = vsel %vm990, %v3653, -3e+38
        %v3686 = vsel %vm989, %v3654, -3e+38
        %v3687 = vsel %vm990, %v3655, -3e+38
        %v3688 = vsel %vm989, %v3656, -3e+38
        %v3689 = vsel %vm990, %v3657, -3e+38
        %v3690 = vsel %vm989, %v3658, -3e+38
        %v3691 = vsel %vm990, %v3659, -3e+38
        %v3692 = vsel %vm989, %v3660, -3e+38
        %v3693 = vsel %vm990, %v3661, -3e+38
        %v3694 = vsel %vm989, %v3662, -3e+38
        %v3695 = vsel %vm990, %v3663, -3e+38
        %v3696 = vsel %vm989, %v3664, -3e+38
        %v3697 = vsel %vm990, %v3665, -3e+38
        %v3698 = vsel %vm989, %v3666, -3e+38
        %v3699 = vsel %vm990, %v3667, -3e+38
        %v3700 = vsel %vm989, %v3668, -3e+38
        %v3701 = vsel %vm990, %v3669, -3e+38
        %v3702 = vsel %vm989, %v3670, -3e+38
        %v3703 = vsel %vm990, %v3671, -3e+38
        %v3704 = vld [vmem:[%s1025 + $0xa] sm:$0xff]
        %v3705 = vld [vmem:[%s1025 + $0x12] sm:$0xff]
        %v3706 = vld [vmem:[%s1025 + $0x2a] sm:$0xff]
        %v3707 = vld [vmem:[%s1025 + $0x32] sm:$0xff]
        %v3708 = vld [vmem:[%s1025 + $0x4a] sm:$0xff]
        %v3709 = vld [vmem:[%s1025 + $0x52] sm:$0xff]
        %v3710 = vld [vmem:[%s1025 + $0x6a] sm:$0xff]
        %v3711 = vld [vmem:[%s1025 + $0x72] sm:$0xff]
        %v3712 = vld [vmem:[%s1025 + $0x8a] sm:$0xff]
        %v3713 = vld [vmem:[%s1025 + $0x92] sm:$0xff]
        %v3714 = vld [vmem:[%s1025 + $0xaa] sm:$0xff]
        %v3715 = vld [vmem:[%s1025 + $0xb2] sm:$0xff]
        %v3716 = vld [vmem:[%s1025 + $0xca] sm:$0xff]
        %v3717 = vld [vmem:[%s1025 + $0xd2] sm:$0xff]
        %v3718 = vld [vmem:[%s1025 + $0xea] sm:$0xff]
        %v3719 = vld [vmem:[%s1025 + $0xf2] sm:$0xff]
        %v3720 = vld [vmem:[%s1025 + $0x10a] sm:$0xff]
        %v3721 = vld [vmem:[%s1025 + $0x112] sm:$0xff]
        %v3722 = vld [vmem:[%s1025 + $0x12a] sm:$0xff]
        %v3723 = vld [vmem:[%s1025 + $0x132] sm:$0xff]
        %v3724 = vld [vmem:[%s1025 + $0x14a] sm:$0xff]
        %v3725 = vld [vmem:[%s1025 + $0x152] sm:$0xff]
        %v3726 = vld [vmem:[%s1025 + $0x16a] sm:$0xff]
        %v3727 = vld [vmem:[%s1025 + $0x172] sm:$0xff]
        %v3728 = vld [vmem:[%s1025 + $0x18a] sm:$0xff]
        %v3729 = vld [vmem:[%s1025 + $0x192] sm:$0xff]
        %v3730 = vld [vmem:[%s1025 + $0x1aa] sm:$0xff]
        %v3731 = vld [vmem:[%s1025 + $0x1b2] sm:$0xff]
        %v3732 = vld [vmem:[%s1025 + $0x1ca] sm:$0xff]
        %v3733 = vld [vmem:[%s1025 + $0x1d2] sm:$0xff]
        %v3734 = vld [vmem:[%s1025 + $0x1ea] sm:$0xff]
        %v3735 = vld [vmem:[%s1025 + $0x1f2] sm:$0xff]
        %v3736 = vsel %vm991, %v3704, -3e+38
        %v3737 = vsel %vm992, %v3705, -3e+38
        %v3738 = vsel %vm991, %v3706, -3e+38
        %v3739 = vsel %vm992, %v3707, -3e+38
        %v3740 = vsel %vm991, %v3708, -3e+38
        %v3741 = vsel %vm992, %v3709, -3e+38
        %v3742 = vsel %vm991, %v3710, -3e+38
        %v3743 = vsel %vm992, %v3711, -3e+38
        %v3744 = vsel %vm991, %v3712, -3e+38
        %v3745 = vsel %vm992, %v3713, -3e+38
        %v3746 = vsel %vm991, %v3714, -3e+38
        %v3747 = vsel %vm992, %v3715, -3e+38
        %v3748 = vsel %vm991, %v3716, -3e+38
        %v3749 = vsel %vm992, %v3717, -3e+38
        %v3750 = vsel %vm991, %v3718, -3e+38
        %v3751 = vsel %vm992, %v3719, -3e+38
        %v3752 = vsel %vm991, %v3720, -3e+38
        %v3753 = vsel %vm992, %v3721, -3e+38
        %v3754 = vsel %vm991, %v3722, -3e+38
        %v3755 = vsel %vm992, %v3723, -3e+38
        %v3756 = vsel %vm991, %v3724, -3e+38
        %v3757 = vsel %vm992, %v3725, -3e+38
        %v3758 = vsel %vm991, %v3726, -3e+38
        %v3759 = vsel %vm992, %v3727, -3e+38
        %v3760 = vsel %vm991, %v3728, -3e+38
        %v3761 = vsel %vm992, %v3729, -3e+38
        %v3762 = vsel %vm991, %v3730, -3e+38
        %v3763 = vsel %vm992, %v3731, -3e+38
        %v3764 = vsel %vm991, %v3732, -3e+38
        %v3765 = vsel %vm992, %v3733, -3e+38
        %v3766 = vsel %vm991, %v3734, -3e+38
        %v3767 = vsel %vm992, %v3735, -3e+38
        %v3768 = vmax.f32 %v3672, %v3736
        %v3769 = vmax.f32 %v3673, %v3737
        %v3770 = vmax.f32 %v3674, %v3738
        %v3771 = vmax.f32 %v3675, %v3739
        %v3772 = vmax.f32 %v3676, %v3740
        %v3773 = vmax.f32 %v3677, %v3741
        %v3774 = vmax.f32 %v3678, %v3742
        %v3775 = vmax.f32 %v3679, %v3743
        %v3776 = vmax.f32 %v3680, %v3744
        %v3777 = vmax.f32 %v3681, %v3745
        %v3778 = vmax.f32 %v3682, %v3746
        %v3779 = vmax.f32 %v3683, %v3747
        %v3780 = vmax.f32 %v3684, %v3748
        %v3781 = vmax.f32 %v3685, %v3749
        %v3782 = vmax.f32 %v3686, %v3750
        %v3783 = vmax.f32 %v3687, %v3751
        %v3784 = vmax.f32 %v3688, %v3752
        %v3785 = vmax.f32 %v3689, %v3753
        %v3786 = vmax.f32 %v3690, %v3754
        %v3787 = vmax.f32 %v3691, %v3755
        %v3788 = vmax.f32 %v3692, %v3756
        %v3789 = vmax.f32 %v3693, %v3757
        %v3790 = vmax.f32 %v3694, %v3758
        %v3791 = vmax.f32 %v3695, %v3759
        %v3792 = vmax.f32 %v3696, %v3760
        %v3793 = vmax.f32 %v3697, %v3761
        %v3794 = vmax.f32 %v3698, %v3762
        %v3795 = vmax.f32 %v3699, %v3763
        %v3796 = vmax.f32 %v3700, %v3764
        %v3797 = vmax.f32 %v3701, %v3765
        %v3798 = vmax.f32 %v3702, %v3766
        %v3799 = vmax.f32 %v3703, %v3767
        %v3800 = vmax.f32 %v3608, %v3768
        %v3801 = vmax.f32 %v3609, %v3769
        %v3802 = vmax.f32 %v3610, %v3770
        %v3803 = vmax.f32 %v3611, %v3771
        %v3804 = vmax.f32 %v3612, %v3772
        %v3805 = vmax.f32 %v3613, %v3773
        %v3806 = vmax.f32 %v3614, %v3774
        %v3807 = vmax.f32 %v3615, %v3775
        %v3808 = vmax.f32 %v3616, %v3776
        %v3809 = vmax.f32 %v3617, %v3777
        %v3810 = vmax.f32 %v3618, %v3778
        %v3811 = vmax.f32 %v3619, %v3779
        %v3812 = vmax.f32 %v3620, %v3780
        %v3813 = vmax.f32 %v3621, %v3781
        %v3814 = vmax.f32 %v3622, %v3782
        %v3815 = vmax.f32 %v3623, %v3783
        %v3816 = vmax.f32 %v3624, %v3784
        %v3817 = vmax.f32 %v3625, %v3785
        %v3818 = vmax.f32 %v3626, %v3786
        %v3819 = vmax.f32 %v3627, %v3787
        %v3820 = vmax.f32 %v3628, %v3788
        %v3821 = vmax.f32 %v3629, %v3789
        %v3822 = vmax.f32 %v3630, %v3790
        %v3823 = vmax.f32 %v3631, %v3791
        %v3824 = vmax.f32 %v3632, %v3792
        %v3825 = vmax.f32 %v3633, %v3793
        %v3826 = vmax.f32 %v3634, %v3794
        %v3827 = vmax.f32 %v3635, %v3795
        %v3828 = vmax.f32 %v3636, %v3796
        %v3829 = vmax.f32 %v3637, %v3797
        %v3830 = vmax.f32 %v3638, %v3798
        %v3831 = vmax.f32 %v3639, %v3799
        %3832 = vst [vmem:[%s1025 + $0x8] sm:$0xff] %v3800
        %3833 = vst [vmem:[%s1025 + $0x10] sm:$0xff] %v3801
        %3834 = vst [vmem:[%s1025 + $0x28] sm:$0xff] %v3802
        %3835 = vst [vmem:[%s1025 + $0x30] sm:$0xff] %v3803
        %3836 = vst [vmem:[%s1025 + $0x48] sm:$0xff] %v3804
        %3837 = vst [vmem:[%s1025 + $0x50] sm:$0xff] %v3805
        %3838 = vst [vmem:[%s1025 + $0x68] sm:$0xff] %v3806
        %3839 = vst [vmem:[%s1025 + $0x70] sm:$0xff] %v3807
        %3840 = vst [vmem:[%s1025 + $0x88] sm:$0xff] %v3808
        %3841 = vst [vmem:[%s1025 + $0x90] sm:$0xff] %v3809
        %3842 = vst [vmem:[%s1025 + $0xa8] sm:$0xff] %v3810
        %3843 = vst [vmem:[%s1025 + $0xb0] sm:$0xff] %v3811
        %3844 = vst [vmem:[%s1025 + $0xc8] sm:$0xff] %v3812
        %3845 = vst [vmem:[%s1025 + $0xd0] sm:$0xff] %v3813
        %3846 = vst [vmem:[%s1025 + $0xe8] sm:$0xff] %v3814
        %3847 = vst [vmem:[%s1025 + $0xf0] sm:$0xff] %v3815
        %3848 = vst [vmem:[%s1025 + $0x108] sm:$0xff] %v3816
        %3849 = vst [vmem:[%s1025 + $0x110] sm:$0xff] %v3817
        %3850 = vst [vmem:[%s1025 + $0x128] sm:$0xff] %v3818
        %3851 = vst [vmem:[%s1025 + $0x130] sm:$0xff] %v3819
        %3852 = vst [vmem:[%s1025 + $0x148] sm:$0xff] %v3820
        %3853 = vst [vmem:[%s1025 + $0x150] sm:$0xff] %v3821
        %3854 = vst [vmem:[%s1025 + $0x168] sm:$0xff] %v3822
        %3855 = vst [vmem:[%s1025 + $0x170] sm:$0xff] %v3823
        %3856 = vst [vmem:[%s1025 + $0x188] sm:$0xff] %v3824
        %3857 = vst [vmem:[%s1025 + $0x190] sm:$0xff] %v3825
        %3858 = vst [vmem:[%s1025 + $0x1a8] sm:$0xff] %v3826
        %3859 = vst [vmem:[%s1025 + $0x1b0] sm:$0xff] %v3827
        %3860 = vst [vmem:[%s1025 + $0x1c8] sm:$0xff] %v3828
        %3861 = vst [vmem:[%s1025 + $0x1d0] sm:$0xff] %v3829
        %3862 = vst [vmem:[%s1025 + $0x1e8] sm:$0xff] %v3830
        %3863 = vst [vmem:[%s1025 + $0x1f0] sm:$0xff] %v3831
        %v3864 = vld [vmem:[#allocation2 + $0x8] sm:$0xff]
        %v3865 = vld [vmem:[#allocation2 + $0x10] sm:$0xff]
        %v3866 = vld [vmem:[#allocation2 + $0x28] sm:$0xff]
        %v3867 = vld [vmem:[#allocation2 + $0x30] sm:$0xff]
        %v3868 = vld [vmem:[#allocation2 + $0x48] sm:$0xff]
        %v3869 = vld [vmem:[#allocation2 + $0x50] sm:$0xff]
        %v3870 = vld [vmem:[#allocation2 + $0x68] sm:$0xff]
        %v3871 = vld [vmem:[#allocation2 + $0x70] sm:$0xff]
        %v3872 = vld [vmem:[#allocation2 + $0x88] sm:$0xff]
        %v3873 = vld [vmem:[#allocation2 + $0x90] sm:$0xff]
        %v3874 = vld [vmem:[#allocation2 + $0xa8] sm:$0xff]
        %v3875 = vld [vmem:[#allocation2 + $0xb0] sm:$0xff]
        %v3876 = vld [vmem:[#allocation2 + $0xc8] sm:$0xff]
        %v3877 = vld [vmem:[#allocation2 + $0xd0] sm:$0xff]
        %v3878 = vld [vmem:[#allocation2 + $0xe8] sm:$0xff]
        %v3879 = vld [vmem:[#allocation2 + $0xf0] sm:$0xff]
        %v3880 = vld [vmem:[#allocation2 + $0x108] sm:$0xff]
        %v3881 = vld [vmem:[#allocation2 + $0x110] sm:$0xff]
        %v3882 = vld [vmem:[#allocation2 + $0x128] sm:$0xff]
        %v3883 = vld [vmem:[#allocation2 + $0x130] sm:$0xff]
        %v3884 = vld [vmem:[#allocation2 + $0x148] sm:$0xff]
        %v3885 = vld [vmem:[#allocation2 + $0x150] sm:$0xff]
        %v3886 = vld [vmem:[#allocation2 + $0x168] sm:$0xff]
        %v3887 = vld [vmem:[#allocation2 + $0x170] sm:$0xff]
        %v3888 = vld [vmem:[#allocation2 + $0x188] sm:$0xff]
        %v3889 = vld [vmem:[#allocation2 + $0x190] sm:$0xff]
        %v3890 = vld [vmem:[#allocation2 + $0x1a8] sm:$0xff]
        %v3891 = vld [vmem:[#allocation2 + $0x1b0] sm:$0xff]
        %v3892 = vld [vmem:[#allocation2 + $0x1c8] sm:$0xff]
        %v3893 = vld [vmem:[#allocation2 + $0x1d0] sm:$0xff]
        %v3894 = vld [vmem:[#allocation2 + $0x1e8] sm:$0xff]
        %v3895 = vld [vmem:[#allocation2 + $0x1f0] sm:$0xff]
        %v3896 = vsel 0, %v3864, -3e+38
        %v3897 = vsel 0, %v3865, -3e+38
        %v3898 = vsel 0, %v3866, -3e+38
        %v3899 = vsel 0, %v3867, -3e+38
        %v3900 = vsel 1, %v3868, -3e+38
        %v3901 = vsel 1, %v3869, -3e+38
        %v3902 = vsel 1, %v3870, -3e+38
        %v3903 = vsel 1, %v3871, -3e+38
        %v3904 = vsel 1, %v3872, -3e+38
        %v3905 = vsel 1, %v3873, -3e+38
        %v3906 = vsel 1, %v3874, -3e+38
        %v3907 = vsel 1, %v3875, -3e+38
        %v3908 = vsel 1, %v3876, -3e+38
        %v3909 = vsel 1, %v3877, -3e+38
        %v3910 = vsel 1, %v3878, -3e+38
        %v3911 = vsel 1, %v3879, -3e+38
        %v3912 = vsel 1, %v3880, -3e+38
        %v3913 = vsel 1, %v3881, -3e+38
        %v3914 = vsel 1, %v3882, -3e+38
        %v3915 = vsel 1, %v3883, -3e+38
        %v3916 = vsel 1, %v3884, -3e+38
        %v3917 = vsel 1, %v3885, -3e+38
        %v3918 = vsel 1, %v3886, -3e+38
        %v3919 = vsel 1, %v3887, -3e+38
        %v3920 = vsel 1, %v3888, -3e+38
        %v3921 = vsel 1, %v3889, -3e+38
        %v3922 = vsel 1, %v3890, -3e+38
        %v3923 = vsel 1, %v3891, -3e+38
        %v3924 = vsel 1, %v3892, -3e+38
        %v3925 = vsel 1, %v3893, -3e+38
        %v3926 = vsel 1, %v3894, -3e+38
        %v3927 = vsel 1, %v3895, -3e+38
        %v3928 = vld [vmem:[%s1538 + $0x8] sm:$0xff]
        %v3929 = vld [vmem:[%s1538 + $0x10] sm:$0xff]
        %v3930 = vld [vmem:[%s1538 + $0x28] sm:$0xff]
        %v3931 = vld [vmem:[%s1538 + $0x30] sm:$0xff]
        %v3932 = vld [vmem:[%s1538 + $0x48] sm:$0xff]
        %v3933 = vld [vmem:[%s1538 + $0x50] sm:$0xff]
        %v3934 = vld [vmem:[%s1538 + $0x68] sm:$0xff]
        %v3935 = vld [vmem:[%s1538 + $0x70] sm:$0xff]
        %v3936 = vld [vmem:[%s1538 + $0x88] sm:$0xff]
        %v3937 = vld [vmem:[%s1538 + $0x90] sm:$0xff]
        %v3938 = vld [vmem:[%s1538 + $0xa8] sm:$0xff]
        %v3939 = vld [vmem:[%s1538 + $0xb0] sm:$0xff]
        %v3940 = vld [vmem:[%s1538 + $0xc8] sm:$0xff]
        %v3941 = vld [vmem:[%s1538 + $0xd0] sm:$0xff]
        %v3942 = vld [vmem:[%s1538 + $0xe8] sm:$0xff]
        %v3943 = vld [vmem:[%s1538 + $0xf0] sm:$0xff]
        %v3944 = vld [vmem:[%s1538 + $0x108] sm:$0xff]
        %v3945 = vld [vmem:[%s1538 + $0x110] sm:$0xff]
        %v3946 = vld [vmem:[%s1538 + $0x128] sm:$0xff]
        %v3947 = vld [vmem:[%s1538 + $0x130] sm:$0xff]
        %v3948 = vld [vmem:[%s1538 + $0x148] sm:$0xff]
        %v3949 = vld [vmem:[%s1538 + $0x150] sm:$0xff]
        %v3950 = vld [vmem:[%s1538 + $0x168] sm:$0xff]
        %v3951 = vld [vmem:[%s1538 + $0x170] sm:$0xff]
        %v3952 = vld [vmem:[%s1538 + $0x188] sm:$0xff]
        %v3953 = vld [vmem:[%s1538 + $0x190] sm:$0xff]
        %v3954 = vld [vmem:[%s1538 + $0x1a8] sm:$0xff]
        %v3955 = vld [vmem:[%s1538 + $0x1b0] sm:$0xff]
        %v3956 = vld [vmem:[%s1538 + $0x1c8] sm:$0xff]
        %v3957 = vld [vmem:[%s1538 + $0x1d0] sm:$0xff]
        %v3958 = vld [vmem:[%s1538 + $0x1e8] sm:$0xff]
        %v3959 = vld [vmem:[%s1538 + $0x1f0] sm:$0xff]
        %v3960 = vsel 0, %v3928, -3e+38
        %v3961 = vsel 0, %v3929, -3e+38
        %v3962 = vsel 1, %v3930, -3e+38
        %v3963 = vsel 1, %v3931, -3e+38
        %v3964 = vsel 1, %v3932, -3e+38
        %v3965 = vsel 1, %v3933, -3e+38
        %v3966 = vsel 1, %v3934, -3e+38
        %v3967 = vsel 1, %v3935, -3e+38
        %v3968 = vsel 1, %v3936, -3e+38
        %v3969 = vsel 1, %v3937, -3e+38
        %v3970 = vsel 1, %v3938, -3e+38
        %v3971 = vsel 1, %v3939, -3e+38
        %v3972 = vsel 1, %v3940, -3e+38
        %v3973 = vsel 1, %v3941, -3e+38
        %v3974 = vsel 1, %v3942, -3e+38
        %v3975 = vsel 1, %v3943, -3e+38
        %v3976 = vsel 1, %v3944, -3e+38
        %v3977 = vsel 1, %v3945, -3e+38
        %v3978 = vsel 1, %v3946, -3e+38
        %v3979 = vsel 1, %v3947, -3e+38
        %v3980 = vsel 1, %v3948, -3e+38
        %v3981 = vsel 1, %v3949, -3e+38
        %v3982 = vsel 1, %v3950, -3e+38
        %v3983 = vsel 1, %v3951, -3e+38
        %v3984 = vsel 1, %v3952, -3e+38
        %v3985 = vsel 1, %v3953, -3e+38
        %v3986 = vsel 1, %v3954, -3e+38
        %v3987 = vsel 1, %v3955, -3e+38
        %v3988 = vsel 1, %v3956, -3e+38
        %v3989 = vsel 1, %v3957, -3e+38
        %v3990 = vsel 1, %v3958, -3e+38
        %v3991 = vsel 1, %v3959, -3e+38
        %v3992 = vmax.f32 %v3896, %v3960
        %v3993 = vmax.f32 %v3897, %v3961
        %v3994 = vmax.f32 %v3898, %v3962
        %v3995 = vmax.f32 %v3899, %v3963
        %v3996 = vmax.f32 %v3900, %v3964
        %v3997 = vmax.f32 %v3901, %v3965
        %v3998 = vmax.f32 %v3902, %v3966
        %v3999 = vmax.f32 %v3903, %v3967
        %v4000 = vmax.f32 %v3904, %v3968
        %v4001 = vmax.f32 %v3905, %v3969
        %v4002 = vmax.f32 %v3906, %v3970
        %v4003 = vmax.f32 %v3907, %v3971
        %v4004 = vmax.f32 %v3908, %v3972
        %v4005 = vmax.f32 %v3909, %v3973
        %v4006 = vmax.f32 %v3910, %v3974
        %v4007 = vmax.f32 %v3911, %v3975
        %v4008 = vmax.f32 %v3912, %v3976
        %v4009 = vmax.f32 %v3913, %v3977
        %v4010 = vmax.f32 %v3914, %v3978
        %v4011 = vmax.f32 %v3915, %v3979
        %v4012 = vmax.f32 %v3916, %v3980
        %v4013 = vmax.f32 %v3917, %v3981
        %v4014 = vmax.f32 %v3918, %v3982
        %v4015 = vmax.f32 %v3919, %v3983
        %v4016 = vmax.f32 %v3920, %v3984
        %v4017 = vmax.f32 %v3921, %v3985
        %v4018 = vmax.f32 %v3922, %v3986
        %v4019 = vmax.f32 %v3923, %v3987
        %v4020 = vmax.f32 %v3924, %v3988
        %v4021 = vmax.f32 %v3925, %v3989
        %v4022 = vmax.f32 %v3926, %v3990
        %v4023 = vmax.f32 %v3927, %v3991
        %v4024 = vmax.f32 %v3800, %v3992
        %v4025 = vmax.f32 %v3801, %v3993
        %v4026 = vmax.f32 %v3802, %v3994
        %v4027 = vmax.f32 %v3803, %v3995
        %v4028 = vmax.f32 %v3804, %v3996
        %v4029 = vmax.f32 %v3805, %v3997
        %v4030 = vmax.f32 %v3806, %v3998
        %v4031 = vmax.f32 %v3807, %v3999
        %v4032 = vmax.f32 %v3808, %v4000
        %v4033 = vmax.f32 %v3809, %v4001
        %v4034 = vmax.f32 %v3810, %v4002
        %v4035 = vmax.f32 %v3811, %v4003
        %v4036 = vmax.f32 %v3812, %v4004
        %v4037 = vmax.f32 %v3813, %v4005
        %v4038 = vmax.f32 %v3814, %v4006
        %v4039 = vmax.f32 %v3815, %v4007
        %v4040 = vmax.f32 %v3816, %v4008
        %v4041 = vmax.f32 %v3817, %v4009
        %v4042 = vmax.f32 %v3818, %v4010
        %v4043 = vmax.f32 %v3819, %v4011
        %v4044 = vmax.f32 %v3820, %v4012
        %v4045 = vmax.f32 %v3821, %v4013
        %v4046 = vmax.f32 %v3822, %v4014
        %v4047 = vmax.f32 %v3823, %v4015
        %v4048 = vmax.f32 %v3824, %v4016
        %v4049 = vmax.f32 %v3825, %v4017
        %v4050 = vmax.f32 %v3826, %v4018
        %v4051 = vmax.f32 %v3827, %v4019
        %v4052 = vmax.f32 %v3828, %v4020
        %v4053 = vmax.f32 %v3829, %v4021
        %v4054 = vmax.f32 %v3830, %v4022
        %v4055 = vmax.f32 %v3831, %v4023
        %v4056 = vld [vmem:[%s1667 + $0x8] sm:$0xff]
        %v4057 = vld [vmem:[%s1667 + $0x10] sm:$0xff]
        %v4058 = vld [vmem:[%s1667 + $0x28] sm:$0xff]
        %v4059 = vld [vmem:[%s1667 + $0x30] sm:$0xff]
        %v4060 = vld [vmem:[%s1667 + $0x48] sm:$0xff]
        %v4061 = vld [vmem:[%s1667 + $0x50] sm:$0xff]
        %v4062 = vld [vmem:[%s1667 + $0x68] sm:$0xff]
        %v4063 = vld [vmem:[%s1667 + $0x70] sm:$0xff]
        %v4064 = vld [vmem:[%s1667 + $0x88] sm:$0xff]
        %v4065 = vld [vmem:[%s1667 + $0x90] sm:$0xff]
        %v4066 = vld [vmem:[%s1667 + $0xa8] sm:$0xff]
        %v4067 = vld [vmem:[%s1667 + $0xb0] sm:$0xff]
        %v4068 = vld [vmem:[%s1667 + $0xc8] sm:$0xff]
        %v4069 = vld [vmem:[%s1667 + $0xd0] sm:$0xff]
        %v4070 = vld [vmem:[%s1667 + $0xe8] sm:$0xff]
        %v4071 = vld [vmem:[%s1667 + $0xf0] sm:$0xff]
        %v4072 = vld [vmem:[%s1667 + $0x108] sm:$0xff]
        %v4073 = vld [vmem:[%s1667 + $0x110] sm:$0xff]
        %v4074 = vld [vmem:[%s1667 + $0x128] sm:$0xff]
        %v4075 = vld [vmem:[%s1667 + $0x130] sm:$0xff]
        %v4076 = vld [vmem:[%s1667 + $0x148] sm:$0xff]
        %v4077 = vld [vmem:[%s1667 + $0x150] sm:$0xff]
        %v4078 = vld [vmem:[%s1667 + $0x168] sm:$0xff]
        %v4079 = vld [vmem:[%s1667 + $0x170] sm:$0xff]
        %v4080 = vld [vmem:[%s1667 + $0x188] sm:$0xff]
        %v4081 = vld [vmem:[%s1667 + $0x190] sm:$0xff]
        %v4082 = vld [vmem:[%s1667 + $0x1a8] sm:$0xff]
        %v4083 = vld [vmem:[%s1667 + $0x1b0] sm:$0xff]
        %v4084 = vld [vmem:[%s1667 + $0x1c8] sm:$0xff]
        %v4085 = vld [vmem:[%s1667 + $0x1d0] sm:$0xff]
        %v4086 = vld [vmem:[%s1667 + $0x1e8] sm:$0xff]
        %v4087 = vld [vmem:[%s1667 + $0x1f0] sm:$0xff]
        %v4088 = vsel 1, %v4056, -3e+38
        %v4089 = vsel 1, %v4057, -3e+38
        %v4090 = vsel 1, %v4058, -3e+38
        %v4091 = vsel 1, %v4059, -3e+38
        %v4092 = vsel 1, %v4060, -3e+38
        %v4093 = vsel 1, %v4061, -3e+38
        %v4094 = vsel 1, %v4062, -3e+38
        %v4095 = vsel 1, %v4063, -3e+38
        %v4096 = vsel 1, %v4064, -3e+38
        %v4097 = vsel 1, %v4065, -3e+38
        %v4098 = vsel 1, %v4066, -3e+38
        %v4099 = vsel 1, %v4067, -3e+38
        %v4100 = vsel 1, %v4068, -3e+38
        %v4101 = vsel 1, %v4069, -3e+38
        %v4102 = vsel 1, %v4070, -3e+38
        %v4103 = vsel 1, %v4071, -3e+38
        %v4104 = vsel 1, %v4072, -3e+38
        %v4105 = vsel 1, %v4073, -3e+38
        %v4106 = vsel 1, %v4074, -3e+38
        %v4107 = vsel 1, %v4075, -3e+38
        %v4108 = vsel 1, %v4076, -3e+38
        %v4109 = vsel 1, %v4077, -3e+38
        %v4110 = vsel 1, %v4078, -3e+38
        %v4111 = vsel 1, %v4079, -3e+38
        %v4112 = vsel 1, %v4080, -3e+38
        %v4113 = vsel 1, %v4081, -3e+38
        %v4114 = vsel 1, %v4082, -3e+38
        %v4115 = vsel 1, %v4083, -3e+38
        %v4116 = vsel 1, %v4084, -3e+38
        %v4117 = vsel 1, %v4085, -3e+38
        %v4118 = vsel 0, %v4086, -3e+38
        %v4119 = vsel 0, %v4087, -3e+38
        %v4120 = vld [vmem:[%s1732 + $0x8] sm:$0xff]
        %v4121 = vld [vmem:[%s1732 + $0x10] sm:$0xff]
        %v4122 = vld [vmem:[%s1732 + $0x28] sm:$0xff]
        %v4123 = vld [vmem:[%s1732 + $0x30] sm:$0xff]
        %v4124 = vld [vmem:[%s1732 + $0x48] sm:$0xff]
        %v4125 = vld [vmem:[%s1732 + $0x50] sm:$0xff]
        %v4126 = vld [vmem:[%s1732 + $0x68] sm:$0xff]
        %v4127 = vld [vmem:[%s1732 + $0x70] sm:$0xff]
        %v4128 = vld [vmem:[%s1732 + $0x88] sm:$0xff]
        %v4129 = vld [vmem:[%s1732 + $0x90] sm:$0xff]
        %v4130 = vld [vmem:[%s1732 + $0xa8] sm:$0xff]
        %v4131 = vld [vmem:[%s1732 + $0xb0] sm:$0xff]
        %v4132 = vld [vmem:[%s1732 + $0xc8] sm:$0xff]
        %v4133 = vld [vmem:[%s1732 + $0xd0] sm:$0xff]
        %v4134 = vld [vmem:[%s1732 + $0xe8] sm:$0xff]
        %v4135 = vld [vmem:[%s1732 + $0xf0] sm:$0xff]
        %v4136 = vld [vmem:[%s1732 + $0x108] sm:$0xff]
        %v4137 = vld [vmem:[%s1732 + $0x110] sm:$0xff]
        %v4138 = vld [vmem:[%s1732 + $0x128] sm:$0xff]
        %v4139 = vld [vmem:[%s1732 + $0x130] sm:$0xff]
        %v4140 = vld [vmem:[%s1732 + $0x148] sm:$0xff]
        %v4141 = vld [vmem:[%s1732 + $0x150] sm:$0xff]
        %v4142 = vld [vmem:[%s1732 + $0x168] sm:$0xff]
        %v4143 = vld [vmem:[%s1732 + $0x170] sm:$0xff]
        %v4144 = vld [vmem:[%s1732 + $0x188] sm:$0xff]
        %v4145 = vld [vmem:[%s1732 + $0x190] sm:$0xff]
        %v4146 = vld [vmem:[%s1732 + $0x1a8] sm:$0xff]
        %v4147 = vld [vmem:[%s1732 + $0x1b0] sm:$0xff]
        %v4148 = vld [vmem:[%s1732 + $0x1c8] sm:$0xff]
        %v4149 = vld [vmem:[%s1732 + $0x1d0] sm:$0xff]
        %v4150 = vld [vmem:[%s1732 + $0x1e8] sm:$0xff]
        %v4151 = vld [vmem:[%s1732 + $0x1f0] sm:$0xff]
        %v4152 = vsel 1, %v4120, -3e+38
        %v4153 = vsel 1, %v4121, -3e+38
        %v4154 = vsel 1, %v4122, -3e+38
        %v4155 = vsel 1, %v4123, -3e+38
        %v4156 = vsel 1, %v4124, -3e+38
        %v4157 = vsel 1, %v4125, -3e+38
        %v4158 = vsel 1, %v4126, -3e+38
        %v4159 = vsel 1, %v4127, -3e+38
        %v4160 = vsel 1, %v4128, -3e+38
        %v4161 = vsel 1, %v4129, -3e+38
        %v4162 = vsel 1, %v4130, -3e+38
        %v4163 = vsel 1, %v4131, -3e+38
        %v4164 = vsel 1, %v4132, -3e+38
        %v4165 = vsel 1, %v4133, -3e+38
        %v4166 = vsel 1, %v4134, -3e+38
        %v4167 = vsel 1, %v4135, -3e+38
        %v4168 = vsel 1, %v4136, -3e+38
        %v4169 = vsel 1, %v4137, -3e+38
        %v4170 = vsel 1, %v4138, -3e+38
        %v4171 = vsel 1, %v4139, -3e+38
        %v4172 = vsel 1, %v4140, -3e+38
        %v4173 = vsel 1, %v4141, -3e+38
        %v4174 = vsel 1, %v4142, -3e+38
        %v4175 = vsel 1, %v4143, -3e+38
        %v4176 = vsel 1, %v4144, -3e+38
        %v4177 = vsel 1, %v4145, -3e+38
        %v4178 = vsel 1, %v4146, -3e+38
        %v4179 = vsel 1, %v4147, -3e+38
        %v4180 = vsel 0, %v4148, -3e+38
        %v4181 = vsel 0, %v4149, -3e+38
        %v4182 = vsel 0, %v4150, -3e+38
        %v4183 = vsel 0, %v4151, -3e+38
        %v4184 = vmax.f32 %v4088, %v4152
        %v4185 = vmax.f32 %v4089, %v4153
        %v4186 = vmax.f32 %v4090, %v4154
        %v4187 = vmax.f32 %v4091, %v4155
        %v4188 = vmax.f32 %v4092, %v4156
        %v4189 = vmax.f32 %v4093, %v4157
        %v4190 = vmax.f32 %v4094, %v4158
        %v4191 = vmax.f32 %v4095, %v4159
        %v4192 = vmax.f32 %v4096, %v4160
        %v4193 = vmax.f32 %v4097, %v4161
        %v4194 = vmax.f32 %v4098, %v4162
        %v4195 = vmax.f32 %v4099, %v4163
        %v4196 = vmax.f32 %v4100, %v4164
        %v4197 = vmax.f32 %v4101, %v4165
        %v4198 = vmax.f32 %v4102, %v4166
        %v4199 = vmax.f32 %v4103, %v4167
        %v4200 = vmax.f32 %v4104, %v4168
        %v4201 = vmax.f32 %v4105, %v4169
        %v4202 = vmax.f32 %v4106, %v4170
        %v4203 = vmax.f32 %v4107, %v4171
        %v4204 = vmax.f32 %v4108, %v4172
        %v4205 = vmax.f32 %v4109, %v4173
        %v4206 = vmax.f32 %v4110, %v4174
        %v4207 = vmax.f32 %v4111, %v4175
        %v4208 = vmax.f32 %v4112, %v4176
        %v4209 = vmax.f32 %v4113, %v4177
        %v4210 = vmax.f32 %v4114, %v4178
        %v4211 = vmax.f32 %v4115, %v4179
        %v4212 = vmax.f32 %v4116, %v4180
        %v4213 = vmax.f32 %v4117, %v4181
        %v4214 = vmax.f32 %v4118, %v4182
        %v4215 = vmax.f32 %v4119, %v4183
        %v4216 = vmax.f32 %v4024, %v4184
        %v4217 = vmax.f32 %v4025, %v4185
        %v4218 = vmax.f32 %v4026, %v4186
        %v4219 = vmax.f32 %v4027, %v4187
        %v4220 = vmax.f32 %v4028, %v4188
        %v4221 = vmax.f32 %v4029, %v4189
        %v4222 = vmax.f32 %v4030, %v4190
        %v4223 = vmax.f32 %v4031, %v4191
        %v4224 = vmax.f32 %v4032, %v4192
        %v4225 = vmax.f32 %v4033, %v4193
        %v4226 = vmax.f32 %v4034, %v4194
        %v4227 = vmax.f32 %v4035, %v4195
        %v4228 = vmax.f32 %v4036, %v4196
        %v4229 = vmax.f32 %v4037, %v4197
        %v4230 = vmax.f32 %v4038, %v4198
        %v4231 = vmax.f32 %v4039, %v4199
        %v4232 = vmax.f32 %v4040, %v4200
        %v4233 = vmax.f32 %v4041, %v4201
        %v4234 = vmax.f32 %v4042, %v4202
        %v4235 = vmax.f32 %v4043, %v4203
        %v4236 = vmax.f32 %v4044, %v4204
        %v4237 = vmax.f32 %v4045, %v4205
        %v4238 = vmax.f32 %v4046, %v4206
        %v4239 = vmax.f32 %v4047, %v4207
        %v4240 = vmax.f32 %v4048, %v4208
        %v4241 = vmax.f32 %v4049, %v4209
        %v4242 = vmax.f32 %v4050, %v4210
        %v4243 = vmax.f32 %v4051, %v4211
        %v4244 = vmax.f32 %v4052, %v4212
        %v4245 = vmax.f32 %v4053, %v4213
        %v4246 = vmax.f32 %v4054, %v4214
        %v4247 = vmax.f32 %v4055, %v4215
        %v4248 = vpack.c.bf16 %v4217, %v4216
        %v4249 = vpack.c.bf16 %v4219, %v4218
        %v4250 = vpack.c.bf16 %v4221, %v4220
        %v4251 = vpack.c.bf16 %v4223, %v4222
        %v4252 = vpack.c.bf16 %v4225, %v4224
        %v4253 = vpack.c.bf16 %v4227, %v4226
        %v4254 = vpack.c.bf16 %v4229, %v4228
        %v4255 = vpack.c.bf16 %v4231, %v4230
        %v4256 = vpack.c.bf16 %v4233, %v4232
        %v4257 = vpack.c.bf16 %v4235, %v4234
        %v4258 = vpack.c.bf16 %v4237, %v4236
        %v4259 = vpack.c.bf16 %v4239, %v4238
        %v4260 = vpack.c.bf16 %v4241, %v4240
        %v4261 = vpack.c.bf16 %v4243, %v4242
        %v4262 = vpack.c.bf16 %v4245, %v4244
        %v4263 = vpack.c.bf16 %v4247, %v4246
        %v4264 = vld [vmem:[#allocation12] sm:$0xf]
        %v4265 = vld [vmem:[#allocation12 + $0x4] sm:$0xf]
        %v4266 = vld [vmem:[#allocation12 + $0x8] sm:$0xf]
        %v4267 = vld [vmem:[#allocation12 + $0xc] sm:$0xf]
        %v4268 = vld [vmem:[#allocation12 + $0x10] sm:$0xf]
        %v4269 = vld [vmem:[#allocation12 + $0x14] sm:$0xf]
        %v4270 = vld [vmem:[#allocation12 + $0x18] sm:$0xf]
        %v4271 = vld [vmem:[#allocation12 + $0x1c] sm:$0xf]
        %v4272 = vld [vmem:[#allocation12 + $0x20] sm:$0xf]
        %v4273 = vld [vmem:[#allocation12 + $0x24] sm:$0xf]
        %v4274 = vld [vmem:[#allocation12 + $0x28] sm:$0xf]
        %v4275 = vld [vmem:[#allocation12 + $0x2c] sm:$0xf]
        %v4276 = vld [vmem:[#allocation12 + $0x30] sm:$0xf]
        %v4277 = vld [vmem:[#allocation12 + $0x34] sm:$0xf]
        %v4278 = vld [vmem:[#allocation12 + $0x38] sm:$0xf]
        %v4279 = vld [vmem:[#allocation12 + $0x3c] sm:$0xf]
        %v4296 = vunpack.c.l.b16 %v4264
        %v4297 = vunpack.c.l.b16 %v4265
        %v4298 = vunpack.c.l.b16 %v4266
        %v4299 = vunpack.c.l.b16 %v4267
        %v4300 = vunpack.c.l.b16 %v4268
        %v4301 = vunpack.c.l.b16 %v4269
        %v4302 = vunpack.c.l.b16 %v4270
        %v4303 = vunpack.c.l.b16 %v4271
        %v4304 = vunpack.c.l.b16 %v4272
        %v4305 = vunpack.c.l.b16 %v4273
        %v4306 = vunpack.c.l.b16 %v4274
        %v4307 = vunpack.c.l.b16 %v4275
        %v4308 = vunpack.c.l.b16 %v4276
        %v4309 = vunpack.c.l.b16 %v4277
        %v4310 = vunpack.c.l.b16 %v4278
        %v4311 = vunpack.c.l.b16 %v4279
        %v4312 = vpack.c.b16 %v4297, %v4296
        %v4313 = vpack.c.b16 %v4299, %v4298
        %v4314 = vpack.c.b16 %v4301, %v4300
        %v4315 = vpack.c.b16 %v4303, %v4302
        %v4316 = vpack.c.b16 %v4305, %v4304
        %v4317 = vpack.c.b16 %v4307, %v4306
        %v4318 = vpack.c.b16 %v4309, %v4308
        %v4319 = vpack.c.b16 %v4311, %v4310
        %4328 = vmatprep.subr.bf16.mxu0 0
        %4329 = vmatpush1.bf16.msra.mxu0 %v4319
        %4330 = vmatprep.subr.bf16.mxu0 0
        %4331 = vmatpush1.bf16.msra.mxu0 %v4318
        %4332 = vmatprep.subr.bf16.mxu0 0
        %4333 = vmatpush1.bf16.msra.mxu0 %v4317
        %4334 = vmatprep.subr.bf16.mxu0 0
        %4335 = vmatpush1.bf16.msra.mxu0 %v4316
        %4336 = vmatprep.subr.bf16.mxu0 0
        %4337 = vmatpush1.bf16.msra.mxu0 %v4315
        %4338 = vmatprep.subr.bf16.mxu0 0
        %4339 = vmatpush1.bf16.msra.mxu0 %v4314
        %4340 = vmatprep.subr.bf16.mxu0 0
        %4341 = vmatpush1.bf16.msra.mxu0 %v4313
        %4342 = vmatprep.subr.bf16.mxu0 0
        %4343 = vmatpush1.bf16.msra.mxu0 %v4312
        %4344 = vmatprep.subr.bf16.mxu0 0
        %4345 = vmatpush2.bf16.msra.mxu0 0
        %4346 = vmatprep.subr.bf16.mxu0 0
        %4347 = vmatpush2.bf16.msra.mxu0 0
        %4348 = vmatprep.subr.bf16.mxu0 0
        %4349 = vmatpush2.bf16.msra.mxu0 0
        %4350 = vmatprep.subr.bf16.mxu0 0
        %4351 = vmatpush2.bf16.msra.mxu0 0
        %4352 = vmatprep.subr.bf16.mxu0 0
        %4353 = vmatpush2.bf16.msra.mxu0 0
        %4354 = vmatprep.subr.bf16.mxu0 0
        %4355 = vmatpush2.bf16.msra.mxu0 0
        %4356 = vmatprep.subr.bf16.mxu0 0
        %4357 = vmatpush2.bf16.msra.mxu0 0
        %4358 = vmatprep.subr.bf16.mxu0 0
        %4359 = vmatpush2.bf16.msra.mxu0 0
        %4360 = vmatprep.mubr.bf16.mxu0 0
        %4361 = vmatmul.mubr.bf16.gmra.mxu0 %v4248
        %v4362 = vpop.f32.mrf.mxu0
        %v4363 = vadd.f32 0.0, %v4362
        %v4364 = vpop.f32.mrf.mxu0
        %v4365 = vpop.f32.mrf.mxu0
        %v4366 = vadd.f32 0.0, %v4365
        %v4367 = vpop.f32.mrf.mxu0
        %4368 = vmatprep.mubr.bf16.mxu0 0
        %4369 = vmatmul.mubr.bf16.gmra.mxu0 %v4249
        %v4370 = vpop.f32.mrf.mxu0
        %v4371 = vadd.f32 0.0, %v4370
        %v4372 = vpop.f32.mrf.mxu0
        %v4373 = vpop.f32.mrf.mxu0
        %v4374 = vadd.f32 0.0, %v4373
        %v4375 = vpop.f32.mrf.mxu0
        %4376 = vmatprep.mubr.bf16.mxu0 0
        %4377 = vmatmul.mubr.bf16.gmra.mxu0 %v4250
        %v4378 = vpop.f32.mrf.mxu0
        %v4379 = vadd.f32 0.0, %v4378
        %v4380 = vpop.f32.mrf.mxu0
        %v4381 = vpop.f32.mrf.mxu0
        %v4382 = vadd.f32 0.0, %v4381
        %v4383 = vpop.f32.mrf.mxu0
        %4384 = vmatprep.mubr.bf16.mxu0 0
        %4385 = vmatmul.mubr.bf16.gmra.mxu0 %v4251
        %v4386 = vpop.f32.mrf.mxu0
        %v4387 = vadd.f32 0.0, %v4386
        %v4388 = vpop.f32.mrf.mxu0
        %v4389 = vpop.f32.mrf.mxu0
        %v4390 = vadd.f32 0.0, %v4389
        %v4391 = vpop.f32.mrf.mxu0
        %4392 = vmatprep.mubr.bf16.mxu0 0
        %4393 = vmatmul.mubr.bf16.gmra.mxu0 %v4252
        %v4394 = vpop.f32.mrf.mxu0
        %v4395 = vadd.f32 0.0, %v4394
        %v4396 = vpop.f32.mrf.mxu0
        %v4397 = vpop.f32.mrf.mxu0
        %v4398 = vadd.f32 0.0, %v4397
        %v4399 = vpop.f32.mrf.mxu0
        %4400 = vmatprep.mubr.bf16.mxu0 0
        %4401 = vmatmul.mubr.bf16.gmra.mxu0 %v4253
        %v4402 = vpop.f32.mrf.mxu0
        %v4403 = vadd.f32 0.0, %v4402
        %v4404 = vpop.f32.mrf.mxu0
        %v4405 = vpop.f32.mrf.mxu0
        %v4406 = vadd.f32 0.0, %v4405
        %v4407 = vpop.f32.mrf.mxu0
        %4408 = vmatprep.mubr.bf16.mxu0 0
        %4409 = vmatmul.mubr.bf16.gmra.mxu0 %v4254
        %v4410 = vpop.f32.mrf.mxu0
        %v4411 = vadd.f32 0.0, %v4410
        %v4412 = vpop.f32.mrf.mxu0
        %v4413 = vpop.f32.mrf.mxu0
        %v4414 = vadd.f32 0.0, %v4413
        %v4415 = vpop.f32.mrf.mxu0
        %4416 = vmatprep.mubr.bf16.mxu0 0
        %4417 = vmatmul.mubr.bf16.gmra.mxu0 %v4255
        %v4418 = vpop.f32.mrf.mxu0
        %v4419 = vadd.f32 0.0, %v4418
        %v4420 = vpop.f32.mrf.mxu0
        %v4421 = vpop.f32.mrf.mxu0
        %v4422 = vadd.f32 0.0, %v4421
        %v4423 = vpop.f32.mrf.mxu0
        %4424 = vmatprep.mubr.bf16.mxu0 0
        %4425 = vmatmul.mubr.bf16.gmra.mxu0 %v4256
        %v4426 = vpop.f32.mrf.mxu0
        %v4427 = vadd.f32 0.0, %v4426
        %v4428 = vpop.f32.mrf.mxu0
        %v4429 = vpop.f32.mrf.mxu0
        %v4430 = vadd.f32 0.0, %v4429
        %v4431 = vpop.f32.mrf.mxu0
        %4432 = vmatprep.mubr.bf16.mxu0 0
        %4433 = vmatmul.mubr.bf16.gmra.mxu0 %v4257
        %v4434 = vpop.f32.mrf.mxu0
        %v4435 = vadd.f32 0.0, %v4434
        %v4436 = vpop.f32.mrf.mxu0
        %v4437 = vpop.f32.mrf.mxu0
        %v4438 = vadd.f32 0.0, %v4437
        %v4439 = vpop.f32.mrf.mxu0
        %4440 = vmatprep.mubr.bf16.mxu0 0
        %4441 = vmatmul.mubr.bf16.gmra.mxu0 %v4258
        %v4442 = vpop.f32.mrf.mxu0
        %v4443 = vadd.f32 0.0, %v4442
        %v4444 = vpop.f32.mrf.mxu0
        %v4445 = vpop.f32.mrf.mxu0
        %v4446 = vadd.f32 0.0, %v4445
        %v4447 = vpop.f32.mrf.mxu0
        %4448 = vmatprep.mubr.bf16.mxu0 0
        %4449 = vmatmul.mubr.bf16.gmra.mxu0 %v4259
        %v4450 = vpop.f32.mrf.mxu0
        %v4451 = vadd.f32 0.0, %v4450
        %v4452 = vpop.f32.mrf.mxu0
        %v4453 = vpop.f32.mrf.mxu0
        %v4454 = vadd.f32 0.0, %v4453
        %v4455 = vpop.f32.mrf.mxu0
        %4456 = vmatprep.mubr.bf16.mxu0 0
        %4457 = vmatmul.mubr.bf16.gmra.mxu0 %v4260
        %v4458 = vpop.f32.mrf.mxu0
        %v4459 = vadd.f32 0.0, %v4458
        %v4460 = vpop.f32.mrf.mxu0
        %v4461 = vpop.f32.mrf.mxu0
        %v4462 = vadd.f32 0.0, %v4461
        %v4463 = vpop.f32.mrf.mxu0
        %4464 = vmatprep.mubr.bf16.mxu0 0
        %4465 = vmatmul.mubr.bf16.gmra.mxu0 %v4261
        %v4466 = vpop.f32.mrf.mxu0
        %v4467 = vadd.f32 0.0, %v4466
        %v4468 = vpop.f32.mrf.mxu0
        %v4469 = vpop.f32.mrf.mxu0
        %v4470 = vadd.f32 0.0, %v4469
        %v4471 = vpop.f32.mrf.mxu0
        %4472 = vmatprep.mubr.bf16.mxu0 0
        %4473 = vmatmul.mubr.bf16.gmra.mxu0 %v4262
        %v4474 = vpop.f32.mrf.mxu0
        %v4475 = vadd.f32 0.0, %v4474
        %v4476 = vpop.f32.mrf.mxu0
        %v4477 = vpop.f32.mrf.mxu0
        %v4478 = vadd.f32 0.0, %v4477
        %v4479 = vpop.f32.mrf.mxu0
        %4480 = vmatprep.mubr.bf16.mxu0 0
        %4481 = vmatmul.mubr.bf16.gmra.mxu0 %v4263
        %v4482 = vpop.f32.mrf.mxu0
        %v4483 = vadd.f32 0.0, %v4482
        %v4484 = vpop.f32.mrf.mxu0
        %v4485 = vpop.f32.mrf.mxu0
        %v4486 = vadd.f32 0.0, %v4485
        %v4487 = vpop.f32.mrf.mxu0
        %4488 = vdwg.mxu0
        %v4489 = vadd.f32 %v3384, %v4363
        %v4490 = vadd.f32 %v3385, %v4366
        %v4491 = vadd.f32 %v3386, %v4371
        %v4492 = vadd.f32 %v3387, %v4374
        %v4493 = vadd.f32 %v3388, %v4379
        %v4494 = vadd.f32 %v3389, %v4382
        %v4495 = vadd.f32 %v3390, %v4387
        %v4496 = vadd.f32 %v3391, %v4390
        %v4497 = vadd.f32 %v3392, %v4395
        %v4498 = vadd.f32 %v3393, %v4398
        %v4499 = vadd.f32 %v3394, %v4403
        %v4500 = vadd.f32 %v3395, %v4406
        %v4501 = vadd.f32 %v3396, %v4411
        %v4502 = vadd.f32 %v3397, %v4414
        %v4503 = vadd.f32 %v3398, %v4419
        %v4504 = vadd.f32 %v3399, %v4422
        %v4505 = vadd.f32 %v3400, %v4427
        %v4506 = vadd.f32 %v3401, %v4430
        %v4507 = vadd.f32 %v3402, %v4435
        %v4508 = vadd.f32 %v3403, %v4438
        %v4509 = vadd.f32 %v3404, %v4443
        %v4510 = vadd.f32 %v3405, %v4446
        %v4511 = vadd.f32 %v3406, %v4451
        %v4512 = vadd.f32 %v3407, %v4454
        %v4513 = vadd.f32 %v3408, %v4459
        %v4514 = vadd.f32 %v3409, %v4462
        %v4515 = vadd.f32 %v3410, %v4467
        %v4516 = vadd.f32 %v3411, %v4470
        %v4517 = vadd.f32 %v3412, %v4475
        %v4518 = vadd.f32 %v3413, %v4478
        %v4519 = vadd.f32 %v3414, %v4483
        %v4520 = vadd.f32 %v3415, %v4486
        %v4521 = vld [vmem:[%s7] sm:$0x1]
        %v4523 = vlaneseq
        %v4524 = vshrl.u32 %v4523, 7
        %v4525 = vsub.s32 0, %v4524
        %v4526 = vrot.slane %v4521, %v4525
        %v4528 = vadd.f32 %v4489, %v4526
        %v4529 = vadd.f32 %v4490, %v4526
        %v4530 = vadd.f32 %v4491, %v4526
        %v4531 = vadd.f32 %v4492, %v4526
        %v4532 = vadd.f32 %v4493, %v4526
        %v4533 = vadd.f32 %v4494, %v4526
        %v4534 = vadd.f32 %v4495, %v4526
        %v4535 = vadd.f32 %v4496, %v4526
        %v4536 = vadd.f32 %v4497, %v4526
        %v4537 = vadd.f32 %v4498, %v4526
        %v4538 = vadd.f32 %v4499, %v4526
        %v4539 = vadd.f32 %v4500, %v4526
        %v4540 = vadd.f32 %v4501, %v4526
        %v4541 = vadd.f32 %v4502, %v4526
        %v4542 = vadd.f32 %v4503, %v4526
        %v4543 = vadd.f32 %v4504, %v4526
        %v4544 = vadd.f32 %v4505, %v4526
        %v4545 = vadd.f32 %v4506, %v4526
        %v4546 = vadd.f32 %v4507, %v4526
        %v4547 = vadd.f32 %v4508, %v4526
        %v4548 = vadd.f32 %v4509, %v4526
        %v4549 = vadd.f32 %v4510, %v4526
        %v4550 = vadd.f32 %v4511, %v4526
        %v4551 = vadd.f32 %v4512, %v4526
        %v4552 = vadd.f32 %v4513, %v4526
        %v4553 = vadd.f32 %v4514, %v4526
        %v4554 = vadd.f32 %v4515, %v4526
        %v4555 = vadd.f32 %v4516, %v4526
        %v4556 = vadd.f32 %v4517, %v4526
        %v4557 = vadd.f32 %v4518, %v4526
        %v4558 = vadd.f32 %v4519, %v4526
        %v4559 = vadd.f32 %v4520, %v4526
        %v4560 = vxor.u32 %v4528, 2147483648
        %v4561 = vxor.u32 %v4529, 2147483648
        %v4562 = vxor.u32 %v4530, 2147483648
        %v4563 = vxor.u32 %v4531, 2147483648
        %v4564 = vxor.u32 %v4532, 2147483648
        %v4565 = vxor.u32 %v4533, 2147483648
        %v4566 = vxor.u32 %v4534, 2147483648
        %v4567 = vxor.u32 %v4535, 2147483648
        %v4568 = vxor.u32 %v4536, 2147483648
        %v4569 = vxor.u32 %v4537, 2147483648
        %v4570 = vxor.u32 %v4538, 2147483648
        %v4571 = vxor.u32 %v4539, 2147483648
        %v4572 = vxor.u32 %v4540, 2147483648
        %v4573 = vxor.u32 %v4541, 2147483648
        %v4574 = vxor.u32 %v4542, 2147483648
        %v4575 = vxor.u32 %v4543, 2147483648
        %v4576 = vxor.u32 %v4544, 2147483648
        %v4577 = vxor.u32 %v4545, 2147483648
        %v4578 = vxor.u32 %v4546, 2147483648
        %v4579 = vxor.u32 %v4547, 2147483648
        %v4580 = vxor.u32 %v4548, 2147483648
        %v4581 = vxor.u32 %v4549, 2147483648
        %v4582 = vxor.u32 %v4550, 2147483648
        %v4583 = vxor.u32 %v4551, 2147483648
        %v4584 = vxor.u32 %v4552, 2147483648
        %v4585 = vxor.u32 %v4553, 2147483648
        %v4586 = vxor.u32 %v4554, 2147483648
        %v4587 = vxor.u32 %v4555, 2147483648
        %v4588 = vxor.u32 %v4556, 2147483648
        %v4589 = vxor.u32 %v4557, 2147483648
        %v4590 = vxor.u32 %v4558, 2147483648
        %v4591 = vxor.u32 %v4559, 2147483648
        %v4592 = vmul.f32 %v4560, 1.442695
        %v4593 = vpow.pop %v4592
        %v4594 = vmul.f32 %v4561, 1.442695
        %v4595 = vpow.pop %v4594
        %v4596 = vmul.f32 %v4562, 1.442695
        %v4597 = vpow.pop %v4596
        %v4598 = vmul.f32 %v4563, 1.442695
        %v4599 = vpow.pop %v4598
        %v4600 = vmul.f32 %v4564, 1.442695
        %v4601 = vpow.pop %v4600
        %v4602 = vmul.f32 %v4565, 1.442695
        %v4603 = vpow.pop %v4602
        %v4604 = vmul.f32 %v4566, 1.442695
        %v4605 = vpow.pop %v4604
        %v4606 = vmul.f32 %v4567, 1.442695
        %v4607 = vpow.pop %v4606
        %v4608 = vmul.f32 %v4568, 1.442695
        %v4609 = vpow.pop %v4608
        %v4610 = vmul.f32 %v4569, 1.442695
        %v4611 = vpow.pop %v4610
        %v4612 = vmul.f32 %v4570, 1.442695
        %v4613 = vpow.pop %v4612
        %v4614 = vmul.f32 %v4571, 1.442695
        %v4615 = vpow.pop %v4614
        %v4616 = vmul.f32 %v4572, 1.442695
        %v4617 = vpow.pop %v4616
        %v4618 = vmul.f32 %v4573, 1.442695
        %v4619 = vpow.pop %v4618
        %v4620 = vmul.f32 %v4574, 1.442695
        %v4621 = vpow.pop %v4620
        %v4622 = vmul.f32 %v4575, 1.442695
        %v4623 = vpow.pop %v4622
        %v4624 = vmul.f32 %v4576, 1.442695
        %v4625 = vpow.pop %v4624
        %v4626 = vmul.f32 %v4577, 1.442695
        %v4627 = vpow.pop %v4626
        %v4628 = vmul.f32 %v4578, 1.442695
        %v4629 = vpow.pop %v4628
        %v4630 = vmul.f32 %v4579, 1.442695
        %v4631 = vpow.pop %v4630
        %v4632 = vmul.f32 %v4580, 1.442695
        %v4633 = vpow.pop %v4632
        %v4634 = vmul.f32 %v4581, 1.442695
        %v4635 = vpow.pop %v4634
        %v4636 = vmul.f32 %v4582, 1.442695
        %v4637 = vpow.pop %v4636
        %v4638 = vmul.f32 %v4583, 1.442695
        %v4639 = vpow.pop %v4638
        %v4640 = vmul.f32 %v4584, 1.442695
        %v4641 = vpow.pop %v4640
        %v4642 = vmul.f32 %v4585, 1.442695
        %v4643 = vpow.pop %v4642
        %v4644 = vmul.f32 %v4586, 1.442695
        %v4645 = vpow.pop %v4644
        %v4646 = vmul.f32 %v4587, 1.442695
        %v4647 = vpow.pop %v4646
        %v4648 = vmul.f32 %v4588, 1.442695
        %v4649 = vpow.pop %v4648
        %v4650 = vmul.f32 %v4589, 1.442695
        %v4651 = vpow.pop %v4650
        %v4652 = vmul.f32 %v4590, 1.442695
        %v4653 = vpow.pop %v4652
        %v4654 = vmul.f32 %v4591, 1.442695
        %v4655 = vpow.pop %v4654
        %v4656 = vadd.f32 %v4593, 1.0
        %v4657 = vadd.f32 %v4595, 1.0
        %v4658 = vadd.f32 %v4597, 1.0
        %v4659 = vadd.f32 %v4599, 1.0
        %v4660 = vadd.f32 %v4601, 1.0
        %v4661 = vadd.f32 %v4603, 1.0
        %v4662 = vadd.f32 %v4605, 1.0
        %v4663 = vadd.f32 %v4607, 1.0
        %v4664 = vadd.f32 %v4609, 1.0
        %v4665 = vadd.f32 %v4611, 1.0
        %v4666 = vadd.f32 %v4613, 1.0
        %v4667 = vadd.f32 %v4615, 1.0
        %v4668 = vadd.f32 %v4617, 1.0
        %v4669 = vadd.f32 %v4619, 1.0
        %v4670 = vadd.f32 %v4621, 1.0
        %v4671 = vadd.f32 %v4623, 1.0
        %v4672 = vadd.f32 %v4625, 1.0
        %v4673 = vadd.f32 %v4627, 1.0
        %v4674 = vadd.f32 %v4629, 1.0
        %v4675 = vadd.f32 %v4631, 1.0
        %v4676 = vadd.f32 %v4633, 1.0
        %v4677 = vadd.f32 %v4635, 1.0
        %v4678 = vadd.f32 %v4637, 1.0
        %v4679 = vadd.f32 %v4639, 1.0
        %v4680 = vadd.f32 %v4641, 1.0
        %v4681 = vadd.f32 %v4643, 1.0
        %v4682 = vadd.f32 %v4645, 1.0
        %v4683 = vadd.f32 %v4647, 1.0
        %v4684 = vadd.f32 %v4649, 1.0
        %v4685 = vadd.f32 %v4651, 1.0
        %v4686 = vadd.f32 %v4653, 1.0
        %v4687 = vadd.f32 %v4655, 1.0
        %v4688 = vrcp.pop %v4656
        %v4689 = vmul.f32 1.0, %v4688
        %v4690 = vrcp.pop %v4657
        %v4691 = vmul.f32 1.0, %v4690
        %v4692 = vrcp.pop %v4658
        %v4693 = vmul.f32 1.0, %v4692
        %v4694 = vrcp.pop %v4659
        %v4695 = vmul.f32 1.0, %v4694
        %v4696 = vrcp.pop %v4660
        %v4697 = vmul.f32 1.0, %v4696
        %v4698 = vrcp.pop %v4661
        %v4699 = vmul.f32 1.0, %v4698
        %v4700 = vrcp.pop %v4662
        %v4701 = vmul.f32 1.0, %v4700
        %v4702 = vrcp.pop %v4663
        %v4703 = vmul.f32 1.0, %v4702
        %v4704 = vrcp.pop %v4664
        %v4705 = vmul.f32 1.0, %v4704
        %v4706 = vrcp.pop %v4665
        %v4707 = vmul.f32 1.0, %v4706
        %v4708 = vrcp.pop %v4666
        %v4709 = vmul.f32 1.0, %v4708
        %v4710 = vrcp.pop %v4667
        %v4711 = vmul.f32 1.0, %v4710
        %v4712 = vrcp.pop %v4668
        %v4713 = vmul.f32 1.0, %v4712
        %v4714 = vrcp.pop %v4669
        %v4715 = vmul.f32 1.0, %v4714
        %v4716 = vrcp.pop %v4670
        %v4717 = vmul.f32 1.0, %v4716
        %v4718 = vrcp.pop %v4671
        %v4719 = vmul.f32 1.0, %v4718
        %v4720 = vrcp.pop %v4672
        %v4721 = vmul.f32 1.0, %v4720
        %v4722 = vrcp.pop %v4673
        %v4723 = vmul.f32 1.0, %v4722
        %v4724 = vrcp.pop %v4674
        %v4725 = vmul.f32 1.0, %v4724
        %v4726 = vrcp.pop %v4675
        %v4727 = vmul.f32 1.0, %v4726
        %v4728 = vrcp.pop %v4676
        %v4729 = vmul.f32 1.0, %v4728
        %v4730 = vrcp.pop %v4677
        %v4731 = vmul.f32 1.0, %v4730
        %v4732 = vrcp.pop %v4678
        %v4733 = vmul.f32 1.0, %v4732
        %v4734 = vrcp.pop %v4679
        %v4735 = vmul.f32 1.0, %v4734
        %v4736 = vrcp.pop %v4680
        %v4737 = vmul.f32 1.0, %v4736
        %v4738 = vrcp.pop %v4681
        %v4739 = vmul.f32 1.0, %v4738
        %v4740 = vrcp.pop %v4682
        %v4741 = vmul.f32 1.0, %v4740
        %v4742 = vrcp.pop %v4683
        %v4743 = vmul.f32 1.0, %v4742
        %v4744 = vrcp.pop %v4684
        %v4745 = vmul.f32 1.0, %v4744
        %v4746 = vrcp.pop %v4685
        %v4747 = vmul.f32 1.0, %v4746
        %v4748 = vrcp.pop %v4686
        %v4749 = vmul.f32 1.0, %v4748
        %v4750 = vrcp.pop %v4687
        %v4751 = vmul.f32 1.0, %v4750
        %v4752 = vmul.f32 %v4528, %v4689
        %v4753 = vmul.f32 %v4529, %v4691
        %v4754 = vmul.f32 %v4530, %v4693
        %v4755 = vmul.f32 %v4531, %v4695
        %v4756 = vmul.f32 %v4532, %v4697
        %v4757 = vmul.f32 %v4533, %v4699
        %v4758 = vmul.f32 %v4534, %v4701
        %v4759 = vmul.f32 %v4535, %v4703
        %v4760 = vmul.f32 %v4536, %v4705
        %v4761 = vmul.f32 %v4537, %v4707
        %v4762 = vmul.f32 %v4538, %v4709
        %v4763 = vmul.f32 %v4539, %v4711
        %v4764 = vmul.f32 %v4540, %v4713
        %v4765 = vmul.f32 %v4541, %v4715
        %v4766 = vmul.f32 %v4542, %v4717
        %v4767 = vmul.f32 %v4543, %v4719
        %v4768 = vmul.f32 %v4544, %v4721
        %v4769 = vmul.f32 %v4545, %v4723
        %v4770 = vmul.f32 %v4546, %v4725
        %v4771 = vmul.f32 %v4547, %v4727
        %v4772 = vmul.f32 %v4548, %v4729
        %v4773 = vmul.f32 %v4549, %v4731
        %v4774 = vmul.f32 %v4550, %v4733
        %v4775 = vmul.f32 %v4551, %v4735
        %v4776 = vmul.f32 %v4552, %v4737
        %v4777 = vmul.f32 %v4553, %v4739
        %v4778 = vmul.f32 %v4554, %v4741
        %v4779 = vmul.f32 %v4555, %v4743
        %v4780 = vmul.f32 %v4556, %v4745
        %v4781 = vmul.f32 %v4557, %v4747
        %v4782 = vmul.f32 %v4558, %v4749
        %v4783 = vmul.f32 %v4559, %v4751
        %v4784 = vpack.c.bf16 %v4753, %v4752
        %v4785 = vpack.c.bf16 %v4755, %v4754
        %v4786 = vpack.c.bf16 %v4757, %v4756
        %v4787 = vpack.c.bf16 %v4759, %v4758
        %v4788 = vpack.c.bf16 %v4761, %v4760
        %v4789 = vpack.c.bf16 %v4763, %v4762
        %v4790 = vpack.c.bf16 %v4765, %v4764
        %v4791 = vpack.c.bf16 %v4767, %v4766
        %v4792 = vpack.c.bf16 %v4769, %v4768
        %v4793 = vpack.c.bf16 %v4771, %v4770
        %v4794 = vpack.c.bf16 %v4773, %v4772
        %v4795 = vpack.c.bf16 %v4775, %v4774
        %v4796 = vpack.c.bf16 %v4777, %v4776
        %v4797 = vpack.c.bf16 %v4779, %v4778
        %v4798 = vpack.c.bf16 %v4781, %v4780
        %v4799 = vpack.c.bf16 %v4783, %v4782
        %v4816 = vunpack.c.l.b16 %v4784
        %v4817 = vunpack.c.h.b16 %v4784
        %v4818 = vunpack.c.l.b16 %v4785
        %v4819 = vunpack.c.h.b16 %v4785
        %v4820 = vunpack.c.l.b16 %v4786
        %v4821 = vunpack.c.h.b16 %v4786
        %v4822 = vunpack.c.l.b16 %v4787
        %v4823 = vunpack.c.h.b16 %v4787
        %v4824 = vunpack.c.l.b16 %v4788
        %v4825 = vunpack.c.h.b16 %v4788
        %v4826 = vunpack.c.l.b16 %v4789
        %v4827 = vunpack.c.h.b16 %v4789
        %v4828 = vunpack.c.l.b16 %v4790
        %v4829 = vunpack.c.h.b16 %v4790
        %v4830 = vunpack.c.l.b16 %v4791
        %v4831 = vunpack.c.h.b16 %v4791
        %v4832 = vunpack.c.l.b16 %v4792
        %v4833 = vunpack.c.h.b16 %v4792
        %v4834 = vunpack.c.l.b16 %v4793
        %v4835 = vunpack.c.h.b16 %v4793
        %v4836 = vunpack.c.l.b16 %v4794
        %v4837 = vunpack.c.h.b16 %v4794
        %v4838 = vunpack.c.l.b16 %v4795
        %v4839 = vunpack.c.h.b16 %v4795
        %v4840 = vunpack.c.l.b16 %v4796
        %v4841 = vunpack.c.h.b16 %v4796
        %v4842 = vunpack.c.l.b16 %v4797
        %v4843 = vunpack.c.h.b16 %v4797
        %v4844 = vunpack.c.l.b16 %v4798
        %v4845 = vunpack.c.h.b16 %v4798
        %v4846 = vunpack.c.l.b16 %v4799
        %v4847 = vunpack.c.h.b16 %v4799
        %v4848 = vpack.c.b16 %v4816, %v4816
        %v4849 = vpack.c.b16 %v4817, %v4817
        %v4850 = vpack.c.b16 %v4818, %v4818
        %v4851 = vpack.c.b16 %v4819, %v4819
        %v4852 = vpack.c.b16 %v4820, %v4820
        %v4853 = vpack.c.b16 %v4821, %v4821
        %v4854 = vpack.c.b16 %v4822, %v4822
        %v4855 = vpack.c.b16 %v4823, %v4823
        %v4856 = vpack.c.b16 %v4824, %v4824
        %v4857 = vpack.c.b16 %v4825, %v4825
        %v4858 = vpack.c.b16 %v4826, %v4826
        %v4859 = vpack.c.b16 %v4827, %v4827
        %v4860 = vpack.c.b16 %v4828, %v4828
        %v4861 = vpack.c.b16 %v4829, %v4829
        %v4862 = vpack.c.b16 %v4830, %v4830
        %v4863 = vpack.c.b16 %v4831, %v4831
        %v4864 = vpack.c.b16 %v4832, %v4832
        %v4865 = vpack.c.b16 %v4833, %v4833
        %v4866 = vpack.c.b16 %v4834, %v4834
        %v4867 = vpack.c.b16 %v4835, %v4835
        %v4868 = vpack.c.b16 %v4836, %v4836
        %v4869 = vpack.c.b16 %v4837, %v4837
        %v4870 = vpack.c.b16 %v4838, %v4838
        %v4871 = vpack.c.b16 %v4839, %v4839
        %v4872 = vpack.c.b16 %v4840, %v4840
        %v4873 = vpack.c.b16 %v4841, %v4841
        %v4874 = vpack.c.b16 %v4842, %v4842
        %v4875 = vpack.c.b16 %v4843, %v4843
        %v4876 = vpack.c.b16 %v4844, %v4844
        %v4877 = vpack.c.b16 %v4845, %v4845
        %v4878 = vpack.c.b16 %v4846, %v4846
        %v4879 = vpack.c.b16 %v4847, %v4847
        %4912 = vst [vmem:[%s396] sm:$0xf] %v4848
        %4913 = vst [vmem:[%s396 + $0x4] sm:$0xf] %v4849
        %4914 = vst [vmem:[%s396 + $0x8] sm:$0xf] %v4850
        %4915 = vst [vmem:[%s396 + $0xc] sm:$0xf] %v4851
        %4916 = vst [vmem:[%s396 + $0x10] sm:$0xf] %v4852
        %4917 = vst [vmem:[%s396 + $0x14] sm:$0xf] %v4853
        %4918 = vst [vmem:[%s396 + $0x18] sm:$0xf] %v4854
        %4919 = vst [vmem:[%s396 + $0x1c] sm:$0xf] %v4855
        %4920 = vst [vmem:[%s396 + $0x20] sm:$0xf] %v4856
        %4921 = vst [vmem:[%s396 + $0x24] sm:$0xf] %v4857
        %4922 = vst [vmem:[%s396 + $0x28] sm:$0xf] %v4858
        %4923 = vst [vmem:[%s396 + $0x2c] sm:$0xf] %v4859
        %4924 = vst [vmem:[%s396 + $0x30] sm:$0xf] %v4860
        %4925 = vst [vmem:[%s396 + $0x34] sm:$0xf] %v4861
        %4926 = vst [vmem:[%s396 + $0x38] sm:$0xf] %v4862
        %4927 = vst [vmem:[%s396 + $0x3c] sm:$0xf] %v4863
        %4928 = vst [vmem:[%s396 + $0x40] sm:$0xf] %v4864
        %4929 = vst [vmem:[%s396 + $0x44] sm:$0xf] %v4865
        %4930 = vst [vmem:[%s396 + $0x48] sm:$0xf] %v4866
        %4931 = vst [vmem:[%s396 + $0x4c] sm:$0xf] %v4867
        %4932 = vst [vmem:[%s396 + $0x50] sm:$0xf] %v4868
        %4933 = vst [vmem:[%s396 + $0x54] sm:$0xf] %v4869
        %4934 = vst [vmem:[%s396 + $0x58] sm:$0xf] %v4870
        %4935 = vst [vmem:[%s396 + $0x5c] sm:$0xf] %v4871
        %4936 = vst [vmem:[%s396 + $0x60] sm:$0xf] %v4872
        %4937 = vst [vmem:[%s396 + $0x64] sm:$0xf] %v4873
        %4938 = vst [vmem:[%s396 + $0x68] sm:$0xf] %v4874
        %4939 = vst [vmem:[%s396 + $0x6c] sm:$0xf] %v4875
        %4940 = vst [vmem:[%s396 + $0x70] sm:$0xf] %v4876
        %4941 = vst [vmem:[%s396 + $0x74] sm:$0xf] %v4877
        %4942 = vst [vmem:[%s396 + $0x78] sm:$0xf] %v4878
        %4943 = vst [vmem:[%s396 + $0x7c] sm:$0xf] %v4879
        %s4944 = sand.u32 %s209, 1
        %s4945 = scalar_lea.sflag [#allocation5], %s4944
        %s4946 = sand.u32 %s209, 1
        %s4947 = smul.addr %s4946, 128
        %s4948 = scalar_lea.vmem [#allocation14], %s4947
        // Predicated region
        $region77: #{tpu_custom_call.1} parent=51 // pred_check
          %p4949 = pneg %p219
        $region78: #{tpu_custom_call.1} parent=51 // pred_check_branch
          %4951 = sbr.rel (%p4949) target = $region80
        $region79: #{tpu_custom_call.1} parent=51 // pred_region
          %s4953 = ssub.s32 2048, 2048
          %4954 = vsyncadd %s4945, %s4953
          %s4955 = smul.addr %s28, 32
          %s4956 = smul.addr %s4955, 64
          %s4957 = scalar_lea.hbm %s8, %s4956
          %s4958 = sshll.u32 %s4948, 4
          %s4959 = int_to_ptr.vmem [resolvable:$true] %s4958
          %4964 = dma.vmem_to_hbm [thread:$0]  %s4959, 2048, %s4957, %s4945, 64, 64, 4
        $region80: #{tpu_custom_call.1} parent=51 // pred_fallthru
          _
      $region52: #{tpu_custom_call.1} parent=5 // pred_fallthru
        _
      %p4965 = scmp.le.s32.totalorder 2, %s23
      // Predicated region
      $region81: #{tpu_custom_call.1} parent=5 // pred_check
        %p4966 = pneg %p4965
      $region82: #{tpu_custom_call.1} parent=5 // pred_check_branch
        %4968 = sbr.rel (%p4966) target = $region84
      $region83: #{tpu_custom_call.1} parent=5 // pred_region
        %s4969 = ssub.s32 %s23, 2
        // Predicated region
        $region85: #{tpu_custom_call.1} parent=83 // pred_check
          %p4970 = pneg %p225
        $region86: #{tpu_custom_call.1} parent=83 // pred_check_branch
          %4972 = sbr.rel (%p4970) target = $region88
        $region87: #{tpu_custom_call.1} parent=83 // pred_region
          %s4973 = sand.u32 %s210, 1
          %s4974 = scalar_lea.sflag [#allocation5], %s4973
          %s4975 = sand.u32 %s210, 1
          %s4976 = smul.addr %s4975, 128
          %s4977 = scalar_lea.vmem [#allocation14], %s4976
          %4978 = dma.done %s4974, 2048
        $region88: #{tpu_custom_call.1} parent=83 // pred_fallthru
          _
      $region84: #{tpu_custom_call.1} parent=5 // pred_fallthru
        _
    $region6: #{tpu_custom_call.1} parent=1 // loop_footer
      %s27 = sadd.s32 1, %s23
    $region7: #{tpu_custom_call.1} parent=1 // loop_footer_branch
      %22 = sbr.rel target = $region3
    $region8: #{tpu_custom_call.1} parent=1 // loop_exit
      _
    %4979 = vsyncpa [#allocation4], 1
    %s4980 = scalar_lea.sflag [#allocation4], 1
    %4981 = vsyncpa %s4980, 1
    %4982 = vsyncpa [#allocation7], 1
    %4983 = vsyncpa [#allocation10], 1
    %4984 = vsyncpa [#allocation13], 1
    %4985 = vsyncpa [#allocation5], 1
    %s4986 = scalar_lea.sflag [#allocation5], 1
    %4987 = vsyncpa %s4986, 1

</llo_original>
